<compile_context>
chip_gen: v5e
topology: v5e:2x2
jax: 0.10.0
libtpu: 0.0.40
codegen_flags: <defaults>
</compile_context>

<pallas_src>
import jax
import jax.numpy as jnp
import numpy as np
from jax.experimental import pallas as pl
from jax.experimental.pallas import tpu as pltpu


def _round_up(x, m):
    return (x + m - 1) // m * m


def _make_nb1d_kernel(H, W, dilated):
    HW = H * W

    def kernel(x_ref, w1_ref, b1_ref, w2_ref, t1_ref,
               w3_ref, b3_ref, w4_ref, t2_ref, o_ref):
        x = x_ref[0]                                            # (HW, Cp) f32, one image

        # Row-index tables built in-kernel (no extra DMA).
        r = jax.lax.broadcasted_iota(jnp.int32, (HW, 1), 0)     # flat row index
        if W & (W - 1) == 0:
            w_pos = jnp.bitwise_and(r, W - 1)                   # w = r % W (W power of 2)
        else:
            w_pos = jax.lax.rem(r, W)

        def fused_conv(a, taps_ref, bias_ref, along_h, dil):
            # 3-tap separable conv as a single MXU matmul:
            #   concat(shift(a,-s), a, shift(a,+s)) @ stacked_taps  (bf16 in, f32 acc)
            step = dil * W if along_h else dil                  # row offset per tap
            parts = []
            for k in (-1, 0, 1):
                off = k * step
                if off == 0:
                    parts.append(a)
                    continue
                # sh[r] = a[(r + off) mod HW]  (XLU sublane rotate, wrap is masked out)
                sh = pltpu.roll(a, (-off) % HW, axis=0)
                if along_h:
                    valid = jnp.logical_and(r + off >= 0, r + off < HW)
                else:
                    valid = jnp.logical_and(w_pos + off >= 0, w_pos + off < W)
                parts.append(jnp.where(valid, sh, 0.0))
            lhs = jnp.concatenate(parts, axis=1).astype(jnp.bfloat16)   # (HW, 3*Cp)
            acc = jnp.dot(lhs, taps_ref[...], preferred_element_type=jnp.float32)
            return acc + bias_ref[...]                          # (1, Cp) broadcast

        y = jnp.maximum(fused_conv(x, w1_ref, b1_ref, True, 1), 0.0)       # conv3x1_1+relu
        y = fused_conv(y, w2_ref, t1_ref, False, 1)                        # conv1x3_1+bn1
        y = jnp.maximum(y, 0.0)                                            # relu
        y = jnp.maximum(fused_conv(y, w3_ref, b3_ref, True, dilated), 0.0) # conv3x1_2+relu
        y = fused_conv(y, w4_ref, t2_ref, False, dilated)                  # conv1x3_2+bn2
        # Dropout2d skipped (dropprob == 0, same as the PyTorch forward).
        o_ref[0] = jnp.maximum(y + x, 0.0)                                 # residual + relu

    return kernel


def non_bottleneck_1d_forward_nhwc(x_nhwc, params, dilated, eps=1e-3):
    """Channels-last entry point: (N, H, W, C) f32 -> (N, H, W, C) f32."""
    N, H, W, C = x_nhwc.shape
    HW = H * W
    Cp = _round_up(C, 128)            # lane-dense channel count

    x = x_nhwc.reshape(N, HW, C).astype(jnp.float32)
    if Cp != C:
        x = jnp.pad(x, ((0, 0), (0, 0), (0, Cp - C)))

    def pad_vec(v):                   # (C,) -> (1, Cp) f32, zero-padded channels
        return jnp.pad(v.astype(jnp.float32), (0, Cp - C)).reshape(1, Cp)

    def stack_taps(w, along_h, out_scale=None):
        # PyTorch OIHW (C,C,3,1)/(C,C,1,3) -> stacked (3*Cp, Cp) bf16 tap matrix,
        # optionally pre-scaled by the folded BN scale along the output channels.
        t = w[:, :, :, 0] if along_h else w[:, :, 0, :]          # (O, I, 3)
        t = jnp.transpose(t, (2, 1, 0)).astype(jnp.float32)      # (3, Cin, Cout)
        if out_scale is not None:
            t = t * out_scale[None, None, :]
        tp = jnp.zeros((3, Cp, Cp), jnp.float32).at[:, :C, :C].set(t)
        return tp.reshape(3 * Cp, Cp).astype(jnp.bfloat16)

    def bn_affine(g, b, m, v):
        s = g / jnp.sqrt(v + eps)
        return s, b - m * s

    s1, t1 = bn_affine(params["g1"], params["be1"], params["m1"], params["v1"])
    s2, t2 = bn_affine(params["g2"], params["be2"], params["m2"], params["v2"])

    inputs = (
        x,
        stack_taps(params["w1"], True),       pad_vec(params["b1"]),
        stack_taps(params["w2"], False, s1),  pad_vec(params["b2"] * s1 + t1),
        stack_taps(params["w3"], True),       pad_vec(params["b3"]),
        stack_taps(params["w4"], False, s2),  pad_vec(params["b4"] * s2 + t2),
    )

    img_spec = pl.BlockSpec((1, HW, Cp), lambda n: (n, 0, 0))          # one image / step
    weight_specs = [pl.BlockSpec(a.shape, lambda n: (0, 0)) for a in inputs[1:]]

    kernel = _make_nb1d_kernel(H, W, dilated)
    out = pl.pallas_call(
        kernel,
        out_shape=jax.ShapeDtypeStruct((N, HW, Cp), jnp.float32),
        grid=(N,),
        in_specs=[img_spec] + weight_specs,
        out_specs=pl.BlockSpec((1, HW, Cp), lambda n: (n, 0, 0)),
        compiler_params=pltpu.CompilerParams(
            dimension_semantics=("parallel",)),
    )(*inputs)

    return out[:, :, :C].reshape(N, H, W, C)


def non_bottleneck_1d_forward(x_nchw, params, dilated, eps=1e-3):
    # PyTorch-compat adapter (NCHW in / NCHW out).  The Pallas pipeline is NHWC-native;
    # a JAX model should call non_bottleneck_1d_forward_nhwc directly and skip these
    # transposes (each is an extra HBM read+write of the activation).
    x_nhwc = jnp.transpose(x_nchw, (0, 2, 3, 1))
    y = non_bottleneck_1d_forward_nhwc(x_nhwc, params, dilated, eps)
    return jnp.transpose(y, (0, 3, 1, 2))


def reference_forward(x, p, dilated, eps=1e-3):
    hp = jax.lax.Precision.HIGHEST

    def conv(x, w, b, pad, dil):
        y = jax.lax.conv_general_dilated(
            x, w, window_strides=(1, 1), padding=pad, rhs_dilation=dil,
            dimension_numbers=("NCHW", "OIHW", "NCHW"), precision=hp)
        return y + b[None, :, None, None]

    def bn(x, g, b, m, v):
        return (x - m[None, :, None, None]) / jnp.sqrt(v[None, :, None, None] + eps) \
               * g[None, :, None, None] + b[None, :, None, None]

    d = dilated
    y = jax.nn.relu(conv(x, p["w1"], p["b1"], ((1, 1), (0, 0)), (1, 1)))
    y = conv(y, p["w2"], p["b2"], ((0, 0), (1, 1)), (1, 1))
    y = jax.nn.relu(bn(y, p["g1"], p["be1"], p["m1"], p["v1"]))
    y = jax.nn.relu(conv(y, p["w3"], p["b3"], ((d, d), (0, 0)), (d, 1)))
    y = conv(y, p["w4"], p["b4"], ((0, 0), (d, d)), (1, d))
    y = bn(y, p["g2"], p["be2"], p["m2"], p["v2"])
    return jax.nn.relu(y + x)


def init_params(key, C):
    ks = jax.random.split(key, 16)
    n = lambda k, shape, s=0.2: s * jax.random.normal(k, shape, jnp.float32)
    return {
        "w1": n(ks[0], (C, C, 3, 1)), "b1": n(ks[1], (C,), 0.1),
        "w2": n(ks[2], (C, C, 1, 3)), "b2": n(ks[3], (C,), 0.1),
        "g1": 1.0 + n(ks[4], (C,), 0.1), "be1": n(ks[5], (C,), 0.1),
        "m1": n(ks[6], (C,), 0.1),
        "v1": 1.0 + 0.5 * jax.random.uniform(ks[7], (C,), jnp.float32),
        "w3": n(ks[8], (C, C, 3, 1)), "b3": n(ks[9], (C,), 0.1),
        "w4": n(ks[10], (C, C, 1, 3)), "b4": n(ks[11], (C,), 0.1),
        "g2": 1.0 + n(ks[12], (C,), 0.1), "be2": n(ks[13], (C,), 0.1),
        "m2": n(ks[14], (C,), 0.1),
        "v2": 1.0 + 0.5 * jax.random.uniform(ks[15], (C,), jnp.float32),
    }


if __name__ == "__main__":
    key = jax.random.PRNGKey(0)
    k_x, k_p = jax.random.split(key)

    N, C, H, W = 2, 8, 16, 16   # small demo shape (real ERFNet: C=64/128, larger H*W)
    dilated = 2
    dropprob = 0.0              # -> PyTorch forward skips dropout

    params = init_params(k_p, C)
    x = jax.random.normal(k_x, (N, C, H, W), jnp.float32)

    out = non_bottleneck_1d_forward(x, params, dilated)
    out = jax.block_until_ready(out)

    ref = reference_forward(x, params, dilated)
    assert out.shape == (N, C, H, W)
    err = float(np.max(np.abs(np.asarray(out) - np.asarray(ref))))
    # bf16 MXU operands (f32 accumulation) -> relaxed tolerance vs the f32 reference.
    if not np.allclose(np.asarray(out), np.asarray(ref), rtol=5e-2, atol=5e-2):
        raise AssertionError(f"Pallas kernel mismatch vs reference, max abs err = {err}")
    print("KERNEL_OK")
</pallas_src>

<mosaic_0001>
module attributes {stable_mosaic.version = 11 : i64} {
  func.func @kernel(%arg0: i32, %arg1: memref<1x256x128xf32, #tpu.memory_space<vmem>>, %arg2: memref<384x128xbf16, #tpu.memory_space<vmem>>, %arg3: memref<1x128xf32, #tpu.memory_space<vmem>>, %arg4: memref<384x128xbf16, #tpu.memory_space<vmem>>, %arg5: memref<1x128xf32, #tpu.memory_space<vmem>>, %arg6: memref<384x128xbf16, #tpu.memory_space<vmem>>, %arg7: memref<1x128xf32, #tpu.memory_space<vmem>>, %arg8: memref<384x128xbf16, #tpu.memory_space<vmem>>, %arg9: memref<1x128xf32, #tpu.memory_space<vmem>>, %arg10: memref<1x256x128xf32, #tpu.memory_space<vmem>>) attributes {dimension_semantics = [#tpu.dimension_semantics<parallel>], iteration_bounds = array<i64: 2>, scalar_prefetch = 0 : i64, scratch_operands = 0 : i64, tpu.core_type = #tpu.core_type<tc>, window_params = [{transform_indices = @transform_0, window_bounds = array<i64: 1, 256, 128>}, {pipeline_mode = #tpu.pipeline_mode<synchronous>, transform_indices = @transform_1, window_bounds = array<i64: 384, 128>}, {pipeline_mode = #tpu.pipeline_mode<synchronous>, transform_indices = @transform_2, window_bounds = array<i64: 1, 128>}, {pipeline_mode = #tpu.pipeline_mode<synchronous>, transform_indices = @transform_3, window_bounds = array<i64: 384, 128>}, {pipeline_mode = #tpu.pipeline_mode<synchronous>, transform_indices = @transform_4, window_bounds = array<i64: 1, 128>}, {pipeline_mode = #tpu.pipeline_mode<synchronous>, transform_indices = @transform_5, window_bounds = array<i64: 384, 128>}, {pipeline_mode = #tpu.pipeline_mode<synchronous>, transform_indices = @transform_6, window_bounds = array<i64: 1, 128>}, {pipeline_mode = #tpu.pipeline_mode<synchronous>, transform_indices = @transform_7, window_bounds = array<i64: 384, 128>}, {pipeline_mode = #tpu.pipeline_mode<synchronous>, transform_indices = @transform_8, window_bounds = array<i64: 1, 128>}, {transform_indices = @transform_9, window_bounds = array<i64: 1, 256, 128>}]} {
    %c0 = arith.constant 0 : index
    %c0_0 = arith.constant 0 : index
    %c0_1 = arith.constant 0 : index
    %0 = vector.load %arg1[%c0, %c0_0, %c0_1] : memref<1x256x128xf32, #tpu.memory_space<vmem>>, vector<1x256x128xf32>
    %1 = vector.shape_cast %0 : vector<1x256x128xf32> to vector<256x128xf32>
    %2 = tpu.iota {dimensions = array<i32: 0>} : vector<256x1xi32>
    %c15_i32 = arith.constant 15 : i32
    %3 = vector.broadcast %c15_i32 : i32 to vector<256x1xi32>
    %4 = arith.andi %2, %3 : vector<256x1xi32>
    %c16_i32 = arith.constant 16 : i32
    %5 = tpu.dynamic_rotate %1 by %c16_i32 dim 0 : vector<256x128xf32>, i32 -> vector<256x128xf32>
    %c-16_i32 = arith.constant -16 : i32
    %6 = vector.broadcast %c-16_i32 : i32 to vector<256x1xi32>
    %7 = arith.addi %2, %6 : vector<256x1xi32>
    %c0_i32 = arith.constant 0 : i32
    %8 = vector.broadcast %c0_i32 : i32 to vector<256x1xi32>
    %9 = arith.cmpi sge, %7, %8 : vector<256x1xi32>
    %c-16_i32_2 = arith.constant -16 : i32
    %10 = vector.broadcast %c-16_i32_2 : i32 to vector<256x1xi32>
    %11 = arith.addi %2, %10 : vector<256x1xi32>
    %c256_i32 = arith.constant 256 : i32
    %12 = vector.broadcast %c256_i32 : i32 to vector<256x1xi32>
    %13 = arith.cmpi slt, %11, %12 : vector<256x1xi32>
    %14 = arith.andi %9, %13 : vector<256x1xi1>
    %cst = arith.constant 0.000000e+00 : f32
    %15 = vector.shape_cast %14 : vector<256x1xi1> to vector<256x1xi1>
    %16 = vector.broadcast %15 : vector<256x1xi1> to vector<256x128xi1>
    %17 = vector.broadcast %cst : f32 to vector<256x128xf32>
    %18 = arith.select %16, %5, %17 : vector<256x128xi1>, vector<256x128xf32>
    %c240_i32 = arith.constant 240 : i32
    %19 = tpu.dynamic_rotate %1 by %c240_i32 dim 0 : vector<256x128xf32>, i32 -> vector<256x128xf32>
    %c16_i32_3 = arith.constant 16 : i32
    %20 = vector.broadcast %c16_i32_3 : i32 to vector<256x1xi32>
    %21 = arith.addi %2, %20 : vector<256x1xi32>
    %c0_i32_4 = arith.constant 0 : i32
    %22 = vector.broadcast %c0_i32_4 : i32 to vector<256x1xi32>
    %23 = arith.cmpi sge, %21, %22 : vector<256x1xi32>
    %c16_i32_5 = arith.constant 16 : i32
    %24 = vector.broadcast %c16_i32_5 : i32 to vector<256x1xi32>
    %25 = arith.addi %2, %24 : vector<256x1xi32>
    %c256_i32_6 = arith.constant 256 : i32
    %26 = vector.broadcast %c256_i32_6 : i32 to vector<256x1xi32>
    %27 = arith.cmpi slt, %25, %26 : vector<256x1xi32>
    %28 = arith.andi %23, %27 : vector<256x1xi1>
    %cst_7 = arith.constant 0.000000e+00 : f32
    %29 = vector.shape_cast %28 : vector<256x1xi1> to vector<256x1xi1>
    %30 = vector.broadcast %29 : vector<256x1xi1> to vector<256x128xi1>
    %31 = vector.broadcast %cst_7 : f32 to vector<256x128xf32>
    %32 = arith.select %30, %19, %31 : vector<256x128xi1>, vector<256x128xf32>
    %33 = tpu.concatenate %18, %1, %32 in 1 : vector<256x128xf32>, vector<256x128xf32>, vector<256x128xf32> -> vector<256x384xf32>
    %34 = arith.truncf %33 : vector<256x384xf32> to vector<256x384xbf16>
    %c0_8 = arith.constant 0 : index
    %c0_9 = arith.constant 0 : index
    %35 = vector.load %arg2[%c0_8, %c0_9] : memref<384x128xbf16, #tpu.memory_space<vmem>>, vector<384x128xbf16>
    %cst_10 = arith.constant dense<0.000000e+00> : vector<256x128xf32>
    %36 = tpu.matmul %34, %35, %cst_10 {dimension_numbers = #tpu.dot_dimension_numbers<[1], [0], [0], [1], [0, 0, 1, 1], [], []>} : vector<256x384xbf16>, vector<384x128xbf16>, vector<256x128xf32> -> vector<256x128xf32>
    %c0_11 = arith.constant 0 : index
    %c0_12 = arith.constant 0 : index
    %37 = vector.load %arg3[%c0_11, %c0_12] : memref<1x128xf32, #tpu.memory_space<vmem>>, vector<1x128xf32>
    %38 = vector.broadcast %37 : vector<1x128xf32> to vector<256x128xf32>
    %39 = arith.addf %36, %38 : vector<256x128xf32>
    %cst_13 = arith.constant 0.000000e+00 : f32
    %40 = vector.broadcast %cst_13 : f32 to vector<256x128xf32>
    %41 = arith.maximumf %39, %40 : vector<256x128xf32>
    %c1_i32 = arith.constant 1 : i32
    %42 = tpu.dynamic_rotate %41 by %c1_i32 dim 0 : vector<256x128xf32>, i32 -> vector<256x128xf32>
    %c-1_i32 = arith.constant -1 : i32
    %43 = vector.broadcast %c-1_i32 : i32 to vector<256x1xi32>
    %44 = arith.addi %4, %43 : vector<256x1xi32>
    %c0_i32_14 = arith.constant 0 : i32
    %45 = vector.broadcast %c0_i32_14 : i32 to vector<256x1xi32>
    %46 = arith.cmpi sge, %44, %45 : vector<256x1xi32>
    %c-1_i32_15 = arith.constant -1 : i32
    %47 = vector.broadcast %c-1_i32_15 : i32 to vector<256x1xi32>
    %48 = arith.addi %4, %47 : vector<256x1xi32>
    %c16_i32_16 = arith.constant 16 : i32
    %49 = vector.broadcast %c16_i32_16 : i32 to vector<256x1xi32>
    %50 = arith.cmpi slt, %48, %49 : vector<256x1xi32>
    %51 = arith.andi %46, %50 : vector<256x1xi1>
    %cst_17 = arith.constant 0.000000e+00 : f32
    %52 = vector.shape_cast %51 : vector<256x1xi1> to vector<256x1xi1>
    %53 = vector.broadcast %52 : vector<256x1xi1> to vector<256x128xi1>
    %54 = vector.broadcast %cst_17 : f32 to vector<256x128xf32>
    %55 = arith.select %53, %42, %54 : vector<256x128xi1>, vector<256x128xf32>
    %c255_i32 = arith.constant 255 : i32
    %56 = tpu.dynamic_rotate %41 by %c255_i32 dim 0 : vector<256x128xf32>, i32 -> vector<256x128xf32>
    %c1_i32_18 = arith.constant 1 : i32
    %57 = vector.broadcast %c1_i32_18 : i32 to vector<256x1xi32>
    %58 = arith.addi %4, %57 : vector<256x1xi32>
    %c0_i32_19 = arith.constant 0 : i32
    %59 = vector.broadcast %c0_i32_19 : i32 to vector<256x1xi32>
    %60 = arith.cmpi sge, %58, %59 : vector<256x1xi32>
    %c1_i32_20 = arith.constant 1 : i32
    %61 = vector.broadcast %c1_i32_20 : i32 to vector<256x1xi32>
    %62 = arith.addi %4, %61 : vector<256x1xi32>
    %c16_i32_21 = arith.constant 16 : i32
    %63 = vector.broadcast %c16_i32_21 : i32 to vector<256x1xi32>
    %64 = arith.cmpi slt, %62, %63 : vector<256x1xi32>
    %65 = arith.andi %60, %64 : vector<256x1xi1>
    %cst_22 = arith.constant 0.000000e+00 : f32
    %66 = vector.shape_cast %65 : vector<256x1xi1> to vector<256x1xi1>
    %67 = vector.broadcast %66 : vector<256x1xi1> to vector<256x128xi1>
    %68 = vector.broadcast %cst_22 : f32 to vector<256x128xf32>
    %69 = arith.select %67, %56, %68 : vector<256x128xi1>, vector<256x128xf32>
    %70 = tpu.concatenate %55, %41, %69 in 1 : vector<256x128xf32>, vector<256x128xf32>, vector<256x128xf32> -> vector<256x384xf32>
    %71 = arith.truncf %70 : vector<256x384xf32> to vector<256x384xbf16>
    %c0_23 = arith.constant 0 : index
    %c0_24 = arith.constant 0 : index
    %72 = vector.load %arg4[%c0_23, %c0_24] : memref<384x128xbf16, #tpu.memory_space<vmem>>, vector<384x128xbf16>
    %cst_25 = arith.constant dense<0.000000e+00> : vector<256x128xf32>
    %73 = tpu.matmul %71, %72, %cst_25 {dimension_numbers = #tpu.dot_dimension_numbers<[1], [0], [0], [1], [0, 0, 1, 1], [], []>} : vector<256x384xbf16>, vector<384x128xbf16>, vector<256x128xf32> -> vector<256x128xf32>
    %c0_26 = arith.constant 0 : index
    %c0_27 = arith.constant 0 : index
    %74 = vector.load %arg5[%c0_26, %c0_27] : memref<1x128xf32, #tpu.memory_space<vmem>>, vector<1x128xf32>
    %75 = vector.broadcast %74 : vector<1x128xf32> to vector<256x128xf32>
    %76 = arith.addf %73, %75 : vector<256x128xf32>
    %cst_28 = arith.constant 0.000000e+00 : f32
    %77 = vector.broadcast %cst_28 : f32 to vector<256x128xf32>
    %78 = arith.maximumf %76, %77 : vector<256x128xf32>
    %c32_i32 = arith.constant 32 : i32
    %79 = tpu.dynamic_rotate %78 by %c32_i32 dim 0 : vector<256x128xf32>, i32 -> vector<256x128xf32>
    %c-32_i32 = arith.constant -32 : i32
    %80 = vector.broadcast %c-32_i32 : i32 to vector<256x1xi32>
    %81 = arith.addi %2, %80 : vector<256x1xi32>
    %c0_i32_29 = arith.constant 0 : i32
    %82 = vector.broadcast %c0_i32_29 : i32 to vector<256x1xi32>
    %83 = arith.cmpi sge, %81, %82 : vector<256x1xi32>
    %c-32_i32_30 = arith.constant -32 : i32
    %84 = vector.broadcast %c-32_i32_30 : i32 to vector<256x1xi32>
    %85 = arith.addi %2, %84 : vector<256x1xi32>
    %c256_i32_31 = arith.constant 256 : i32
    %86 = vector.broadcast %c256_i32_31 : i32 to vector<256x1xi32>
    %87 = arith.cmpi slt, %85, %86 : vector<256x1xi32>
    %88 = arith.andi %83, %87 : vector<256x1xi1>
    %cst_32 = arith.constant 0.000000e+00 : f32
    %89 = vector.shape_cast %88 : vector<256x1xi1> to vector<256x1xi1>
    %90 = vector.broadcast %89 : vector<256x1xi1> to vector<256x128xi1>
    %91 = vector.broadcast %cst_32 : f32 to vector<256x128xf32>
    %92 = arith.select %90, %79, %91 : vector<256x128xi1>, vector<256x128xf32>
    %c224_i32 = arith.constant 224 : i32
    %93 = tpu.dynamic_rotate %78 by %c224_i32 dim 0 : vector<256x128xf32>, i32 -> vector<256x128xf32>
    %c32_i32_33 = arith.constant 32 : i32
    %94 = vector.broadcast %c32_i32_33 : i32 to vector<256x1xi32>
    %95 = arith.addi %2, %94 : vector<256x1xi32>
    %c0_i32_34 = arith.constant 0 : i32
    %96 = vector.broadcast %c0_i32_34 : i32 to vector<256x1xi32>
    %97 = arith.cmpi sge, %95, %96 : vector<256x1xi32>
    %c32_i32_35 = arith.constant 32 : i32
    %98 = vector.broadcast %c32_i32_35 : i32 to vector<256x1xi32>
    %99 = arith.addi %2, %98 : vector<256x1xi32>
    %c256_i32_36 = arith.constant 256 : i32
    %100 = vector.broadcast %c256_i32_36 : i32 to vector<256x1xi32>
    %101 = arith.cmpi slt, %99, %100 : vector<256x1xi32>
    %102 = arith.andi %97, %101 : vector<256x1xi1>
    %cst_37 = arith.constant 0.000000e+00 : f32
    %103 = vector.shape_cast %102 : vector<256x1xi1> to vector<256x1xi1>
    %104 = vector.broadcast %103 : vector<256x1xi1> to vector<256x128xi1>
    %105 = vector.broadcast %cst_37 : f32 to vector<256x128xf32>
    %106 = arith.select %104, %93, %105 : vector<256x128xi1>, vector<256x128xf32>
    %107 = tpu.concatenate %92, %78, %106 in 1 : vector<256x128xf32>, vector<256x128xf32>, vector<256x128xf32> -> vector<256x384xf32>
    %108 = arith.truncf %107 : vector<256x384xf32> to vector<256x384xbf16>
    %c0_38 = arith.constant 0 : index
    %c0_39 = arith.constant 0 : index
    %109 = vector.load %arg6[%c0_38, %c0_39] : memref<384x128xbf16, #tpu.memory_space<vmem>>, vector<384x128xbf16>
    %cst_40 = arith.constant dense<0.000000e+00> : vector<256x128xf32>
    %110 = tpu.matmul %108, %109, %cst_40 {dimension_numbers = #tpu.dot_dimension_numbers<[1], [0], [0], [1], [0, 0, 1, 1], [], []>} : vector<256x384xbf16>, vector<384x128xbf16>, vector<256x128xf32> -> vector<256x128xf32>
    %c0_41 = arith.constant 0 : index
    %c0_42 = arith.constant 0 : index
    %111 = vector.load %arg7[%c0_41, %c0_42] : memref<1x128xf32, #tpu.memory_space<vmem>>, vector<1x128xf32>
    %112 = vector.broadcast %111 : vector<1x128xf32> to vector<256x128xf32>
    %113 = arith.addf %110, %112 : vector<256x128xf32>
    %cst_43 = arith.constant 0.000000e+00 : f32
    %114 = vector.broadcast %cst_43 : f32 to vector<256x128xf32>
    %115 = arith.maximumf %113, %114 : vector<256x128xf32>
    %c2_i32 = arith.constant 2 : i32
    %116 = tpu.dynamic_rotate %115 by %c2_i32 dim 0 : vector<256x128xf32>, i32 -> vector<256x128xf32>
    %c-2_i32 = arith.constant -2 : i32
    %117 = vector.broadcast %c-2_i32 : i32 to vector<256x1xi32>
    %118 = arith.addi %4, %117 : vector<256x1xi32>
    %c0_i32_44 = arith.constant 0 : i32
    %119 = vector.broadcast %c0_i32_44 : i32 to vector<256x1xi32>
    %120 = arith.cmpi sge, %118, %119 : vector<256x1xi32>
    %c-2_i32_45 = arith.constant -2 : i32
    %121 = vector.broadcast %c-2_i32_45 : i32 to vector<256x1xi32>
    %122 = arith.addi %4, %121 : vector<256x1xi32>
    %c16_i32_46 = arith.constant 16 : i32
    %123 = vector.broadcast %c16_i32_46 : i32 to vector<256x1xi32>
    %124 = arith.cmpi slt, %122, %123 : vector<256x1xi32>
    %125 = arith.andi %120, %124 : vector<256x1xi1>
    %cst_47 = arith.constant 0.000000e+00 : f32
    %126 = vector.shape_cast %125 : vector<256x1xi1> to vector<256x1xi1>
    %127 = vector.broadcast %126 : vector<256x1xi1> to vector<256x128xi1>
    %128 = vector.broadcast %cst_47 : f32 to vector<256x128xf32>
    %129 = arith.select %127, %116, %128 : vector<256x128xi1>, vector<256x128xf32>
    %c254_i32 = arith.constant 254 : i32
    %130 = tpu.dynamic_rotate %115 by %c254_i32 dim 0 : vector<256x128xf32>, i32 -> vector<256x128xf32>
    %c2_i32_48 = arith.constant 2 : i32
    %131 = vector.broadcast %c2_i32_48 : i32 to vector<256x1xi32>
    %132 = arith.addi %4, %131 : vector<256x1xi32>
    %c0_i32_49 = arith.constant 0 : i32
    %133 = vector.broadcast %c0_i32_49 : i32 to vector<256x1xi32>
    %134 = arith.cmpi sge, %132, %133 : vector<256x1xi32>
    %c2_i32_50 = arith.constant 2 : i32
    %135 = vector.broadcast %c2_i32_50 : i32 to vector<256x1xi32>
    %136 = arith.addi %4, %135 : vector<256x1xi32>
    %c16_i32_51 = arith.constant 16 : i32
    %137 = vector.broadcast %c16_i32_51 : i32 to vector<256x1xi32>
    %138 = arith.cmpi slt, %136, %137 : vector<256x1xi32>
    %139 = arith.andi %134, %138 : vector<256x1xi1>
    %cst_52 = arith.constant 0.000000e+00 : f32
    %140 = vector.shape_cast %139 : vector<256x1xi1> to vector<256x1xi1>
    %141 = vector.broadcast %140 : vector<256x1xi1> to vector<256x128xi1>
    %142 = vector.broadcast %cst_52 : f32 to vector<256x128xf32>
    %143 = arith.select %141, %130, %142 : vector<256x128xi1>, vector<256x128xf32>
    %144 = tpu.concatenate %129, %115, %143 in 1 : vector<256x128xf32>, vector<256x128xf32>, vector<256x128xf32> -> vector<256x384xf32>
    %145 = arith.truncf %144 : vector<256x384xf32> to vector<256x384xbf16>
    %c0_53 = arith.constant 0 : index
    %c0_54 = arith.constant 0 : index
    %146 = vector.load %arg8[%c0_53, %c0_54] : memref<384x128xbf16, #tpu.memory_space<vmem>>, vector<384x128xbf16>
    %cst_55 = arith.constant dense<0.000000e+00> : vector<256x128xf32>
    %147 = tpu.matmul %145, %146, %cst_55 {dimension_numbers = #tpu.dot_dimension_numbers<[1], [0], [0], [1], [0, 0, 1, 1], [], []>} : vector<256x384xbf16>, vector<384x128xbf16>, vector<256x128xf32> -> vector<256x128xf32>
    %c0_56 = arith.constant 0 : index
    %c0_57 = arith.constant 0 : index
    %148 = vector.load %arg9[%c0_56, %c0_57] : memref<1x128xf32, #tpu.memory_space<vmem>>, vector<1x128xf32>
    %149 = vector.broadcast %148 : vector<1x128xf32> to vector<256x128xf32>
    %150 = arith.addf %147, %149 : vector<256x128xf32>
    %151 = arith.addf %150, %1 : vector<256x128xf32>
    %cst_58 = arith.constant 0.000000e+00 : f32
    %152 = vector.broadcast %cst_58 : f32 to vector<256x128xf32>
    %153 = arith.maximumf %151, %152 : vector<256x128xf32>
    %c0_59 = arith.constant 0 : index
    %c0_60 = arith.constant 0 : index
    %c0_61 = arith.constant 0 : index
    %154 = vector.load %arg10[%c0_59, %c0_60, %c0_61] : memref<1x256x128xf32, #tpu.memory_space<vmem>>, vector<1x256x128xf32>
    %155 = vector.shape_cast %154 : vector<1x256x128xf32> to vector<256x128xf32>
    %156 = vector.shape_cast %153 : vector<256x128xf32> to vector<1x256x128xf32>
    tpu.vector_store %arg10[%c0_59, %c0_60, %c0_61], %156 {strides = array<i32>} : memref<1x256x128xf32, #tpu.memory_space<vmem>>, vector<1x256x128xf32>,
    return
  }
  func.func @transform_0(%arg0: i32) -> (i32, i32, i32) {
    %c0_i32 = arith.constant 0 : i32
    %c0_i32_0 = arith.constant 0 : i32
    %c0_i32_1 = arith.constant 0 : i32
    return %arg0, %c0_i32, %c0_i32_0 : i32, i32, i32
  }
  func.func @transform_1(%arg0: i32) -> (i32, i32) {
    %c0_i32 = arith.constant 0 : i32
    %c0_i32_0 = arith.constant 0 : i32
    %c0_i32_1 = arith.constant 0 : i32
    return %c0_i32, %c0_i32_0 : i32, i32
  }
  func.func @transform_2(%arg0: i32) -> (i32, i32) {
    %c0_i32 = arith.constant 0 : i32
    %c0_i32_0 = arith.constant 0 : i32
    %c0_i32_1 = arith.constant 0 : i32
    return %c0_i32, %c0_i32_0 : i32, i32
  }
  func.func @transform_3(%arg0: i32) -> (i32, i32) {
    %c0_i32 = arith.constant 0 : i32
    %c0_i32_0 = arith.constant 0 : i32
    %c0_i32_1 = arith.constant 0 : i32
    return %c0_i32, %c0_i32_0 : i32, i32
  }
  func.func @transform_4(%arg0: i32) -> (i32, i32) {
    %c0_i32 = arith.constant 0 : i32
    %c0_i32_0 = arith.constant 0 : i32
    %c0_i32_1 = arith.constant 0 : i32
    return %c0_i32, %c0_i32_0 : i32, i32
  }
  func.func @transform_5(%arg0: i32) -> (i32, i32) {
    %c0_i32 = arith.constant 0 : i32
    %c0_i32_0 = arith.constant 0 : i32
    %c0_i32_1 = arith.constant 0 : i32
    return %c0_i32, %c0_i32_0 : i32, i32
  }
  func.func @transform_6(%arg0: i32) -> (i32, i32) {
    %c0_i32 = arith.constant 0 : i32
    %c0_i32_0 = arith.constant 0 : i32
    %c0_i32_1 = arith.constant 0 : i32
    return %c0_i32, %c0_i32_0 : i32, i32
  }
  func.func @transform_7(%arg0: i32) -> (i32, i32) {
    %c0_i32 = arith.constant 0 : i32
    %c0_i32_0 = arith.constant 0 : i32
    %c0_i32_1 = arith.constant 0 : i32
    return %c0_i32, %c0_i32_0 : i32, i32
  }
  func.func @transform_8(%arg0: i32) -> (i32, i32) {
    %c0_i32 = arith.constant 0 : i32
    %c0_i32_0 = arith.constant 0 : i32
    %c0_i32_1 = arith.constant 0 : i32
    return %c0_i32, %c0_i32_0 : i32, i32
  }
  func.func @transform_9(%arg0: i32) -> (i32, i32, i32) {
    %c0_i32 = arith.constant 0 : i32
    %c0_i32_0 = arith.constant 0 : i32
    %c0_i32_1 = arith.constant 0 : i32
    return %arg0, %c0_i32, %c0_i32_0 : i32, i32, i32
  }
}

</mosaic_0001>

<llo_original>
// kernel: tpu_custom_call.1
$region0: #{tpu_custom_call.1}
  #allocation0 [shape = 'u32[]', space=smem, size = 0x4, offset = 0x4, fixed_abs, tag = 'smem constant byte address 0x4 - core index']
  #allocation1 [shape = 'u32[72,128]{1,0:T(1,128)}', space=vmem, size = 0x9000, scoped, tag = 'internal scratch']
  %s0 = inlined_call_operand.hbm [shape: f32[2,256,128], index: 0, kind: input, shape index: {}]
  %s1 = inlined_call_operand.hbm [shape: bf16[384,128], index: 1, kind: input, shape index: {}]
  %s2 = inlined_call_operand.vmem [shape: f32[1,128], index: 2, kind: input, shape index: {}]
  %s3 = inlined_call_operand.hbm [shape: bf16[384,128], index: 3, kind: input, shape index: {}]
  %s4 = inlined_call_operand.vmem [shape: f32[1,128], index: 4, kind: input, shape index: {}]
  %s5 = inlined_call_operand.hbm [shape: bf16[384,128], index: 5, kind: input, shape index: {}]
  %s6 = inlined_call_operand.vmem [shape: f32[1,128], index: 6, kind: input, shape index: {}]
  %s7 = inlined_call_operand.hbm [shape: bf16[384,128], index: 7, kind: input, shape index: {}]
  %s8 = inlined_call_operand.vmem [shape: f32[1,128], index: 8, kind: input, shape index: {}]
  %s9 = inlined_call_operand.hbm [shape: f32[2,256,128], index: 9, kind: output, shape index: {}]
  %s10 = sld [smem:[#allocation0]]
  $region89: #{tpu_custom_call.1} parent=0
    _
  %s12 = ssub.s32 1, %s10
  %s13 = scalar_select 0, %s12, %s10
  $region1: #{tpu_custom_call.1} parent=0
    #allocation2 [shape = 'u8[262144]{0}', space=vmem, size = 0x40000, scoped, tag = 'input window, operand 0']
    #allocation3 [shape = 's32[2]{0}', space=sflag, size = 0x8, scoped, tag = 'scoped memory for tpu_custom_call.1']
    #allocation4 [shape = 's32[2]{0}', space=sflag, size = 0x8, scoped, tag = 'scoped memory for tpu_custom_call.1']
    #allocation5 [shape = 'u8[98304]{0}', space=vmem, size = 0x18000, scoped, tag = 'input window, operand 1, single buffered']
    #allocation6 [shape = 's32[1]{0}', space=sflag, size = 0x4, scoped, tag = 'scoped memory for tpu_custom_call.1']
    #allocation7 [shape = 'u8[98304]{0}', space=vmem, size = 0x18000, scoped, tag = 'input window, operand 3, single buffered']
    #allocation8 [shape = 'u8[98304]{0}', space=vmem, size = 0x18000, scoped, tag = 'input window, operand 5, single buffered']
    #allocation9 [shape = 's32[1]{0}', space=sflag, size = 0x4, scoped, tag = 'scoped memory for tpu_custom_call.1']
    #allocation10 [shape = 'u8[98304]{0}', space=vmem, size = 0x18000, scoped, tag = 'input window, operand 7, single buffered']
    #allocation11 [shape = 'u8[262144]{0}', space=vmem, size = 0x40000, scoped, tag = 'output window, operand 0']
    %14 = vsyncpa [#allocation3], 0
    %s15 = scalar_lea.sflag [#allocation3], 1
    %16 = vsyncpa %s15, 0
    %17 = vsyncpa [#allocation6], 0
    %18 = vsyncpa [#allocation9], 0
    %19 = vsyncpa [#allocation4], 0
    %s20 = scalar_lea.sflag [#allocation4], 1
    %21 = vsyncpa %s20, 0
    loop: start=0, step=1, limit=4
    $region2: #{tpu_custom_call.1} parent=1 // loop_pre_header
      _
    $region3: #{tpu_custom_call.1} parent=1 // loop_header
      %s23 = sphi 0, %s27
      %p24 = scmp.ge.s32.totalorder %s23, 4
      %s33 = sphi 0, %s35
      %s36 = sphi 0, %s33
      %s37 = sphi 0, %s36
      %s53 = sphi 0, %s37
      %s57 = sphi 0, %s57
      %s59 = sphi 0, %s57
      %s60 = sphi 0, %s59
      %s74 = sphi 0, %s60
      %s78 = sphi 0, %s78
      %s80 = sphi 0, %s78
      %s81 = sphi 0, %s80
      %s95 = sphi 0, %s81
      %s99 = sphi 0, %s99
      %s101 = sphi 0, %s99
      %s102 = sphi 0, %s101
      %s116 = sphi 0, %s102
      %s120 = sphi 0, %s120
      %s122 = sphi 0, %s120
      %s123 = sphi 0, %s122
      %s137 = sphi 0, %s123
      %s141 = sphi 0, %s141
      %s143 = sphi 0, %s141
      %s144 = sphi 0, %s143
      %s158 = sphi 0, %s144
      %s162 = sphi 0, %s162
      %s164 = sphi 0, %s162
      %s165 = sphi 0, %s164
      %s179 = sphi 0, %s165
      %s183 = sphi 0, %s183
      %s185 = sphi 0, %s183
      %s186 = sphi 0, %s185
      %s200 = sphi 0, %s186
      %s204 = sphi 0, %s204
      %s206 = sphi 0, %s204
      %s207 = sphi 0, %s206
      %s221 = sphi 0, %s207
      %s227 = sphi 0, %s229
      %s230 = sphi 0, %s227
      %s231 = sphi 0, %s230
      %s247 = sphi 0, %s231
    $region4: #{tpu_custom_call.1} parent=1 // loop_header_branch
      %26 = sbr.rel (%p24) target = $region8
    $region5: #{tpu_custom_call.1} parent=1 // loop_body
      %s28 = ssub.s32 %s23, 1
      %s29 = ssub.s32 %s23, 2
      %s30 = sadd.s32 %s23, 1
      %s31 = ssub.s32 %s23, %s30
      %p32 = scmp.eq.s32.totalorder %s31, 0
      %s34 = sadd.s32 %s33, 1
      %s35 = scalar_select %p32, %s33, %s34
      %p38 = pneg %p32
      %p39 = scmp.eq.s32.totalorder %s23, 1
      %p40 = por %p38, %p39
      %p41 = scmp.ne.s32.totalorder %s33, %s36
      %p42 = scmp.eq.s32.totalorder %s23, 0
      %p43 = por %p41, %p42
      %p44 = scmp.ne.s32.totalorder %s33, %s36
      %p45 = scmp.eq.s32.totalorder %s28, 1
      %p46 = por %p44, %p45
      %p47 = scmp.ne.s32.totalorder %s36, %s37
      %p48 = scmp.eq.s32.totalorder %s28, 0
      %p49 = por %p47, %p48
      %p50 = scmp.ne.s32.totalorder %s36, %s37
      %p51 = scmp.eq.s32.totalorder %s29, 1
      %p52 = por %p50, %p51
      %p54 = scmp.ne.s32.totalorder %s37, %s53
      %p55 = scmp.eq.s32.totalorder %s29, 0
      %p56 = por %p54, %p55
      %s58 = sadd.s32 %s57, 1
      %p61 = scmp.eq.s32.totalorder %s23, 1
      %p62 = scmp.ne.s32.totalorder %s57, %s59
      %p63 = scmp.eq.s32.totalorder %s23, 0
      %p64 = por %p62, %p63
      %p65 = scmp.ne.s32.totalorder %s57, %s59
      %p66 = scmp.eq.s32.totalorder %s28, 1
      %p67 = por %p65, %p66
      %p68 = scmp.ne.s32.totalorder %s59, %s60
      %p69 = scmp.eq.s32.totalorder %s28, 0
      %p70 = por %p68, %p69
      %p71 = scmp.ne.s32.totalorder %s59, %s60
      %p72 = scmp.eq.s32.totalorder %s29, 1
      %p73 = por %p71, %p72
      %p75 = scmp.ne.s32.totalorder %s60, %s74
      %p76 = scmp.eq.s32.totalorder %s29, 0
      %p77 = por %p75, %p76
      %s79 = sadd.s32 %s78, 1
      %p82 = scmp.eq.s32.totalorder %s23, 1
      %p83 = scmp.ne.s32.totalorder %s78, %s80
      %p84 = scmp.eq.s32.totalorder %s23, 0
      %p85 = por %p83, %p84
      %p86 = scmp.ne.s32.totalorder %s78, %s80
      %p87 = scmp.eq.s32.totalorder %s28, 1
      %p88 = por %p86, %p87
      %p89 = scmp.ne.s32.totalorder %s80, %s81
      %p90 = scmp.eq.s32.totalorder %s28, 0
      %p91 = por %p89, %p90
      %p92 = scmp.ne.s32.totalorder %s80, %s81
      %p93 = scmp.eq.s32.totalorder %s29, 1
      %p94 = por %p92, %p93
      %p96 = scmp.ne.s32.totalorder %s81, %s95
      %p97 = scmp.eq.s32.totalorder %s29, 0
      %p98 = por %p96, %p97
      %s100 = sadd.s32 %s99, 1
      %p103 = scmp.eq.s32.totalorder %s23, 1
      %p104 = scmp.ne.s32.totalorder %s99, %s101
      %p105 = scmp.eq.s32.totalorder %s23, 0
      %p106 = por %p104, %p105
      %p107 = scmp.ne.s32.totalorder %s99, %s101
      %p108 = scmp.eq.s32.totalorder %s28, 1
      %p109 = por %p107, %p108
      %p110 = scmp.ne.s32.totalorder %s101, %s102
      %p111 = scmp.eq.s32.totalorder %s28, 0
      %p112 = por %p110, %p111
      %p113 = scmp.ne.s32.totalorder %s101, %s102
      %p114 = scmp.eq.s32.totalorder %s29, 1
      %p115 = por %p113, %p114
      %p117 = scmp.ne.s32.totalorder %s102, %s116
      %p118 = scmp.eq.s32.totalorder %s29, 0
      %p119 = por %p117, %p118
      %s121 = sadd.s32 %s120, 1
      %p124 = scmp.eq.s32.totalorder %s23, 1
      %p125 = scmp.ne.s32.totalorder %s120, %s122
      %p126 = scmp.eq.s32.totalorder %s23, 0
      %p127 = por %p125, %p126
      %p128 = scmp.ne.s32.totalorder %s120, %s122
      %p129 = scmp.eq.s32.totalorder %s28, 1
      %p130 = por %p128, %p129
      %p131 = scmp.ne.s32.totalorder %s122, %s123
      %p132 = scmp.eq.s32.totalorder %s28, 0
      %p133 = por %p131, %p132
      %p134 = scmp.ne.s32.totalorder %s122, %s123
      %p135 = scmp.eq.s32.totalorder %s29, 1
      %p136 = por %p134, %p135
      %p138 = scmp.ne.s32.totalorder %s123, %s137
      %p139 = scmp.eq.s32.totalorder %s29, 0
      %p140 = por %p138, %p139
      %s142 = sadd.s32 %s141, 1
      %p145 = scmp.eq.s32.totalorder %s23, 1
      %p146 = scmp.ne.s32.totalorder %s141, %s143
      %p147 = scmp.eq.s32.totalorder %s23, 0
      %p148 = por %p146, %p147
      %p149 = scmp.ne.s32.totalorder %s141, %s143
      %p150 = scmp.eq.s32.totalorder %s28, 1
      %p151 = por %p149, %p150
      %p152 = scmp.ne.s32.totalorder %s143, %s144
      %p153 = scmp.eq.s32.totalorder %s28, 0
      %p154 = por %p152, %p153
      %p155 = scmp.ne.s32.totalorder %s143, %s144
      %p156 = scmp.eq.s32.totalorder %s29, 1
      %p157 = por %p155, %p156
      %p159 = scmp.ne.s32.totalorder %s144, %s158
      %p160 = scmp.eq.s32.totalorder %s29, 0
      %p161 = por %p159, %p160
      %s163 = sadd.s32 %s162, 1
      %p166 = scmp.eq.s32.totalorder %s23, 1
      %p167 = scmp.ne.s32.totalorder %s162, %s164
      %p168 = scmp.eq.s32.totalorder %s23, 0
      %p169 = por %p167, %p168
      %p170 = scmp.ne.s32.totalorder %s162, %s164
      %p171 = scmp.eq.s32.totalorder %s28, 1
      %p172 = por %p170, %p171
      %p173 = scmp.ne.s32.totalorder %s164, %s165
      %p174 = scmp.eq.s32.totalorder %s28, 0
      %p175 = por %p173, %p174
      %p176 = scmp.ne.s32.totalorder %s164, %s165
      %p177 = scmp.eq.s32.totalorder %s29, 1
      %p178 = por %p176, %p177
      %p180 = scmp.ne.s32.totalorder %s165, %s179
      %p181 = scmp.eq.s32.totalorder %s29, 0
      %p182 = por %p180, %p181
      %s184 = sadd.s32 %s183, 1
      %p187 = scmp.eq.s32.totalorder %s23, 1
      %p188 = scmp.ne.s32.totalorder %s183, %s185
      %p189 = scmp.eq.s32.totalorder %s23, 0
      %p190 = por %p188, %p189
      %p191 = scmp.ne.s32.totalorder %s183, %s185
      %p192 = scmp.eq.s32.totalorder %s28, 1
      %p193 = por %p191, %p192
      %p194 = scmp.ne.s32.totalorder %s185, %s186
      %p195 = scmp.eq.s32.totalorder %s28, 0
      %p196 = por %p194, %p195
      %p197 = scmp.ne.s32.totalorder %s185, %s186
      %p198 = scmp.eq.s32.totalorder %s29, 1
      %p199 = por %p197, %p198
      %p201 = scmp.ne.s32.totalorder %s186, %s200
      %p202 = scmp.eq.s32.totalorder %s29, 0
      %p203 = por %p201, %p202
      %s205 = sadd.s32 %s204, 1
      %p208 = scmp.eq.s32.totalorder %s23, 1
      %p209 = scmp.ne.s32.totalorder %s204, %s206
      %p210 = scmp.eq.s32.totalorder %s23, 0
      %p211 = por %p209, %p210
      %p212 = scmp.ne.s32.totalorder %s204, %s206
      %p213 = scmp.eq.s32.totalorder %s28, 1
      %p214 = por %p212, %p213
      %p215 = scmp.ne.s32.totalorder %s206, %s207
      %p216 = scmp.eq.s32.totalorder %s28, 0
      %p217 = por %p215, %p216
      %p218 = scmp.ne.s32.totalorder %s206, %s207
      %p219 = scmp.eq.s32.totalorder %s29, 1
      %p220 = por %p218, %p219
      %p222 = scmp.ne.s32.totalorder %s207, %s221
      %p223 = scmp.eq.s32.totalorder %s29, 0
      %p224 = por %p222, %p223
      %s225 = ssub.s32 %s23, %s30
      %p226 = scmp.eq.s32.totalorder %s225, 0
      %s228 = sadd.s32 %s227, 1
      %s229 = scalar_select %p226, %s227, %s228
      %p232 = pneg %p226
      %p233 = scmp.eq.s32.totalorder %s23, 1
      %p234 = por %p232, %p233
      %p235 = scmp.ne.s32.totalorder %s227, %s230
      %p236 = scmp.eq.s32.totalorder %s23, 0
      %p237 = por %p235, %p236
      %p238 = scmp.ne.s32.totalorder %s227, %s230
      %p239 = scmp.eq.s32.totalorder %s28, 1
      %p240 = por %p238, %p239
      %p241 = scmp.ne.s32.totalorder %s230, %s231
      %p242 = scmp.eq.s32.totalorder %s28, 0
      %p243 = por %p241, %p242
      %p244 = scmp.ne.s32.totalorder %s230, %s231
      %p245 = scmp.eq.s32.totalorder %s29, 1
      %p246 = por %p244, %p245
      %p248 = scmp.ne.s32.totalorder %s231, %s247
      %p249 = scmp.eq.s32.totalorder %s29, 0
      %p250 = por %p248, %p249
      %p251 = scmp.le.s32.totalorder 1, %s23
      %p252 = scmp.lt.s32.totalorder %s23, 3
      %p253 = pnand %p251, %p252
      %p254 = pneg %p253
      // Predicated region
      $region9: #{tpu_custom_call.1} parent=5 // pred_check
        _
      $region10: #{tpu_custom_call.1} parent=5 // pred_check_branch
        %256 = sbr.rel (%p253) target = $region12
      $region11: #{tpu_custom_call.1} parent=5 // pred_region
        %s257 = ssub.s32 %s23, 1
        // Predicated region
        $region13: #{tpu_custom_call.1} parent=11 // pred_check
          %p258 = pneg %p70
        $region14: #{tpu_custom_call.1} parent=11 // pred_check_branch
          %260 = sbr.rel (%p258) target = $region16
        $region15: #{tpu_custom_call.1} parent=11 // pred_region
          %262 = vsyncadd [#allocation6], 0
          %s263 = sshll.u32 %s1, 4
          %s264 = int_to_ptr.hbm [resolvable:$true] %s263
          %s265 = sshll.u32 [#allocation5], 4
          %s266 = int_to_ptr.vmem [resolvable:$true] %s265
          %271 = dma.hbm_to_vmem [thread:$0]  %s264, 3072, %s266, [#allocation6], 64, 64, 4
        $region16: #{tpu_custom_call.1} parent=11 // pred_fallthru
          _
        // Predicated region
        $region17: #{tpu_custom_call.1} parent=11 // pred_check
          %p272 = pneg %p91
        $region18: #{tpu_custom_call.1} parent=11 // pred_check_branch
          %274 = sbr.rel (%p272) target = $region20
        $region19: #{tpu_custom_call.1} parent=11 // pred_region
          _
        $region20: #{tpu_custom_call.1} parent=11 // pred_fallthru
          _
        // Predicated region
        $region21: #{tpu_custom_call.1} parent=11 // pred_check
          %p275 = pneg %p112
        $region22: #{tpu_custom_call.1} parent=11 // pred_check_branch
          %277 = sbr.rel (%p275) target = $region24
        $region23: #{tpu_custom_call.1} parent=11 // pred_region
          %279 = vsyncadd [#allocation6], 0
          %s280 = sshll.u32 %s3, 4
          %s281 = int_to_ptr.hbm [resolvable:$true] %s280
          %s282 = sshll.u32 [#allocation7], 4
          %s283 = int_to_ptr.vmem [resolvable:$true] %s282
          %288 = dma.hbm_to_vmem [thread:$0]  %s281, 3072, %s283, [#allocation6], 64, 64, 4
        $region24: #{tpu_custom_call.1} parent=11 // pred_fallthru
          _
        // Predicated region
        $region25: #{tpu_custom_call.1} parent=11 // pred_check
          %p289 = pneg %p133
        $region26: #{tpu_custom_call.1} parent=11 // pred_check_branch
          %291 = sbr.rel (%p289) target = $region28
        $region27: #{tpu_custom_call.1} parent=11 // pred_region
          _
        $region28: #{tpu_custom_call.1} parent=11 // pred_fallthru
          _
        // Predicated region
        $region29: #{tpu_custom_call.1} parent=11 // pred_check
          %p292 = pneg %p154
        $region30: #{tpu_custom_call.1} parent=11 // pred_check_branch
          %294 = sbr.rel (%p292) target = $region32
        $region31: #{tpu_custom_call.1} parent=11 // pred_region
          %296 = vsyncadd [#allocation9], 0
          %s297 = sshll.u32 %s5, 4
          %s298 = int_to_ptr.hbm [resolvable:$true] %s297
          %s299 = sshll.u32 [#allocation8], 4
          %s300 = int_to_ptr.vmem [resolvable:$true] %s299
          %305 = dma.hbm_to_vmem [thread:$0]  %s298, 3072, %s300, [#allocation9], 64, 64, 4
        $region32: #{tpu_custom_call.1} parent=11 // pred_fallthru
          _
        // Predicated region
        $region33: #{tpu_custom_call.1} parent=11 // pred_check
          %p306 = pneg %p175
        $region34: #{tpu_custom_call.1} parent=11 // pred_check_branch
          %308 = sbr.rel (%p306) target = $region36
        $region35: #{tpu_custom_call.1} parent=11 // pred_region
          _
        $region36: #{tpu_custom_call.1} parent=11 // pred_fallthru
          _
        // Predicated region
        $region37: #{tpu_custom_call.1} parent=11 // pred_check
          %p309 = pneg %p196
        $region38: #{tpu_custom_call.1} parent=11 // pred_check_branch
          %311 = sbr.rel (%p309) target = $region40
        $region39: #{tpu_custom_call.1} parent=11 // pred_region
          %313 = vsyncadd [#allocation9], 0
          %s314 = sshll.u32 %s7, 4
          %s315 = int_to_ptr.hbm [resolvable:$true] %s314
          %s316 = sshll.u32 [#allocation10], 4
          %s317 = int_to_ptr.vmem [resolvable:$true] %s316
          %322 = dma.hbm_to_vmem [thread:$0]  %s315, 3072, %s317, [#allocation9], 64, 64, 4
        $region40: #{tpu_custom_call.1} parent=11 // pred_fallthru
          _
        // Predicated region
        $region41: #{tpu_custom_call.1} parent=11 // pred_check
          %p323 = pneg %p217
        $region42: #{tpu_custom_call.1} parent=11 // pred_check_branch
          %325 = sbr.rel (%p323) target = $region44
        $region43: #{tpu_custom_call.1} parent=11 // pred_region
          _
        $region44: #{tpu_custom_call.1} parent=11 // pred_fallthru
          _
      $region12: #{tpu_custom_call.1} parent=5 // pred_fallthru
        _
      %p326 = scmp.lt.s32.totalorder %s23, 2
      // Predicated region
      $region45: #{tpu_custom_call.1} parent=5 // pred_check
        %p327 = pneg %p326
      $region46: #{tpu_custom_call.1} parent=5 // pred_check_branch
        %329 = sbr.rel (%p327) target = $region48
      $region47: #{tpu_custom_call.1} parent=5 // pred_region
        // Predicated region
        $region49: #{tpu_custom_call.1} parent=47 // pred_check
          %p330 = pneg %p43
        $region50: #{tpu_custom_call.1} parent=47 // pred_check_branch
          %332 = sbr.rel (%p330) target = $region52
        $region51: #{tpu_custom_call.1} parent=47 // pred_region
          %s333 = sand.u32 %s33, 1
          %s334 = scalar_lea.sflag [#allocation3], %s333
          %s335 = sand.u32 %s33, 1
          %s336 = smul.addr %s335, 256
          %s337 = scalar_lea.vmem [#allocation2], %s336
          %339 = vsyncadd %s334, 0
          %s340 = smul.addr %s23, 32
          %s341 = smul.addr %s340, 8
          %s342 = scalar_lea.hbm %s0, %s341
          %s343 = sshll.u32 %s342, 4
          %s344 = int_to_ptr.hbm [resolvable:$true] %s343
          %s345 = sshll.u32 %s337, 4
          %s346 = int_to_ptr.vmem [resolvable:$true] %s345
          %351 = dma.hbm_to_vmem [thread:$0]  %s344, 4096, %s346, %s334, 128, 128, 8
        $region52: #{tpu_custom_call.1} parent=47 // pred_fallthru
          _
      $region48: #{tpu_custom_call.1} parent=5 // pred_fallthru
        _
      %p352 = scmp.le.s32.totalorder 1, %s23
      %p353 = scmp.lt.s32.totalorder %s23, 3
      %p354 = pnand %p352, %p353
      %p355 = pneg %p354
      // Predicated region
      $region53: #{tpu_custom_call.1} parent=5 // pred_check
        _
      $region54: #{tpu_custom_call.1} parent=5 // pred_check_branch
        %357 = sbr.rel (%p354) target = $region56
      $region55: #{tpu_custom_call.1} parent=5 // pred_region
        %s358 = ssub.s32 %s23, 1
        %s359 = sand.u32 %s36, 1
        %s360 = scalar_lea.sflag [#allocation3], %s359
        %s361 = sand.u32 %s36, 1
        %s362 = smul.addr %s361, 256
        %s363 = scalar_lea.vmem [#allocation2], %s362
        // Predicated region
        $region57: #{tpu_custom_call.1} parent=55 // pred_check
          %p364 = pneg %p49
        $region58: #{tpu_custom_call.1} parent=55 // pred_check_branch
          %366 = sbr.rel (%p364) target = $region60
        $region59: #{tpu_custom_call.1} parent=55 // pred_region
          %368 = dma.done %s360, 4096
        $region60: #{tpu_custom_call.1} parent=55 // pred_fallthru
          _
        // Predicated region
        $region61: #{tpu_custom_call.1} parent=55 // pred_check
          %p369 = pneg %p70
        $region62: #{tpu_custom_call.1} parent=55 // pred_check_branch
          %371 = sbr.rel (%p369) target = $region64
        $region63: #{tpu_custom_call.1} parent=55 // pred_region
          %373 = dma.done [#allocation6], 3072
        $region64: #{tpu_custom_call.1} parent=55 // pred_fallthru
          _
        // Predicated region
        $region65: #{tpu_custom_call.1} parent=55 // pred_check
          %p374 = pneg %p112
        $region66: #{tpu_custom_call.1} parent=55 // pred_check_branch
          %376 = sbr.rel (%p374) target = $region68
        $region67: #{tpu_custom_call.1} parent=55 // pred_region
          %378 = dma.done [#allocation6], 3072
        $region68: #{tpu_custom_call.1} parent=55 // pred_fallthru
          _
        // Predicated region
        $region69: #{tpu_custom_call.1} parent=55 // pred_check
          %p379 = pneg %p154
        $region70: #{tpu_custom_call.1} parent=55 // pred_check_branch
          %381 = sbr.rel (%p379) target = $region72
        $region71: #{tpu_custom_call.1} parent=55 // pred_region
          %383 = dma.done [#allocation9], 3072
        $region72: #{tpu_custom_call.1} parent=55 // pred_fallthru
          _
        // Predicated region
        $region73: #{tpu_custom_call.1} parent=55 // pred_check
          %p384 = pneg %p196
        $region74: #{tpu_custom_call.1} parent=55 // pred_check_branch
          %386 = sbr.rel (%p384) target = $region76
        $region75: #{tpu_custom_call.1} parent=55 // pred_region
          %388 = dma.done [#allocation9], 3072
        $region76: #{tpu_custom_call.1} parent=55 // pred_fallthru
          _
        %s389 = sand.u32 %s36, 1
        %s390 = scalar_lea.sflag [#allocation3], %s389
        %s391 = sand.u32 %s36, 1
        %s392 = smul.addr %s391, 256
        %s393 = scalar_lea.vmem [#allocation2], %s392
        %p394 = pneg %p49
        %p395 = pneg %p46
        %p396 = pneg %p70
        %p397 = pneg %p67
        %p398 = pneg %p91
        %p399 = pneg %p88
        %p400 = pneg %p112
        %p401 = pneg %p109
        %p402 = pneg %p133
        %p403 = pneg %p130
        %p404 = pneg %p154
        %p405 = pneg %p151
        %p406 = pneg %p175
        %p407 = pneg %p172
        %p408 = pneg %p196
        %p409 = pneg %p193
        %p410 = pneg %p217
        %p411 = pneg %p214
        %p412 = pneg %p243
        %p413 = pneg %p240
        %s414 = sand.u32 %s230, 1
        %s415 = scalar_lea.sflag [#allocation4], %s414
        %s416 = sand.u32 %s230, 1
        %s417 = smul.addr %s416, 256
        %s418 = scalar_lea.vmem [#allocation11], %s417
        %v419 = vld [vmem:[%s363] sm:$0xff]
        %v420 = vld [vmem:[%s363 + $0x8] sm:$0xff]
        %v421 = vld [vmem:[%s363 + $0x10] sm:$0xff]
        %v422 = vld [vmem:[%s363 + $0x18] sm:$0xff]
        %v423 = vld [vmem:[%s363 + $0x20] sm:$0xff]
        %v424 = vld [vmem:[%s363 + $0x28] sm:$0xff]
        %v425 = vld [vmem:[%s363 + $0x30] sm:$0xff]
        %v426 = vld [vmem:[%s363 + $0x38] sm:$0xff]
        %v427 = vld [vmem:[%s363 + $0x40] sm:$0xff]
        %v428 = vld [vmem:[%s363 + $0x48] sm:$0xff]
        %v429 = vld [vmem:[%s363 + $0x50] sm:$0xff]
        %v430 = vld [vmem:[%s363 + $0x58] sm:$0xff]
        %v431 = vld [vmem:[%s363 + $0x60] sm:$0xff]
        %v432 = vld [vmem:[%s363 + $0x68] sm:$0xff]
        %v433 = vld [vmem:[%s363 + $0x70] sm:$0xff]
        %v434 = vld [vmem:[%s363 + $0x78] sm:$0xff]
        %v435 = vld [vmem:[%s363 + $0x80] sm:$0xff]
        %v436 = vld [vmem:[%s363 + $0x88] sm:$0xff]
        %v437 = vld [vmem:[%s363 + $0x90] sm:$0xff]
        %v438 = vld [vmem:[%s363 + $0x98] sm:$0xff]
        %v439 = vld [vmem:[%s363 + $0xa0] sm:$0xff]
        %v440 = vld [vmem:[%s363 + $0xa8] sm:$0xff]
        %v441 = vld [vmem:[%s363 + $0xb0] sm:$0xff]
        %v442 = vld [vmem:[%s363 + $0xb8] sm:$0xff]
        %v443 = vld [vmem:[%s363 + $0xc0] sm:$0xff]
        %v444 = vld [vmem:[%s363 + $0xc8] sm:$0xff]
        %v445 = vld [vmem:[%s363 + $0xd0] sm:$0xff]
        %v446 = vld [vmem:[%s363 + $0xd8] sm:$0xff]
        %v447 = vld [vmem:[%s363 + $0xe0] sm:$0xff]
        %v448 = vld [vmem:[%s363 + $0xe8] sm:$0xff]
        %v449 = vld [vmem:[%s363 + $0xf0] sm:$0xff]
        %v450 = vld [vmem:[%s363 + $0xf8] sm:$0xff]
        %v451 = vlaneseq
        %v452 = vshrl.u32 %v451, 7
        %v453 = vadd.s32 %v452, 8
        %v454 = vadd.s32 %v452, 16
        %v455 = vadd.s32 %v452, 24
        %v456 = vadd.s32 %v452, 32
        %v457 = vadd.s32 %v452, 40
        %v458 = vadd.s32 %v452, 48
        %v459 = vadd.s32 %v452, 56
        %v460 = vadd.s32 %v452, 64
        %v461 = vadd.s32 %v452, 72
        %v462 = vadd.s32 %v452, 80
        %v463 = vadd.s32 %v452, 88
        %v464 = vadd.s32 %v452, 96
        %v465 = vadd.s32 %v452, 104
        %v466 = vadd.s32 %v452, 112
        %v467 = vadd.s32 %v452, 120
        %v468 = vadd.s32 %v452, 128
        %v469 = vadd.s32 %v452, 136
        %v470 = vadd.s32 %v452, 144
        %v471 = vadd.s32 %v452, 152
        %v472 = vadd.s32 %v452, 160
        %v473 = vadd.s32 %v452, 168
        %v474 = vadd.s32 %v452, 176
        %v475 = vadd.s32 %v452, 184
        %v476 = vadd.s32 %v452, 192
        %v477 = vadd.s32 %v452, 200
        %v478 = vadd.s32 %v452, 208
        %v479 = vadd.s32 %v452, 216
        %v480 = vadd.s32 %v452, 224
        %v481 = vadd.s32 %v452, 232
        %v482 = vadd.s32 %v452, 240
        %v483 = vadd.s32 %v452, 248
        %v484 = vand.u32 %v452, 15
        %v485 = vand.u32 %v453, 15
        %v486 = vand.u32 %v454, 15
        %v487 = vand.u32 %v455, 15
        %v488 = vand.u32 %v456, 15
        %v489 = vand.u32 %v457, 15
        %v490 = vand.u32 %v458, 15
        %v491 = vand.u32 %v459, 15
        %v492 = vand.u32 %v460, 15
        %v493 = vand.u32 %v461, 15
        %v494 = vand.u32 %v462, 15
        %v495 = vand.u32 %v463, 15
        %v496 = vand.u32 %v464, 15
        %v497 = vand.u32 %v465, 15
        %v498 = vand.u32 %v466, 15
        %v499 = vand.u32 %v467, 15
        %v500 = vand.u32 %v468, 15
        %v501 = vand.u32 %v469, 15
        %v502 = vand.u32 %v470, 15
        %v503 = vand.u32 %v471, 15
        %v504 = vand.u32 %v472, 15
        %v505 = vand.u32 %v473, 15
        %v506 = vand.u32 %v474, 15
        %v507 = vand.u32 %v475, 15
        %v508 = vand.u32 %v476, 15
        %v509 = vand.u32 %v477, 15
        %v510 = vand.u32 %v478, 15
        %v511 = vand.u32 %v479, 15
        %v512 = vand.u32 %v480, 15
        %v513 = vand.u32 %v481, 15
        %v514 = vand.u32 %v482, 15
        %v515 = vand.u32 %v483, 15
        %v516 = vadd.s32 %v452, 4294967280
        %v517 = vadd.s32 %v453, 4294967280
        %v518 = vadd.s32 %v454, 4294967280
        %v519 = vadd.s32 %v455, 4294967280
        %v520 = vadd.s32 %v456, 4294967280
        %v521 = vadd.s32 %v457, 4294967280
        %v522 = vadd.s32 %v458, 4294967280
        %v523 = vadd.s32 %v459, 4294967280
        %v524 = vadd.s32 %v460, 4294967280
        %v525 = vadd.s32 %v461, 4294967280
        %v526 = vadd.s32 %v462, 4294967280
        %v527 = vadd.s32 %v463, 4294967280
        %v528 = vadd.s32 %v464, 4294967280
        %v529 = vadd.s32 %v465, 4294967280
        %v530 = vadd.s32 %v466, 4294967280
        %v531 = vadd.s32 %v467, 4294967280
        %v532 = vadd.s32 %v468, 4294967280
        %v533 = vadd.s32 %v469, 4294967280
        %v534 = vadd.s32 %v470, 4294967280
        %v535 = vadd.s32 %v471, 4294967280
        %v536 = vadd.s32 %v472, 4294967280
        %v537 = vadd.s32 %v473, 4294967280
        %v538 = vadd.s32 %v474, 4294967280
        %v539 = vadd.s32 %v475, 4294967280
        %v540 = vadd.s32 %v476, 4294967280
        %v541 = vadd.s32 %v477, 4294967280
        %v542 = vadd.s32 %v478, 4294967280
        %v543 = vadd.s32 %v479, 4294967280
        %v544 = vadd.s32 %v480, 4294967280
        %v545 = vadd.s32 %v481, 4294967280
        %v546 = vadd.s32 %v482, 4294967280
        %v547 = vadd.s32 %v483, 4294967280
        %vm548 = vcmp.ge.s32.totalorder %v516, 0
        %vm549 = vcmp.ge.s32.totalorder %v517, 0
        %vm550 = vcmp.ge.s32.totalorder %v518, 0
        %vm551 = vcmp.ge.s32.totalorder %v519, 0
        %vm552 = vcmp.ge.s32.totalorder %v520, 0
        %vm553 = vcmp.ge.s32.totalorder %v521, 0
        %vm554 = vcmp.ge.s32.totalorder %v522, 0
        %vm555 = vcmp.ge.s32.totalorder %v523, 0
        %vm556 = vcmp.ge.s32.totalorder %v524, 0
        %vm557 = vcmp.ge.s32.totalorder %v525, 0
        %vm558 = vcmp.ge.s32.totalorder %v526, 0
        %vm559 = vcmp.ge.s32.totalorder %v527, 0
        %vm560 = vcmp.ge.s32.totalorder %v528, 0
        %vm561 = vcmp.ge.s32.totalorder %v529, 0
        %vm562 = vcmp.ge.s32.totalorder %v530, 0
        %vm563 = vcmp.ge.s32.totalorder %v531, 0
        %vm564 = vcmp.ge.s32.totalorder %v532, 0
        %vm565 = vcmp.ge.s32.totalorder %v533, 0
        %vm566 = vcmp.ge.s32.totalorder %v534, 0
        %vm567 = vcmp.ge.s32.totalorder %v535, 0
        %vm568 = vcmp.ge.s32.totalorder %v536, 0
        %vm569 = vcmp.ge.s32.totalorder %v537, 0
        %vm570 = vcmp.ge.s32.totalorder %v538, 0
        %vm571 = vcmp.ge.s32.totalorder %v539, 0
        %vm572 = vcmp.ge.s32.totalorder %v540, 0
        %vm573 = vcmp.ge.s32.totalorder %v541, 0
        %vm574 = vcmp.ge.s32.totalorder %v542, 0
        %vm575 = vcmp.ge.s32.totalorder %v543, 0
        %vm576 = vcmp.ge.s32.totalorder %v544, 0
        %vm577 = vcmp.ge.s32.totalorder %v545, 0
        %vm578 = vcmp.ge.s32.totalorder %v546, 0
        %vm579 = vcmp.ge.s32.totalorder %v547, 0
        %vm580 = vcmp.lt.s32.totalorder %v516, 256
        %vm581 = vcmp.lt.s32.totalorder %v517, 256
        %vm582 = vcmp.lt.s32.totalorder %v518, 256
        %vm583 = vcmp.lt.s32.totalorder %v519, 256
        %vm584 = vcmp.lt.s32.totalorder %v520, 256
        %vm585 = vcmp.lt.s32.totalorder %v521, 256
        %vm586 = vcmp.lt.s32.totalorder %v522, 256
        %vm587 = vcmp.lt.s32.totalorder %v523, 256
        %vm588 = vcmp.lt.s32.totalorder %v524, 256
        %vm589 = vcmp.lt.s32.totalorder %v525, 256
        %vm590 = vcmp.lt.s32.totalorder %v526, 256
        %vm591 = vcmp.lt.s32.totalorder %v527, 256
        %vm592 = vcmp.lt.s32.totalorder %v528, 256
        %vm593 = vcmp.lt.s32.totalorder %v529, 256
        %vm594 = vcmp.lt.s32.totalorder %v530, 256
        %vm595 = vcmp.lt.s32.totalorder %v531, 256
        %vm596 = vcmp.lt.s32.totalorder %v532, 256
        %vm597 = vcmp.lt.s32.totalorder %v533, 256
        %vm598 = vcmp.lt.s32.totalorder %v534, 256
        %vm599 = vcmp.lt.s32.totalorder %v535, 256
        %vm600 = vcmp.lt.s32.totalorder %v536, 256
        %vm601 = vcmp.lt.s32.totalorder %v537, 256
        %vm602 = vcmp.lt.s32.totalorder %v538, 256
        %vm603 = vcmp.lt.s32.totalorder %v539, 256
        %vm604 = vcmp.lt.s32.totalorder %v540, 256
        %vm605 = vcmp.lt.s32.totalorder %v541, 256
        %vm606 = vcmp.lt.s32.totalorder %v542, 256
        %vm607 = vcmp.lt.s32.totalorder %v543, 256
        %vm608 = vcmp.lt.s32.totalorder %v544, 256
        %vm609 = vcmp.lt.s32.totalorder %v545, 256
        %vm610 = vcmp.lt.s32.totalorder %v546, 256
        %vm611 = vcmp.lt.s32.totalorder %v547, 256
        %vm612 = vmand %vm548, %vm580
        %vm613 = vmand %vm549, %vm581
        %vm614 = vmand %vm550, %vm582
        %vm615 = vmand %vm551, %vm583
        %vm616 = vmand %vm552, %vm584
        %vm617 = vmand %vm553, %vm585
        %vm618 = vmand %vm554, %vm586
        %vm619 = vmand %vm555, %vm587
        %vm620 = vmand %vm556, %vm588
        %vm621 = vmand %vm557, %vm589
        %vm622 = vmand %vm558, %vm590
        %vm623 = vmand %vm559, %vm591
        %vm624 = vmand %vm560, %vm592
        %vm625 = vmand %vm561, %vm593
        %vm626 = vmand %vm562, %vm594
        %vm627 = vmand %vm563, %vm595
        %vm628 = vmand %vm564, %vm596
        %vm629 = vmand %vm565, %vm597
        %vm630 = vmand %vm566, %vm598
        %vm631 = vmand %vm567, %vm599
        %vm632 = vmand %vm568, %vm600
        %vm633 = vmand %vm569, %vm601
        %vm634 = vmand %vm570, %vm602
        %vm635 = vmand %vm571, %vm603
        %vm636 = vmand %vm572, %vm604
        %vm637 = vmand %vm573, %vm605
        %vm638 = vmand %vm574, %vm606
        %vm639 = vmand %vm575, %vm607
        %vm640 = vmand %vm576, %vm608
        %vm641 = vmand %vm577, %vm609
        %vm642 = vmand %vm578, %vm610
        %vm643 = vmand %vm579, %vm611
        %v644 = vsel %vm612, 1, 0
        %v645 = vsel %vm613, 1, 0
        %v646 = vsel %vm614, 1, 0
        %v647 = vsel %vm615, 1, 0
        %v648 = vsel %vm616, 1, 0
        %v649 = vsel %vm617, 1, 0
        %v650 = vsel %vm618, 1, 0
        %v651 = vsel %vm619, 1, 0
        %v652 = vsel %vm620, 1, 0
        %v653 = vsel %vm621, 1, 0
        %v654 = vsel %vm622, 1, 0
        %v655 = vsel %vm623, 1, 0
        %v656 = vsel %vm624, 1, 0
        %v657 = vsel %vm625, 1, 0
        %v658 = vsel %vm626, 1, 0
        %v659 = vsel %vm627, 1, 0
        %v660 = vsel %vm628, 1, 0
        %v661 = vsel %vm629, 1, 0
        %v662 = vsel %vm630, 1, 0
        %v663 = vsel %vm631, 1, 0
        %v664 = vsel %vm632, 1, 0
        %v665 = vsel %vm633, 1, 0
        %v666 = vsel %vm634, 1, 0
        %v667 = vsel %vm635, 1, 0
        %v668 = vsel %vm636, 1, 0
        %v669 = vsel %vm637, 1, 0
        %v670 = vsel %vm638, 1, 0
        %v671 = vsel %vm639, 1, 0
        %v672 = vsel %vm640, 1, 0
        %v673 = vsel %vm641, 1, 0
        %v674 = vsel %vm642, 1, 0
        %v675 = vsel %vm643, 1, 0
        %vm676 = vcmp.eq.s32.totalorder %v644, 1
        %vm677 = vcmp.eq.s32.totalorder %v645, 1
        %vm678 = vcmp.eq.s32.totalorder %v646, 1
        %vm679 = vcmp.eq.s32.totalorder %v647, 1
        %vm680 = vcmp.eq.s32.totalorder %v648, 1
        %vm681 = vcmp.eq.s32.totalorder %v649, 1
        %vm682 = vcmp.eq.s32.totalorder %v650, 1
        %vm683 = vcmp.eq.s32.totalorder %v651, 1
        %vm684 = vcmp.eq.s32.totalorder %v652, 1
        %vm685 = vcmp.eq.s32.totalorder %v653, 1
        %vm686 = vcmp.eq.s32.totalorder %v654, 1
        %vm687 = vcmp.eq.s32.totalorder %v655, 1
        %vm688 = vcmp.eq.s32.totalorder %v656, 1
        %vm689 = vcmp.eq.s32.totalorder %v657, 1
        %vm690 = vcmp.eq.s32.totalorder %v658, 1
        %vm691 = vcmp.eq.s32.totalorder %v659, 1
        %vm692 = vcmp.eq.s32.totalorder %v660, 1
        %vm693 = vcmp.eq.s32.totalorder %v661, 1
        %vm694 = vcmp.eq.s32.totalorder %v662, 1
        %vm695 = vcmp.eq.s32.totalorder %v663, 1
        %vm696 = vcmp.eq.s32.totalorder %v664, 1
        %vm697 = vcmp.eq.s32.totalorder %v665, 1
        %vm698 = vcmp.eq.s32.totalorder %v666, 1
        %vm699 = vcmp.eq.s32.totalorder %v667, 1
        %vm700 = vcmp.eq.s32.totalorder %v668, 1
        %vm701 = vcmp.eq.s32.totalorder %v669, 1
        %vm702 = vcmp.eq.s32.totalorder %v670, 1
        %vm703 = vcmp.eq.s32.totalorder %v671, 1
        %vm704 = vcmp.eq.s32.totalorder %v672, 1
        %vm705 = vcmp.eq.s32.totalorder %v673, 1
        %vm706 = vcmp.eq.s32.totalorder %v674, 1
        %vm707 = vcmp.eq.s32.totalorder %v675, 1
        %v708 = vsel %vm676, %v449, 0.0
        %v709 = vsel %vm677, %v450, 0.0
        %v710 = vsel %vm678, %v419, 0.0
        %v711 = vsel %vm679, %v420, 0.0
        %v712 = vsel %vm680, %v421, 0.0
        %v713 = vsel %vm681, %v422, 0.0
        %v714 = vsel %vm682, %v423, 0.0
        %v715 = vsel %vm683, %v424, 0.0
        %v716 = vsel %vm684, %v425, 0.0
        %v717 = vsel %vm685, %v426, 0.0
        %v718 = vsel %vm686, %v427, 0.0
        %v719 = vsel %vm687, %v428, 0.0
        %v720 = vsel %vm688, %v429, 0.0
        %v721 = vsel %vm689, %v430, 0.0
        %v722 = vsel %vm690, %v431, 0.0
        %v723 = vsel %vm691, %v432, 0.0
        %v724 = vsel %vm692, %v433, 0.0
        %v725 = vsel %vm693, %v434, 0.0
        %v726 = vsel %vm694, %v435, 0.0
        %v727 = vsel %vm695, %v436, 0.0
        %v728 = vsel %vm696, %v437, 0.0
        %v729 = vsel %vm697, %v438, 0.0
        %v730 = vsel %vm698, %v439, 0.0
        %v731 = vsel %vm699, %v440, 0.0
        %v732 = vsel %vm700, %v441, 0.0
        %v733 = vsel %vm701, %v442, 0.0
        %v734 = vsel %vm702, %v443, 0.0
        %v735 = vsel %vm703, %v444, 0.0
        %v736 = vsel %vm704, %v445, 0.0
        %v737 = vsel %vm705, %v446, 0.0
        %v738 = vsel %vm706, %v447, 0.0
        %v739 = vsel %vm707, %v448, 0.0
        %v740 = vadd.s32 %v453, 16
        %v741 = vadd.s32 %v454, 16
        %v742 = vadd.s32 %v455, 16
        %v743 = vadd.s32 %v456, 16
        %v744 = vadd.s32 %v457, 16
        %v745 = vadd.s32 %v458, 16
        %v746 = vadd.s32 %v459, 16
        %v747 = vadd.s32 %v460, 16
        %v748 = vadd.s32 %v461, 16
        %v749 = vadd.s32 %v462, 16
        %v750 = vadd.s32 %v463, 16
        %v751 = vadd.s32 %v464, 16
        %v752 = vadd.s32 %v465, 16
        %v753 = vadd.s32 %v466, 16
        %v754 = vadd.s32 %v467, 16
        %v755 = vadd.s32 %v468, 16
        %v756 = vadd.s32 %v469, 16
        %v757 = vadd.s32 %v470, 16
        %v758 = vadd.s32 %v471, 16
        %v759 = vadd.s32 %v472, 16
        %v760 = vadd.s32 %v473, 16
        %v761 = vadd.s32 %v474, 16
        %v762 = vadd.s32 %v475, 16
        %v763 = vadd.s32 %v476, 16
        %v764 = vadd.s32 %v477, 16
        %v765 = vadd.s32 %v478, 16
        %v766 = vadd.s32 %v479, 16
        %v767 = vadd.s32 %v480, 16
        %v768 = vadd.s32 %v481, 16
        %v769 = vadd.s32 %v482, 16
        %v770 = vadd.s32 %v483, 16
        %vm771 = vcmp.ge.s32.totalorder %v454, 0
        %vm772 = vcmp.ge.s32.totalorder %v740, 0
        %vm773 = vcmp.ge.s32.totalorder %v741, 0
        %vm774 = vcmp.ge.s32.totalorder %v742, 0
        %vm775 = vcmp.ge.s32.totalorder %v743, 0
        %vm776 = vcmp.ge.s32.totalorder %v744, 0
        %vm777 = vcmp.ge.s32.totalorder %v745, 0
        %vm778 = vcmp.ge.s32.totalorder %v746, 0
        %vm779 = vcmp.ge.s32.totalorder %v747, 0
        %vm780 = vcmp.ge.s32.totalorder %v748, 0
        %vm781 = vcmp.ge.s32.totalorder %v749, 0
        %vm782 = vcmp.ge.s32.totalorder %v750, 0
        %vm783 = vcmp.ge.s32.totalorder %v751, 0
        %vm784 = vcmp.ge.s32.totalorder %v752, 0
        %vm785 = vcmp.ge.s32.totalorder %v753, 0
        %vm786 = vcmp.ge.s32.totalorder %v754, 0
        %vm787 = vcmp.ge.s32.totalorder %v755, 0
        %vm788 = vcmp.ge.s32.totalorder %v756, 0
        %vm789 = vcmp.ge.s32.totalorder %v757, 0
        %vm790 = vcmp.ge.s32.totalorder %v758, 0
        %vm791 = vcmp.ge.s32.totalorder %v759, 0
        %vm792 = vcmp.ge.s32.totalorder %v760, 0
        %vm793 = vcmp.ge.s32.totalorder %v761, 0
        %vm794 = vcmp.ge.s32.totalorder %v762, 0
        %vm795 = vcmp.ge.s32.totalorder %v763, 0
        %vm796 = vcmp.ge.s32.totalorder %v764, 0
        %vm797 = vcmp.ge.s32.totalorder %v765, 0
        %vm798 = vcmp.ge.s32.totalorder %v766, 0
        %vm799 = vcmp.ge.s32.totalorder %v767, 0
        %vm800 = vcmp.ge.s32.totalorder %v768, 0
        %vm801 = vcmp.ge.s32.totalorder %v769, 0
        %vm802 = vcmp.ge.s32.totalorder %v770, 0
        %vm803 = vcmp.lt.s32.totalorder %v454, 256
        %vm804 = vcmp.lt.s32.totalorder %v740, 256
        %vm805 = vcmp.lt.s32.totalorder %v741, 256
        %vm806 = vcmp.lt.s32.totalorder %v742, 256
        %vm807 = vcmp.lt.s32.totalorder %v743, 256
        %vm808 = vcmp.lt.s32.totalorder %v744, 256
        %vm809 = vcmp.lt.s32.totalorder %v745, 256
        %vm810 = vcmp.lt.s32.totalorder %v746, 256
        %vm811 = vcmp.lt.s32.totalorder %v747, 256
        %vm812 = vcmp.lt.s32.totalorder %v748, 256
        %vm813 = vcmp.lt.s32.totalorder %v749, 256
        %vm814 = vcmp.lt.s32.totalorder %v750, 256
        %vm815 = vcmp.lt.s32.totalorder %v751, 256
        %vm816 = vcmp.lt.s32.totalorder %v752, 256
        %vm817 = vcmp.lt.s32.totalorder %v753, 256
        %vm818 = vcmp.lt.s32.totalorder %v754, 256
        %vm819 = vcmp.lt.s32.totalorder %v755, 256
        %vm820 = vcmp.lt.s32.totalorder %v756, 256
        %vm821 = vcmp.lt.s32.totalorder %v757, 256
        %vm822 = vcmp.lt.s32.totalorder %v758, 256
        %vm823 = vcmp.lt.s32.totalorder %v759, 256
        %vm824 = vcmp.lt.s32.totalorder %v760, 256
        %vm825 = vcmp.lt.s32.totalorder %v761, 256
        %vm826 = vcmp.lt.s32.totalorder %v762, 256
        %vm827 = vcmp.lt.s32.totalorder %v763, 256
        %vm828 = vcmp.lt.s32.totalorder %v764, 256
        %vm829 = vcmp.lt.s32.totalorder %v765, 256
        %vm830 = vcmp.lt.s32.totalorder %v766, 256
        %vm831 = vcmp.lt.s32.totalorder %v767, 256
        %vm832 = vcmp.lt.s32.totalorder %v768, 256
        %vm833 = vcmp.lt.s32.totalorder %v769, 256
        %vm834 = vcmp.lt.s32.totalorder %v770, 256
        %vm835 = vmand %vm771, %vm803
        %vm836 = vmand %vm772, %vm804
        %vm837 = vmand %vm773, %vm805
        %vm838 = vmand %vm774, %vm806
        %vm839 = vmand %vm775, %vm807
        %vm840 = vmand %vm776, %vm808
        %vm841 = vmand %vm777, %vm809
        %vm842 = vmand %vm778, %vm810
        %vm843 = vmand %vm779, %vm811
        %vm844 = vmand %vm780, %vm812
        %vm845 = vmand %vm781, %vm813
        %vm846 = vmand %vm782, %vm814
        %vm847 = vmand %vm783, %vm815
        %vm848 = vmand %vm784, %vm816
        %vm849 = vmand %vm785, %vm817
        %vm850 = vmand %vm786, %vm818
        %vm851 = vmand %vm787, %vm819
        %vm852 = vmand %vm788, %vm820
        %vm853 = vmand %vm789, %vm821
        %vm854 = vmand %vm790, %vm822
        %vm855 = vmand %vm791, %vm823
        %vm856 = vmand %vm792, %vm824
        %vm857 = vmand %vm793, %vm825
        %vm858 = vmand %vm794, %vm826
        %vm859 = vmand %vm795, %vm827
        %vm860 = vmand %vm796, %vm828
        %vm861 = vmand %vm797, %vm829
        %vm862 = vmand %vm798, %vm830
        %vm863 = vmand %vm799, %vm831
        %vm864 = vmand %vm800, %vm832
        %vm865 = vmand %vm801, %vm833
        %vm866 = vmand %vm802, %vm834
        %v867 = vsel %vm835, 1, 0
        %v868 = vsel %vm836, 1, 0
        %v869 = vsel %vm837, 1, 0
        %v870 = vsel %vm838, 1, 0
        %v871 = vsel %vm839, 1, 0
        %v872 = vsel %vm840, 1, 0
        %v873 = vsel %vm841, 1, 0
        %v874 = vsel %vm842, 1, 0
        %v875 = vsel %vm843, 1, 0
        %v876 = vsel %vm844, 1, 0
        %v877 = vsel %vm845, 1, 0
        %v878 = vsel %vm846, 1, 0
        %v879 = vsel %vm847, 1, 0
        %v880 = vsel %vm848, 1, 0
        %v881 = vsel %vm849, 1, 0
        %v882 = vsel %vm850, 1, 0
        %v883 = vsel %vm851, 1, 0
        %v884 = vsel %vm852, 1, 0
        %v885 = vsel %vm853, 1, 0
        %v886 = vsel %vm854, 1, 0
        %v887 = vsel %vm855, 1, 0
        %v888 = vsel %vm856, 1, 0
        %v889 = vsel %vm857, 1, 0
        %v890 = vsel %vm858, 1, 0
        %v891 = vsel %vm859, 1, 0
        %v892 = vsel %vm860, 1, 0
        %v893 = vsel %vm861, 1, 0
        %v894 = vsel %vm862, 1, 0
        %v895 = vsel %vm863, 1, 0
        %v896 = vsel %vm864, 1, 0
        %v897 = vsel %vm865, 1, 0
        %v898 = vsel %vm866, 1, 0
        %vm899 = vcmp.eq.s32.totalorder %v867, 1
        %vm900 = vcmp.eq.s32.totalorder %v868, 1
        %vm901 = vcmp.eq.s32.totalorder %v869, 1
        %vm902 = vcmp.eq.s32.totalorder %v870, 1
        %vm903 = vcmp.eq.s32.totalorder %v871, 1
        %vm904 = vcmp.eq.s32.totalorder %v872, 1
        %vm905 = vcmp.eq.s32.totalorder %v873, 1
        %vm906 = vcmp.eq.s32.totalorder %v874, 1
        %vm907 = vcmp.eq.s32.totalorder %v875, 1
        %vm908 = vcmp.eq.s32.totalorder %v876, 1
        %vm909 = vcmp.eq.s32.totalorder %v877, 1
        %vm910 = vcmp.eq.s32.totalorder %v878, 1
        %vm911 = vcmp.eq.s32.totalorder %v879, 1
        %vm912 = vcmp.eq.s32.totalorder %v880, 1
        %vm913 = vcmp.eq.s32.totalorder %v881, 1
        %vm914 = vcmp.eq.s32.totalorder %v882, 1
        %vm915 = vcmp.eq.s32.totalorder %v883, 1
        %vm916 = vcmp.eq.s32.totalorder %v884, 1
        %vm917 = vcmp.eq.s32.totalorder %v885, 1
        %vm918 = vcmp.eq.s32.totalorder %v886, 1
        %vm919 = vcmp.eq.s32.totalorder %v887, 1
        %vm920 = vcmp.eq.s32.totalorder %v888, 1
        %vm921 = vcmp.eq.s32.totalorder %v889, 1
        %vm922 = vcmp.eq.s32.totalorder %v890, 1
        %vm923 = vcmp.eq.s32.totalorder %v891, 1
        %vm924 = vcmp.eq.s32.totalorder %v892, 1
        %vm925 = vcmp.eq.s32.totalorder %v893, 1
        %vm926 = vcmp.eq.s32.totalorder %v894, 1
        %vm927 = vcmp.eq.s32.totalorder %v895, 1
        %vm928 = vcmp.eq.s32.totalorder %v896, 1
        %vm929 = vcmp.eq.s32.totalorder %v897, 1
        %vm930 = vcmp.eq.s32.totalorder %v898, 1
        %v931 = vsel %vm899, %v421, 0.0
        %v932 = vsel %vm900, %v422, 0.0
        %v933 = vsel %vm901, %v423, 0.0
        %v934 = vsel %vm902, %v424, 0.0
        %v935 = vsel %vm903, %v425, 0.0
        %v936 = vsel %vm904, %v426, 0.0
        %v937 = vsel %vm905, %v427, 0.0
        %v938 = vsel %vm906, %v428, 0.0
        %v939 = vsel %vm907, %v429, 0.0
        %v940 = vsel %vm908, %v430, 0.0
        %v941 = vsel %vm909, %v431, 0.0
        %v942 = vsel %vm910, %v432, 0.0
        %v943 = vsel %vm911, %v433, 0.0
        %v944 = vsel %vm912, %v434, 0.0
        %v945 = vsel %vm913, %v435, 0.0
        %v946 = vsel %vm914, %v436, 0.0
        %v947 = vsel %vm915, %v437, 0.0
        %v948 = vsel %vm916, %v438, 0.0
        %v949 = vsel %vm917, %v439, 0.0
        %v950 = vsel %vm918, %v440, 0.0
        %v951 = vsel %vm919, %v441, 0.0
        %v952 = vsel %vm920, %v442, 0.0
        %v953 = vsel %vm921, %v443, 0.0
        %v954 = vsel %vm922, %v444, 0.0
        %v955 = vsel %vm923, %v445, 0.0
        %v956 = vsel %vm924, %v446, 0.0
        %v957 = vsel %vm925, %v447, 0.0
        %v958 = vsel %vm926, %v448, 0.0
        %v959 = vsel %vm927, %v449, 0.0
        %v960 = vsel %vm928, %v450, 0.0
        %v961 = vsel %vm929, %v419, 0.0
        %v962 = vsel %vm930, %v420, 0.0
        %v963 = vpack.c.bf16 %v709, %v708
        %v964 = vpack.c.bf16 %v420, %v419
        %v965 = vpack.c.bf16 %v932, %v931
        %v966 = vpack.c.bf16 %v711, %v710
        %v967 = vpack.c.bf16 %v422, %v421
        %v968 = vpack.c.bf16 %v934, %v933
        %v969 = vpack.c.bf16 %v713, %v712
        %v970 = vpack.c.bf16 %v424, %v423
        %v971 = vpack.c.bf16 %v936, %v935
        %v972 = vpack.c.bf16 %v715, %v714
        %v973 = vpack.c.bf16 %v426, %v425
        %v974 = vpack.c.bf16 %v938, %v937
        %v975 = vpack.c.bf16 %v717, %v716
        %v976 = vpack.c.bf16 %v428, %v427
        %v977 = vpack.c.bf16 %v940, %v939
        %v978 = vpack.c.bf16 %v719, %v718
        %v979 = vpack.c.bf16 %v430, %v429
        %v980 = vpack.c.bf16 %v942, %v941
        %v981 = vpack.c.bf16 %v721, %v720
        %v982 = vpack.c.bf16 %v432, %v431
        %v983 = vpack.c.bf16 %v944, %v943
        %v984 = vpack.c.bf16 %v723, %v722
        %v985 = vpack.c.bf16 %v434, %v433
        %v986 = vpack.c.bf16 %v946, %v945
        %v987 = vpack.c.bf16 %v725, %v724
        %v988 = vpack.c.bf16 %v436, %v435
        %v989 = vpack.c.bf16 %v948, %v947
        %v990 = vpack.c.bf16 %v727, %v726
        %v991 = vpack.c.bf16 %v438, %v437
        %v992 = vpack.c.bf16 %v950, %v949
        %v993 = vpack.c.bf16 %v729, %v728
        %v994 = vpack.c.bf16 %v440, %v439
        %v995 = vpack.c.bf16 %v952, %v951
        %v996 = vpack.c.bf16 %v731, %v730
        %v997 = vpack.c.bf16 %v442, %v441
        %v998 = vpack.c.bf16 %v954, %v953
        %v999 = vpack.c.bf16 %v733, %v732
        %v1000 = vpack.c.bf16 %v444, %v443
        %v1001 = vpack.c.bf16 %v956, %v955
        %v1002 = vpack.c.bf16 %v735, %v734
        %v1003 = vpack.c.bf16 %v446, %v445
        %v1004 = vpack.c.bf16 %v958, %v957
        %v1005 = vpack.c.bf16 %v737, %v736
        %v1006 = vpack.c.bf16 %v448, %v447
        %v1007 = vpack.c.bf16 %v960, %v959
        %v1008 = vpack.c.bf16 %v739, %v738
        %v1009 = vpack.c.bf16 %v450, %v449
        %v1010 = vpack.c.bf16 %v962, %v961
        %v1011 = vld [vmem:[#allocation5] sm:$0xf]
        %v1012 = vld [vmem:[#allocation5 + $0x4] sm:$0xf]
        %v1013 = vld [vmem:[#allocation5 + $0x8] sm:$0xf]
        %v1014 = vld [vmem:[#allocation5 + $0xc] sm:$0xf]
        %v1015 = vld [vmem:[#allocation5 + $0x10] sm:$0xf]
        %v1016 = vld [vmem:[#allocation5 + $0x14] sm:$0xf]
        %v1017 = vld [vmem:[#allocation5 + $0x18] sm:$0xf]
        %v1018 = vld [vmem:[#allocation5 + $0x1c] sm:$0xf]
        %v1019 = vld [vmem:[#allocation5 + $0x20] sm:$0xf]
        %v1020 = vld [vmem:[#allocation5 + $0x24] sm:$0xf]
        %v1021 = vld [vmem:[#allocation5 + $0x28] sm:$0xf]
        %v1022 = vld [vmem:[#allocation5 + $0x2c] sm:$0xf]
        %v1023 = vld [vmem:[#allocation5 + $0x30] sm:$0xf]
        %v1024 = vld [vmem:[#allocation5 + $0x34] sm:$0xf]
        %v1025 = vld [vmem:[#allocation5 + $0x38] sm:$0xf]
        %v1026 = vld [vmem:[#allocation5 + $0x3c] sm:$0xf]
        %v1027 = vld [vmem:[#allocation5 + $0x40] sm:$0xf]
        %v1028 = vld [vmem:[#allocation5 + $0x44] sm:$0xf]
        %v1029 = vld [vmem:[#allocation5 + $0x48] sm:$0xf]
        %v1030 = vld [vmem:[#allocation5 + $0x4c] sm:$0xf]
        %v1031 = vld [vmem:[#allocation5 + $0x50] sm:$0xf]
        %v1032 = vld [vmem:[#allocation5 + $0x54] sm:$0xf]
        %v1033 = vld [vmem:[#allocation5 + $0x58] sm:$0xf]
        %v1034 = vld [vmem:[#allocation5 + $0x5c] sm:$0xf]
        %v1035 = vld [vmem:[#allocation5 + $0x60] sm:$0xf]
        %v1036 = vld [vmem:[#allocation5 + $0x64] sm:$0xf]
        %v1037 = vld [vmem:[#allocation5 + $0x68] sm:$0xf]
        %v1038 = vld [vmem:[#allocation5 + $0x6c] sm:$0xf]
        %v1039 = vld [vmem:[#allocation5 + $0x70] sm:$0xf]
        %v1040 = vld [vmem:[#allocation5 + $0x74] sm:$0xf]
        %v1041 = vld [vmem:[#allocation5 + $0x78] sm:$0xf]
        %v1042 = vld [vmem:[#allocation5 + $0x7c] sm:$0xf]
        %v1043 = vld [vmem:[#allocation5 + $0x80] sm:$0xf]
        %v1044 = vld [vmem:[#allocation5 + $0x84] sm:$0xf]
        %v1045 = vld [vmem:[#allocation5 + $0x88] sm:$0xf]
        %v1046 = vld [vmem:[#allocation5 + $0x8c] sm:$0xf]
        %v1047 = vld [vmem:[#allocation5 + $0x90] sm:$0xf]
        %v1048 = vld [vmem:[#allocation5 + $0x94] sm:$0xf]
        %v1049 = vld [vmem:[#allocation5 + $0x98] sm:$0xf]
        %v1050 = vld [vmem:[#allocation5 + $0x9c] sm:$0xf]
        %v1051 = vld [vmem:[#allocation5 + $0xa0] sm:$0xf]
        %v1052 = vld [vmem:[#allocation5 + $0xa4] sm:$0xf]
        %v1053 = vld [vmem:[#allocation5 + $0xa8] sm:$0xf]
        %v1054 = vld [vmem:[#allocation5 + $0xac] sm:$0xf]
        %v1055 = vld [vmem:[#allocation5 + $0xb0] sm:$0xf]
        %v1056 = vld [vmem:[#allocation5 + $0xb4] sm:$0xf]
        %v1057 = vld [vmem:[#allocation5 + $0xb8] sm:$0xf]
        %v1058 = vld [vmem:[#allocation5 + $0xbc] sm:$0xf]
        %v1059 = vld [vmem:[%s2] sm:$0x1]
        %v1061 = vperm.slane %v1059, 0
        %v1111 = vunpack.c.l.b16 %v1011
        %v1112 = vunpack.c.l.b16 %v1012
        %v1113 = vunpack.c.l.b16 %v1013
        %v1114 = vunpack.c.l.b16 %v1014
        %v1115 = vunpack.c.l.b16 %v1015
        %v1116 = vunpack.c.l.b16 %v1016
        %v1117 = vunpack.c.l.b16 %v1017
        %v1118 = vunpack.c.l.b16 %v1018
        %v1119 = vunpack.c.l.b16 %v1019
        %v1120 = vunpack.c.l.b16 %v1020
        %v1121 = vunpack.c.l.b16 %v1021
        %v1122 = vunpack.c.l.b16 %v1022
        %v1123 = vunpack.c.l.b16 %v1023
        %v1124 = vunpack.c.l.b16 %v1024
        %v1125 = vunpack.c.l.b16 %v1025
        %v1126 = vunpack.c.l.b16 %v1026
        %v1127 = vunpack.c.l.b16 %v1027
        %v1128 = vunpack.c.l.b16 %v1028
        %v1129 = vunpack.c.l.b16 %v1029
        %v1130 = vunpack.c.l.b16 %v1030
        %v1131 = vunpack.c.l.b16 %v1031
        %v1132 = vunpack.c.l.b16 %v1032
        %v1133 = vunpack.c.l.b16 %v1033
        %v1134 = vunpack.c.l.b16 %v1034
        %v1135 = vunpack.c.l.b16 %v1035
        %v1136 = vunpack.c.l.b16 %v1036
        %v1137 = vunpack.c.l.b16 %v1037
        %v1138 = vunpack.c.l.b16 %v1038
        %v1139 = vunpack.c.l.b16 %v1039
        %v1140 = vunpack.c.l.b16 %v1040
        %v1141 = vunpack.c.l.b16 %v1041
        %v1142 = vunpack.c.l.b16 %v1042
        %v1143 = vunpack.c.l.b16 %v1043
        %v1144 = vunpack.c.l.b16 %v1044
        %v1145 = vunpack.c.l.b16 %v1045
        %v1146 = vunpack.c.l.b16 %v1046
        %v1147 = vunpack.c.l.b16 %v1047
        %v1148 = vunpack.c.l.b16 %v1048
        %v1149 = vunpack.c.l.b16 %v1049
        %v1150 = vunpack.c.l.b16 %v1050
        %v1151 = vunpack.c.l.b16 %v1051
        %v1152 = vunpack.c.l.b16 %v1052
        %v1153 = vunpack.c.l.b16 %v1053
        %v1154 = vunpack.c.l.b16 %v1054
        %v1155 = vunpack.c.l.b16 %v1055
        %v1156 = vunpack.c.l.b16 %v1056
        %v1157 = vunpack.c.l.b16 %v1057
        %v1158 = vunpack.c.l.b16 %v1058
        %v1159 = vpack.c.b16 %v1112, %v1111
        %v1160 = vpack.c.b16 %v1114, %v1113
        %v1161 = vpack.c.b16 %v1116, %v1115
        %v1162 = vpack.c.b16 %v1118, %v1117
        %v1163 = vpack.c.b16 %v1120, %v1119
        %v1164 = vpack.c.b16 %v1122, %v1121
        %v1165 = vpack.c.b16 %v1124, %v1123
        %v1166 = vpack.c.b16 %v1126, %v1125
        %v1167 = vpack.c.b16 %v1128, %v1127
        %v1168 = vpack.c.b16 %v1130, %v1129
        %v1169 = vpack.c.b16 %v1132, %v1131
        %v1170 = vpack.c.b16 %v1134, %v1133
        %v1171 = vpack.c.b16 %v1136, %v1135
        %v1172 = vpack.c.b16 %v1138, %v1137
        %v1173 = vpack.c.b16 %v1140, %v1139
        %v1174 = vpack.c.b16 %v1142, %v1141
        %v1175 = vpack.c.b16 %v1144, %v1143
        %v1176 = vpack.c.b16 %v1146, %v1145
        %v1177 = vpack.c.b16 %v1148, %v1147
        %v1178 = vpack.c.b16 %v1150, %v1149
        %v1179 = vpack.c.b16 %v1152, %v1151
        %v1180 = vpack.c.b16 %v1154, %v1153
        %v1181 = vpack.c.b16 %v1156, %v1155
        %v1182 = vpack.c.b16 %v1158, %v1157
        %1207 = vmatpush.bf16.msra.mxu0 %v1166
        %1208 = vmatpush.bf16.msra.mxu0 %v1165
        %1209 = vmatpush.bf16.msra.mxu0 %v1164
        %1210 = vmatpush.bf16.msra.mxu0 %v1163
        %1211 = vmatpush.bf16.msra.mxu0 %v1162
        %1212 = vmatpush.bf16.msra.mxu0 %v1161
        %1213 = vmatpush.bf16.msra.mxu0 %v1160
        %1214 = vmatpush.bf16.msra.mxu0 %v1159
        %1215 = vmatmul.bf16.gmra.mxu0 %v963
        %v1216 = vpop.f32.mrf.mxu0
        %v1217 = vadd.f32 %v1061, %v1216
        %v1218 = vpop.f32.mrf.mxu0
        %v1219 = vadd.f32 %v1061, %v1218
        %1220 = vmatmul.bf16.gmra.mxu0 %v966
        %v1221 = vpop.f32.mrf.mxu0
        %v1222 = vadd.f32 %v1061, %v1221
        %v1223 = vpop.f32.mrf.mxu0
        %v1224 = vadd.f32 %v1061, %v1223
        %1225 = vmatmul.bf16.gmra.mxu0 %v969
        %v1226 = vpop.f32.mrf.mxu0
        %v1227 = vadd.f32 %v1061, %v1226
        %v1228 = vpop.f32.mrf.mxu0
        %v1229 = vadd.f32 %v1061, %v1228
        %1230 = vmatmul.bf16.gmra.mxu0 %v972
        %v1231 = vpop.f32.mrf.mxu0
        %v1232 = vadd.f32 %v1061, %v1231
        %v1233 = vpop.f32.mrf.mxu0
        %v1234 = vadd.f32 %v1061, %v1233
        %1235 = vmatmul.bf16.gmra.mxu0 %v975
        %v1236 = vpop.f32.mrf.mxu0
        %v1237 = vadd.f32 %v1061, %v1236
        %v1238 = vpop.f32.mrf.mxu0
        %v1239 = vadd.f32 %v1061, %v1238
        %1240 = vmatmul.bf16.gmra.mxu0 %v978
        %v1241 = vpop.f32.mrf.mxu0
        %v1242 = vadd.f32 %v1061, %v1241
        %v1243 = vpop.f32.mrf.mxu0
        %v1244 = vadd.f32 %v1061, %v1243
        %1245 = vmatmul.bf16.gmra.mxu0 %v981
        %v1246 = vpop.f32.mrf.mxu0
        %v1247 = vadd.f32 %v1061, %v1246
        %v1248 = vpop.f32.mrf.mxu0
        %v1249 = vadd.f32 %v1061, %v1248
        %1250 = vmatmul.bf16.gmra.mxu0 %v984
        %v1251 = vpop.f32.mrf.mxu0
        %v1252 = vadd.f32 %v1061, %v1251
        %v1253 = vpop.f32.mrf.mxu0
        %v1254 = vadd.f32 %v1061, %v1253
        %1255 = vmatmul.bf16.gmra.mxu0 %v987
        %v1256 = vpop.f32.mrf.mxu0
        %v1257 = vadd.f32 %v1061, %v1256
        %v1258 = vpop.f32.mrf.mxu0
        %v1259 = vadd.f32 %v1061, %v1258
        %1260 = vmatmul.bf16.gmra.mxu0 %v990
        %v1261 = vpop.f32.mrf.mxu0
        %v1262 = vadd.f32 %v1061, %v1261
        %v1263 = vpop.f32.mrf.mxu0
        %v1264 = vadd.f32 %v1061, %v1263
        %1265 = vmatmul.bf16.gmra.mxu0 %v993
        %v1266 = vpop.f32.mrf.mxu0
        %v1267 = vadd.f32 %v1061, %v1266
        %v1268 = vpop.f32.mrf.mxu0
        %v1269 = vadd.f32 %v1061, %v1268
        %1270 = vmatmul.bf16.gmra.mxu0 %v996
        %v1271 = vpop.f32.mrf.mxu0
        %v1272 = vadd.f32 %v1061, %v1271
        %v1273 = vpop.f32.mrf.mxu0
        %v1274 = vadd.f32 %v1061, %v1273
        %1275 = vmatmul.bf16.gmra.mxu0 %v999
        %v1276 = vpop.f32.mrf.mxu0
        %v1277 = vadd.f32 %v1061, %v1276
        %v1278 = vpop.f32.mrf.mxu0
        %v1279 = vadd.f32 %v1061, %v1278
        %1280 = vmatmul.bf16.gmra.mxu0 %v1002
        %v1281 = vpop.f32.mrf.mxu0
        %v1282 = vadd.f32 %v1061, %v1281
        %v1283 = vpop.f32.mrf.mxu0
        %v1284 = vadd.f32 %v1061, %v1283
        %1285 = vmatmul.bf16.gmra.mxu0 %v1005
        %v1286 = vpop.f32.mrf.mxu0
        %v1287 = vadd.f32 %v1061, %v1286
        %v1288 = vpop.f32.mrf.mxu0
        %v1289 = vadd.f32 %v1061, %v1288
        %1290 = vmatmul.bf16.gmra.mxu0 %v1008
        %v1291 = vpop.f32.mrf.mxu0
        %v1292 = vadd.f32 %v1061, %v1291
        %v1293 = vpop.f32.mrf.mxu0
        %v1294 = vadd.f32 %v1061, %v1293
        %1295 = vdwg.mxu0
        %1296 = vmatpush.bf16.msra.mxu0 %v1174
        %1297 = vmatpush.bf16.msra.mxu0 %v1173
        %1298 = vmatpush.bf16.msra.mxu0 %v1172
        %1299 = vmatpush.bf16.msra.mxu0 %v1171
        %1300 = vmatpush.bf16.msra.mxu0 %v1170
        %1301 = vmatpush.bf16.msra.mxu0 %v1169
        %1302 = vmatpush.bf16.msra.mxu0 %v1168
        %1303 = vmatpush.bf16.msra.mxu0 %v1167
        %1304 = vmatmul.bf16.gmra.mxu0 %v964
        %v1305 = vpop.f32.mrf.mxu0
        %v1306 = vadd.f32 %v1217, %v1305
        %v1307 = vpop.f32.mrf.mxu0
        %v1308 = vadd.f32 %v1219, %v1307
        %1309 = vmatmul.bf16.gmra.mxu0 %v967
        %v1310 = vpop.f32.mrf.mxu0
        %v1311 = vadd.f32 %v1222, %v1310
        %v1312 = vpop.f32.mrf.mxu0
        %v1313 = vadd.f32 %v1224, %v1312
        %1314 = vmatmul.bf16.gmra.mxu0 %v970
        %v1315 = vpop.f32.mrf.mxu0
        %v1316 = vadd.f32 %v1227, %v1315
        %v1317 = vpop.f32.mrf.mxu0
        %v1318 = vadd.f32 %v1229, %v1317
        %1319 = vmatmul.bf16.gmra.mxu0 %v973
        %v1320 = vpop.f32.mrf.mxu0
        %v1321 = vadd.f32 %v1232, %v1320
        %v1322 = vpop.f32.mrf.mxu0
        %v1323 = vadd.f32 %v1234, %v1322
        %1324 = vmatmul.bf16.gmra.mxu0 %v976
        %v1325 = vpop.f32.mrf.mxu0
        %v1326 = vadd.f32 %v1237, %v1325
        %v1327 = vpop.f32.mrf.mxu0
        %v1328 = vadd.f32 %v1239, %v1327
        %1329 = vmatmul.bf16.gmra.mxu0 %v979
        %v1330 = vpop.f32.mrf.mxu0
        %v1331 = vadd.f32 %v1242, %v1330
        %v1332 = vpop.f32.mrf.mxu0
        %v1333 = vadd.f32 %v1244, %v1332
        %1334 = vmatmul.bf16.gmra.mxu0 %v982
        %v1335 = vpop.f32.mrf.mxu0
        %v1336 = vadd.f32 %v1247, %v1335
        %v1337 = vpop.f32.mrf.mxu0
        %v1338 = vadd.f32 %v1249, %v1337
        %1339 = vmatmul.bf16.gmra.mxu0 %v985
        %v1340 = vpop.f32.mrf.mxu0
        %v1341 = vadd.f32 %v1252, %v1340
        %v1342 = vpop.f32.mrf.mxu0
        %v1343 = vadd.f32 %v1254, %v1342
        %1344 = vmatmul.bf16.gmra.mxu0 %v988
        %v1345 = vpop.f32.mrf.mxu0
        %v1346 = vadd.f32 %v1257, %v1345
        %v1347 = vpop.f32.mrf.mxu0
        %v1348 = vadd.f32 %v1259, %v1347
        %1349 = vmatmul.bf16.gmra.mxu0 %v991
        %v1350 = vpop.f32.mrf.mxu0
        %v1351 = vadd.f32 %v1262, %v1350
        %v1352 = vpop.f32.mrf.mxu0
        %v1353 = vadd.f32 %v1264, %v1352
        %1354 = vmatmul.bf16.gmra.mxu0 %v994
        %v1355 = vpop.f32.mrf.mxu0
        %v1356 = vadd.f32 %v1267, %v1355
        %v1357 = vpop.f32.mrf.mxu0
        %v1358 = vadd.f32 %v1269, %v1357
        %1359 = vmatmul.bf16.gmra.mxu0 %v997
        %v1360 = vpop.f32.mrf.mxu0
        %v1361 = vadd.f32 %v1272, %v1360
        %v1362 = vpop.f32.mrf.mxu0
        %v1363 = vadd.f32 %v1274, %v1362
        %1364 = vmatmul.bf16.gmra.mxu0 %v1000
        %v1365 = vpop.f32.mrf.mxu0
        %v1366 = vadd.f32 %v1277, %v1365
        %v1367 = vpop.f32.mrf.mxu0
        %v1368 = vadd.f32 %v1279, %v1367
        %1369 = vmatmul.bf16.gmra.mxu0 %v1003
        %v1370 = vpop.f32.mrf.mxu0
        %v1371 = vadd.f32 %v1282, %v1370
        %v1372 = vpop.f32.mrf.mxu0
        %v1373 = vadd.f32 %v1284, %v1372
        %1374 = vmatmul.bf16.gmra.mxu0 %v1006
        %v1375 = vpop.f32.mrf.mxu0
        %v1376 = vadd.f32 %v1287, %v1375
        %v1377 = vpop.f32.mrf.mxu0
        %v1378 = vadd.f32 %v1289, %v1377
        %1379 = vmatmul.bf16.gmra.mxu0 %v1009
        %v1380 = vpop.f32.mrf.mxu0
        %v1381 = vadd.f32 %v1292, %v1380
        %v1382 = vpop.f32.mrf.mxu0
        %v1383 = vadd.f32 %v1294, %v1382
        %1384 = vdwg.mxu0
        %1385 = vmatpush.bf16.msra.mxu0 %v1182
        %1386 = vmatpush.bf16.msra.mxu0 %v1181
        %1387 = vmatpush.bf16.msra.mxu0 %v1180
        %1388 = vmatpush.bf16.msra.mxu0 %v1179
        %1389 = vmatpush.bf16.msra.mxu0 %v1178
        %1390 = vmatpush.bf16.msra.mxu0 %v1177
        %1391 = vmatpush.bf16.msra.mxu0 %v1176
        %1392 = vmatpush.bf16.msra.mxu0 %v1175
        %1393 = vmatmul.bf16.gmra.mxu0 %v965
        %v1394 = vpop.f32.mrf.mxu0
        %v1395 = vadd.f32 %v1306, %v1394
        %v1396 = vpop.f32.mrf.mxu0
        %v1397 = vadd.f32 %v1308, %v1396
        %1398 = vmatmul.bf16.gmra.mxu0 %v968
        %v1399 = vpop.f32.mrf.mxu0
        %v1400 = vadd.f32 %v1311, %v1399
        %v1401 = vpop.f32.mrf.mxu0
        %v1402 = vadd.f32 %v1313, %v1401
        %1403 = vmatmul.bf16.gmra.mxu0 %v971
        %v1404 = vpop.f32.mrf.mxu0
        %v1405 = vadd.f32 %v1316, %v1404
        %v1406 = vpop.f32.mrf.mxu0
        %v1407 = vadd.f32 %v1318, %v1406
        %1408 = vmatmul.bf16.gmra.mxu0 %v974
        %v1409 = vpop.f32.mrf.mxu0
        %v1410 = vadd.f32 %v1321, %v1409
        %v1411 = vpop.f32.mrf.mxu0
        %v1412 = vadd.f32 %v1323, %v1411
        %1413 = vmatmul.bf16.gmra.mxu0 %v977
        %v1414 = vpop.f32.mrf.mxu0
        %v1415 = vadd.f32 %v1326, %v1414
        %v1416 = vpop.f32.mrf.mxu0
        %v1417 = vadd.f32 %v1328, %v1416
        %1418 = vmatmul.bf16.gmra.mxu0 %v980
        %v1419 = vpop.f32.mrf.mxu0
        %v1420 = vadd.f32 %v1331, %v1419
        %v1421 = vpop.f32.mrf.mxu0
        %v1422 = vadd.f32 %v1333, %v1421
        %1423 = vmatmul.bf16.gmra.mxu0 %v983
        %v1424 = vpop.f32.mrf.mxu0
        %v1425 = vadd.f32 %v1336, %v1424
        %v1426 = vpop.f32.mrf.mxu0
        %v1427 = vadd.f32 %v1338, %v1426
        %1428 = vmatmul.bf16.gmra.mxu0 %v986
        %v1429 = vpop.f32.mrf.mxu0
        %v1430 = vadd.f32 %v1341, %v1429
        %v1431 = vpop.f32.mrf.mxu0
        %v1432 = vadd.f32 %v1343, %v1431
        %1433 = vmatmul.bf16.gmra.mxu0 %v989
        %v1434 = vpop.f32.mrf.mxu0
        %v1435 = vadd.f32 %v1346, %v1434
        %v1436 = vpop.f32.mrf.mxu0
        %v1437 = vadd.f32 %v1348, %v1436
        %1438 = vmatmul.bf16.gmra.mxu0 %v992
        %v1439 = vpop.f32.mrf.mxu0
        %v1440 = vadd.f32 %v1351, %v1439
        %v1441 = vpop.f32.mrf.mxu0
        %v1442 = vadd.f32 %v1353, %v1441
        %1443 = vmatmul.bf16.gmra.mxu0 %v995
        %v1444 = vpop.f32.mrf.mxu0
        %v1445 = vadd.f32 %v1356, %v1444
        %v1446 = vpop.f32.mrf.mxu0
        %v1447 = vadd.f32 %v1358, %v1446
        %1448 = vmatmul.bf16.gmra.mxu0 %v998
        %v1449 = vpop.f32.mrf.mxu0
        %v1450 = vadd.f32 %v1361, %v1449
        %v1451 = vpop.f32.mrf.mxu0
        %v1452 = vadd.f32 %v1363, %v1451
        %1453 = vmatmul.bf16.gmra.mxu0 %v1001
        %v1454 = vpop.f32.mrf.mxu0
        %v1455 = vadd.f32 %v1366, %v1454
        %v1456 = vpop.f32.mrf.mxu0
        %v1457 = vadd.f32 %v1368, %v1456
        %1458 = vmatmul.bf16.gmra.mxu0 %v1004
        %v1459 = vpop.f32.mrf.mxu0
        %v1460 = vadd.f32 %v1371, %v1459
        %v1461 = vpop.f32.mrf.mxu0
        %v1462 = vadd.f32 %v1373, %v1461
        %1463 = vmatmul.bf16.gmra.mxu0 %v1007
        %v1464 = vpop.f32.mrf.mxu0
        %v1465 = vadd.f32 %v1376, %v1464
        %v1466 = vpop.f32.mrf.mxu0
        %v1467 = vadd.f32 %v1378, %v1466
        %1468 = vmatmul.bf16.gmra.mxu0 %v1010
        %v1469 = vpop.f32.mrf.mxu0
        %v1470 = vadd.f32 %v1381, %v1469
        %v1471 = vpop.f32.mrf.mxu0
        %v1472 = vadd.f32 %v1383, %v1471
        %1473 = vdwg.mxu0
        %v1474 = vmax.f32 %v1395, 0.0
        %v1475 = vmax.f32 %v1397, 0.0
        %v1476 = vmax.f32 %v1400, 0.0
        %v1477 = vmax.f32 %v1402, 0.0
        %v1478 = vmax.f32 %v1405, 0.0
        %v1479 = vmax.f32 %v1407, 0.0
        %v1480 = vmax.f32 %v1410, 0.0
        %v1481 = vmax.f32 %v1412, 0.0
        %v1482 = vmax.f32 %v1415, 0.0
        %v1483 = vmax.f32 %v1417, 0.0
        %v1484 = vmax.f32 %v1420, 0.0
        %v1485 = vmax.f32 %v1422, 0.0
        %v1486 = vmax.f32 %v1425, 0.0
        %v1487 = vmax.f32 %v1427, 0.0
        %v1488 = vmax.f32 %v1430, 0.0
        %v1489 = vmax.f32 %v1432, 0.0
        %v1490 = vmax.f32 %v1435, 0.0
        %v1491 = vmax.f32 %v1437, 0.0
        %v1492 = vmax.f32 %v1440, 0.0
        %v1493 = vmax.f32 %v1442, 0.0
        %v1494 = vmax.f32 %v1445, 0.0
        %v1495 = vmax.f32 %v1447, 0.0
        %v1496 = vmax.f32 %v1450, 0.0
        %v1497 = vmax.f32 %v1452, 0.0
        %v1498 = vmax.f32 %v1455, 0.0
        %v1499 = vmax.f32 %v1457, 0.0
        %v1500 = vmax.f32 %v1460, 0.0
        %v1501 = vmax.f32 %v1462, 0.0
        %v1502 = vmax.f32 %v1465, 0.0
        %v1503 = vmax.f32 %v1467, 0.0
        %v1504 = vmax.f32 %v1470, 0.0
        %v1505 = vmax.f32 %v1472, 0.0
        %v1506 = vrot.slane %v1474, 7
        %v1507 = vrot.slane %v1475, 7
        %v1508 = vrot.slane %v1476, 7
        %v1509 = vrot.slane %v1477, 7
        %v1510 = vrot.slane %v1478, 7
        %v1511 = vrot.slane %v1479, 7
        %v1512 = vrot.slane %v1480, 7
        %v1513 = vrot.slane %v1481, 7
        %v1514 = vrot.slane %v1482, 7
        %v1515 = vrot.slane %v1483, 7
        %v1516 = vrot.slane %v1484, 7
        %v1517 = vrot.slane %v1485, 7
        %v1518 = vrot.slane %v1486, 7
        %v1519 = vrot.slane %v1487, 7
        %v1520 = vrot.slane %v1488, 7
        %v1521 = vrot.slane %v1489, 7
        %v1522 = vrot.slane %v1490, 7
        %v1523 = vrot.slane %v1491, 7
        %v1524 = vrot.slane %v1492, 7
        %v1525 = vrot.slane %v1493, 7
        %v1526 = vrot.slane %v1494, 7
        %v1527 = vrot.slane %v1495, 7
        %v1528 = vrot.slane %v1496, 7
        %v1529 = vrot.slane %v1497, 7
        %v1530 = vrot.slane %v1498, 7
        %v1531 = vrot.slane %v1499, 7
        %v1532 = vrot.slane %v1500, 7
        %v1533 = vrot.slane %v1501, 7
        %v1534 = vrot.slane %v1502, 7
        %v1535 = vrot.slane %v1503, 7
        %v1536 = vrot.slane %v1504, 7
        %v1537 = vrot.slane %v1505, 7
        %vm1538 = vcmp.lt.s32.totalorder %v452, 1
        %v1539 = vsel %vm1538, %v1536, %v1537
        %v1540 = vsel %vm1538, %v1535, %v1536
        %v1541 = vsel %vm1538, %v1534, %v1535
        %v1542 = vsel %vm1538, %v1533, %v1534
        %v1543 = vsel %vm1538, %v1532, %v1533
        %v1544 = vsel %vm1538, %v1531, %v1532
        %v1545 = vsel %vm1538, %v1530, %v1531
        %v1546 = vsel %vm1538, %v1529, %v1530
        %v1547 = vsel %vm1538, %v1528, %v1529
        %v1548 = vsel %vm1538, %v1527, %v1528
        %v1549 = vsel %vm1538, %v1526, %v1527
        %v1550 = vsel %vm1538, %v1525, %v1526
        %v1551 = vsel %vm1538, %v1524, %v1525
        %v1552 = vsel %vm1538, %v1523, %v1524
        %v1553 = vsel %vm1538, %v1522, %v1523
        %v1554 = vsel %vm1538, %v1521, %v1522
        %v1555 = vsel %vm1538, %v1520, %v1521
        %v1556 = vsel %vm1538, %v1519, %v1520
        %v1557 = vsel %vm1538, %v1518, %v1519
        %v1558 = vsel %vm1538, %v1517, %v1518
        %v1559 = vsel %vm1538, %v1516, %v1517
        %v1560 = vsel %vm1538, %v1515, %v1516
        %v1561 = vsel %vm1538, %v1514, %v1515
        %v1562 = vsel %vm1538, %v1513, %v1514
        %v1563 = vsel %vm1538, %v1512, %v1513
        %v1564 = vsel %vm1538, %v1511, %v1512
        %v1565 = vsel %vm1538, %v1510, %v1511
        %v1566 = vsel %vm1538, %v1509, %v1510
        %v1567 = vsel %vm1538, %v1508, %v1509
        %v1568 = vsel %vm1538, %v1507, %v1508
        %v1569 = vsel %vm1538, %v1506, %v1507
        %v1570 = vsel %vm1538, %v1537, %v1506
        %v1571 = vadd.s32 %v484, 4294967295
        %v1572 = vadd.s32 %v485, 4294967295
        %v1573 = vadd.s32 %v486, 4294967295
        %v1574 = vadd.s32 %v487, 4294967295
        %v1575 = vadd.s32 %v488, 4294967295
        %v1576 = vadd.s32 %v489, 4294967295
        %v1577 = vadd.s32 %v490, 4294967295
        %v1578 = vadd.s32 %v491, 4294967295
        %v1579 = vadd.s32 %v492, 4294967295
        %v1580 = vadd.s32 %v493, 4294967295
        %v1581 = vadd.s32 %v494, 4294967295
        %v1582 = vadd.s32 %v495, 4294967295
        %v1583 = vadd.s32 %v496, 4294967295
        %v1584 = vadd.s32 %v497, 4294967295
        %v1585 = vadd.s32 %v498, 4294967295
        %v1586 = vadd.s32 %v499, 4294967295
        %v1587 = vadd.s32 %v500, 4294967295
        %v1588 = vadd.s32 %v501, 4294967295
        %v1589 = vadd.s32 %v502, 4294967295
        %v1590 = vadd.s32 %v503, 4294967295
        %v1591 = vadd.s32 %v504, 4294967295
        %v1592 = vadd.s32 %v505, 4294967295
        %v1593 = vadd.s32 %v506, 4294967295
        %v1594 = vadd.s32 %v507, 4294967295
        %v1595 = vadd.s32 %v508, 4294967295
        %v1596 = vadd.s32 %v509, 4294967295
        %v1597 = vadd.s32 %v510, 4294967295
        %v1598 = vadd.s32 %v511, 4294967295
        %v1599 = vadd.s32 %v512, 4294967295
        %v1600 = vadd.s32 %v513, 4294967295
        %v1601 = vadd.s32 %v514, 4294967295
        %v1602 = vadd.s32 %v515, 4294967295
        %vm1603 = vcmp.ge.s32.totalorder %v1571, 0
        %vm1604 = vcmp.ge.s32.totalorder %v1572, 0
        %vm1605 = vcmp.ge.s32.totalorder %v1573, 0
        %vm1606 = vcmp.ge.s32.totalorder %v1574, 0
        %vm1607 = vcmp.ge.s32.totalorder %v1575, 0
        %vm1608 = vcmp.ge.s32.totalorder %v1576, 0
        %vm1609 = vcmp.ge.s32.totalorder %v1577, 0
        %vm1610 = vcmp.ge.s32.totalorder %v1578, 0
        %vm1611 = vcmp.ge.s32.totalorder %v1579, 0
        %vm1612 = vcmp.ge.s32.totalorder %v1580, 0
        %vm1613 = vcmp.ge.s32.totalorder %v1581, 0
        %vm1614 = vcmp.ge.s32.totalorder %v1582, 0
        %vm1615 = vcmp.ge.s32.totalorder %v1583, 0
        %vm1616 = vcmp.ge.s32.totalorder %v1584, 0
        %vm1617 = vcmp.ge.s32.totalorder %v1585, 0
        %vm1618 = vcmp.ge.s32.totalorder %v1586, 0
        %vm1619 = vcmp.ge.s32.totalorder %v1587, 0
        %vm1620 = vcmp.ge.s32.totalorder %v1588, 0
        %vm1621 = vcmp.ge.s32.totalorder %v1589, 0
        %vm1622 = vcmp.ge.s32.totalorder %v1590, 0
        %vm1623 = vcmp.ge.s32.totalorder %v1591, 0
        %vm1624 = vcmp.ge.s32.totalorder %v1592, 0
        %vm1625 = vcmp.ge.s32.totalorder %v1593, 0
        %vm1626 = vcmp.ge.s32.totalorder %v1594, 0
        %vm1627 = vcmp.ge.s32.totalorder %v1595, 0
        %vm1628 = vcmp.ge.s32.totalorder %v1596, 0
        %vm1629 = vcmp.ge.s32.totalorder %v1597, 0
        %vm1630 = vcmp.ge.s32.totalorder %v1598, 0
        %vm1631 = vcmp.ge.s32.totalorder %v1599, 0
        %vm1632 = vcmp.ge.s32.totalorder %v1600, 0
        %vm1633 = vcmp.ge.s32.totalorder %v1601, 0
        %vm1634 = vcmp.ge.s32.totalorder %v1602, 0
        %vm1635 = vcmp.lt.s32.totalorder %v1571, 16
        %vm1636 = vcmp.lt.s32.totalorder %v1572, 16
        %vm1637 = vcmp.lt.s32.totalorder %v1573, 16
        %vm1638 = vcmp.lt.s32.totalorder %v1574, 16
        %vm1639 = vcmp.lt.s32.totalorder %v1575, 16
        %vm1640 = vcmp.lt.s32.totalorder %v1576, 16
        %vm1641 = vcmp.lt.s32.totalorder %v1577, 16
        %vm1642 = vcmp.lt.s32.totalorder %v1578, 16
        %vm1643 = vcmp.lt.s32.totalorder %v1579, 16
        %vm1644 = vcmp.lt.s32.totalorder %v1580, 16
        %vm1645 = vcmp.lt.s32.totalorder %v1581, 16
        %vm1646 = vcmp.lt.s32.totalorder %v1582, 16
        %vm1647 = vcmp.lt.s32.totalorder %v1583, 16
        %vm1648 = vcmp.lt.s32.totalorder %v1584, 16
        %vm1649 = vcmp.lt.s32.totalorder %v1585, 16
        %vm1650 = vcmp.lt.s32.totalorder %v1586, 16
        %vm1651 = vcmp.lt.s32.totalorder %v1587, 16
        %vm1652 = vcmp.lt.s32.totalorder %v1588, 16
        %vm1653 = vcmp.lt.s32.totalorder %v1589, 16
        %vm1654 = vcmp.lt.s32.totalorder %v1590, 16
        %vm1655 = vcmp.lt.s32.totalorder %v1591, 16
        %vm1656 = vcmp.lt.s32.totalorder %v1592, 16
        %vm1657 = vcmp.lt.s32.totalorder %v1593, 16
        %vm1658 = vcmp.lt.s32.totalorder %v1594, 16
        %vm1659 = vcmp.lt.s32.totalorder %v1595, 16
        %vm1660 = vcmp.lt.s32.totalorder %v1596, 16
        %vm1661 = vcmp.lt.s32.totalorder %v1597, 16
        %vm1662 = vcmp.lt.s32.totalorder %v1598, 16
        %vm1663 = vcmp.lt.s32.totalorder %v1599, 16
        %vm1664 = vcmp.lt.s32.totalorder %v1600, 16
        %vm1665 = vcmp.lt.s32.totalorder %v1601, 16
        %vm1666 = vcmp.lt.s32.totalorder %v1602, 16
        %vm1667 = vmand %vm1603, %vm1635
        %vm1668 = vmand %vm1604, %vm1636
        %vm1669 = vmand %vm1605, %vm1637
        %vm1670 = vmand %vm1606, %vm1638
        %vm1671 = vmand %vm1607, %vm1639
        %vm1672 = vmand %vm1608, %vm1640
        %vm1673 = vmand %vm1609, %vm1641
        %vm1674 = vmand %vm1610, %vm1642
        %vm1675 = vmand %vm1611, %vm1643
        %vm1676 = vmand %vm1612, %vm1644
        %vm1677 = vmand %vm1613, %vm1645
        %vm1678 = vmand %vm1614, %vm1646
        %vm1679 = vmand %vm1615, %vm1647
        %vm1680 = vmand %vm1616, %vm1648
        %vm1681 = vmand %vm1617, %vm1649
        %vm1682 = vmand %vm1618, %vm1650
        %vm1683 = vmand %vm1619, %vm1651
        %vm1684 = vmand %vm1620, %vm1652
        %vm1685 = vmand %vm1621, %vm1653
        %vm1686 = vmand %vm1622, %vm1654
        %vm1687 = vmand %vm1623, %vm1655
        %vm1688 = vmand %vm1624, %vm1656
        %vm1689 = vmand %vm1625, %vm1657
        %vm1690 = vmand %vm1626, %vm1658
        %vm1691 = vmand %vm1627, %vm1659
        %vm1692 = vmand %vm1628, %vm1660
        %vm1693 = vmand %vm1629, %vm1661
        %vm1694 = vmand %vm1630, %vm1662
        %vm1695 = vmand %vm1631, %vm1663
        %vm1696 = vmand %vm1632, %vm1664
        %vm1697 = vmand %vm1633, %vm1665
        %vm1698 = vmand %vm1634, %vm1666
        %v1699 = vsel %vm1667, 1, 0
        %v1700 = vsel %vm1668, 1, 0
        %v1701 = vsel %vm1669, 1, 0
        %v1702 = vsel %vm1670, 1, 0
        %v1703 = vsel %vm1671, 1, 0
        %v1704 = vsel %vm1672, 1, 0
        %v1705 = vsel %vm1673, 1, 0
        %v1706 = vsel %vm1674, 1, 0
        %v1707 = vsel %vm1675, 1, 0
        %v1708 = vsel %vm1676, 1, 0
        %v1709 = vsel %vm1677, 1, 0
        %v1710 = vsel %vm1678, 1, 0
        %v1711 = vsel %vm1679, 1, 0
        %v1712 = vsel %vm1680, 1, 0
        %v1713 = vsel %vm1681, 1, 0
        %v1714 = vsel %vm1682, 1, 0
        %v1715 = vsel %vm1683, 1, 0
        %v1716 = vsel %vm1684, 1, 0
        %v1717 = vsel %vm1685, 1, 0
        %v1718 = vsel %vm1686, 1, 0
        %v1719 = vsel %vm1687, 1, 0
        %v1720 = vsel %vm1688, 1, 0
        %v1721 = vsel %vm1689, 1, 0
        %v1722 = vsel %vm1690, 1, 0
        %v1723 = vsel %vm1691, 1, 0
        %v1724 = vsel %vm1692, 1, 0
        %v1725 = vsel %vm1693, 1, 0
        %v1726 = vsel %vm1694, 1, 0
        %v1727 = vsel %vm1695, 1, 0
        %v1728 = vsel %vm1696, 1, 0
        %v1729 = vsel %vm1697, 1, 0
        %v1730 = vsel %vm1698, 1, 0
        %vm1731 = vcmp.eq.s32.totalorder %v1699, 1
        %vm1732 = vcmp.eq.s32.totalorder %v1700, 1
        %vm1733 = vcmp.eq.s32.totalorder %v1701, 1
        %vm1734 = vcmp.eq.s32.totalorder %v1702, 1
        %vm1735 = vcmp.eq.s32.totalorder %v1703, 1
        %vm1736 = vcmp.eq.s32.totalorder %v1704, 1
        %vm1737 = vcmp.eq.s32.totalorder %v1705, 1
        %vm1738 = vcmp.eq.s32.totalorder %v1706, 1
        %vm1739 = vcmp.eq.s32.totalorder %v1707, 1
        %vm1740 = vcmp.eq.s32.totalorder %v1708, 1
        %vm1741 = vcmp.eq.s32.totalorder %v1709, 1
        %vm1742 = vcmp.eq.s32.totalorder %v1710, 1
        %vm1743 = vcmp.eq.s32.totalorder %v1711, 1
        %vm1744 = vcmp.eq.s32.totalorder %v1712, 1
        %vm1745 = vcmp.eq.s32.totalorder %v1713, 1
        %vm1746 = vcmp.eq.s32.totalorder %v1714, 1
        %vm1747 = vcmp.eq.s32.totalorder %v1715, 1
        %vm1748 = vcmp.eq.s32.totalorder %v1716, 1
        %vm1749 = vcmp.eq.s32.totalorder %v1717, 1
        %vm1750 = vcmp.eq.s32.totalorder %v1718, 1
        %vm1751 = vcmp.eq.s32.totalorder %v1719, 1
        %vm1752 = vcmp.eq.s32.totalorder %v1720, 1
        %vm1753 = vcmp.eq.s32.totalorder %v1721, 1
        %vm1754 = vcmp.eq.s32.totalorder %v1722, 1
        %vm1755 = vcmp.eq.s32.totalorder %v1723, 1
        %vm1756 = vcmp.eq.s32.totalorder %v1724, 1
        %vm1757 = vcmp.eq.s32.totalorder %v1725, 1
        %vm1758 = vcmp.eq.s32.totalorder %v1726, 1
        %vm1759 = vcmp.eq.s32.totalorder %v1727, 1
        %vm1760 = vcmp.eq.s32.totalorder %v1728, 1
        %vm1761 = vcmp.eq.s32.totalorder %v1729, 1
        %vm1762 = vcmp.eq.s32.totalorder %v1730, 1
        %v1763 = vsel %vm1731, %v1570, 0.0
        %v1764 = vsel %vm1732, %v1569, 0.0
        %v1765 = vsel %vm1733, %v1568, 0.0
        %v1766 = vsel %vm1734, %v1567, 0.0
        %v1767 = vsel %vm1735, %v1566, 0.0
        %v1768 = vsel %vm1736, %v1565, 0.0
        %v1769 = vsel %vm1737, %v1564, 0.0
        %v1770 = vsel %vm1738, %v1563, 0.0
        %v1771 = vsel %vm1739, %v1562, 0.0
        %v1772 = vsel %vm1740, %v1561, 0.0
        %v1773 = vsel %vm1741, %v1560, 0.0
        %v1774 = vsel %vm1742, %v1559, 0.0
        %v1775 = vsel %vm1743, %v1558, 0.0
        %v1776 = vsel %vm1744, %v1557, 0.0
        %v1777 = vsel %vm1745, %v1556, 0.0
        %v1778 = vsel %vm1746, %v1555, 0.0
        %v1779 = vsel %vm1747, %v1554, 0.0
        %v1780 = vsel %vm1748, %v1553, 0.0
        %v1781 = vsel %vm1749, %v1552, 0.0
        %v1782 = vsel %vm1750, %v1551, 0.0
        %v1783 = vsel %vm1751, %v1550, 0.0
        %v1784 = vsel %vm1752, %v1549, 0.0
        %v1785 = vsel %vm1753, %v1548, 0.0
        %v1786 = vsel %vm1754, %v1547, 0.0
        %v1787 = vsel %vm1755, %v1546, 0.0
        %v1788 = vsel %vm1756, %v1545, 0.0
        %v1789 = vsel %vm1757, %v1544, 0.0
        %v1790 = vsel %vm1758, %v1543, 0.0
        %v1791 = vsel %vm1759, %v1542, 0.0
        %v1792 = vsel %vm1760, %v1541, 0.0
        %v1793 = vsel %vm1761, %v1540, 0.0
        %v1794 = vsel %vm1762, %v1539, 0.0
        %v1795 = vrot.slane %v1474, 1
        %v1796 = vrot.slane %v1475, 1
        %v1797 = vrot.slane %v1476, 1
        %v1798 = vrot.slane %v1477, 1
        %v1799 = vrot.slane %v1478, 1
        %v1800 = vrot.slane %v1479, 1
        %v1801 = vrot.slane %v1480, 1
        %v1802 = vrot.slane %v1481, 1
        %v1803 = vrot.slane %v1482, 1
        %v1804 = vrot.slane %v1483, 1
        %v1805 = vrot.slane %v1484, 1
        %v1806 = vrot.slane %v1485, 1
        %v1807 = vrot.slane %v1486, 1
        %v1808 = vrot.slane %v1487, 1
        %v1809 = vrot.slane %v1488, 1
        %v1810 = vrot.slane %v1489, 1
        %v1811 = vrot.slane %v1490, 1
        %v1812 = vrot.slane %v1491, 1
        %v1813 = vrot.slane %v1492, 1
        %v1814 = vrot.slane %v1493, 1
        %v1815 = vrot.slane %v1494, 1
        %v1816 = vrot.slane %v1495, 1
        %v1817 = vrot.slane %v1496, 1
        %v1818 = vrot.slane %v1497, 1
        %v1819 = vrot.slane %v1498, 1
        %v1820 = vrot.slane %v1499, 1
        %v1821 = vrot.slane %v1500, 1
        %v1822 = vrot.slane %v1501, 1
        %v1823 = vrot.slane %v1502, 1
        %v1824 = vrot.slane %v1503, 1
        %v1825 = vrot.slane %v1504, 1
        %v1826 = vrot.slane %v1505, 1
        %vm1827 = vcmp.lt.s32.totalorder %v452, 7
        %v1828 = vsel %vm1827, %v1825, %v1826
        %v1829 = vsel %vm1827, %v1824, %v1825
        %v1830 = vsel %vm1827, %v1823, %v1824
        %v1831 = vsel %vm1827, %v1822, %v1823
        %v1832 = vsel %vm1827, %v1821, %v1822
        %v1833 = vsel %vm1827, %v1820, %v1821
        %v1834 = vsel %vm1827, %v1819, %v1820
        %v1835 = vsel %vm1827, %v1818, %v1819
        %v1836 = vsel %vm1827, %v1817, %v1818
        %v1837 = vsel %vm1827, %v1816, %v1817
        %v1838 = vsel %vm1827, %v1815, %v1816
        %v1839 = vsel %vm1827, %v1814, %v1815
        %v1840 = vsel %vm1827, %v1813, %v1814
        %v1841 = vsel %vm1827, %v1812, %v1813
        %v1842 = vsel %vm1827, %v1811, %v1812
        %v1843 = vsel %vm1827, %v1810, %v1811
        %v1844 = vsel %vm1827, %v1809, %v1810
        %v1845 = vsel %vm1827, %v1808, %v1809
        %v1846 = vsel %vm1827, %v1807, %v1808
        %v1847 = vsel %vm1827, %v1806, %v1807
        %v1848 = vsel %vm1827, %v1805, %v1806
        %v1849 = vsel %vm1827, %v1804, %v1805
        %v1850 = vsel %vm1827, %v1803, %v1804
        %v1851 = vsel %vm1827, %v1802, %v1803
        %v1852 = vsel %vm1827, %v1801, %v1802
        %v1853 = vsel %vm1827, %v1800, %v1801
        %v1854 = vsel %vm1827, %v1799, %v1800
        %v1855 = vsel %vm1827, %v1798, %v1799
        %v1856 = vsel %vm1827, %v1797, %v1798
        %v1857 = vsel %vm1827, %v1796, %v1797
        %v1858 = vsel %vm1827, %v1795, %v1796
        %v1859 = vsel %vm1827, %v1826, %v1795
        %v1860 = vadd.s32 %v484, 1
        %v1861 = vadd.s32 %v485, 1
        %v1862 = vadd.s32 %v486, 1
        %v1863 = vadd.s32 %v487, 1
        %v1864 = vadd.s32 %v488, 1
        %v1865 = vadd.s32 %v489, 1
        %v1866 = vadd.s32 %v490, 1
        %v1867 = vadd.s32 %v491, 1
        %v1868 = vadd.s32 %v492, 1
        %v1869 = vadd.s32 %v493, 1
        %v1870 = vadd.s32 %v494, 1
        %v1871 = vadd.s32 %v495, 1
        %v1872 = vadd.s32 %v496, 1
        %v1873 = vadd.s32 %v497, 1
        %v1874 = vadd.s32 %v498, 1
        %v1875 = vadd.s32 %v499, 1
        %v1876 = vadd.s32 %v500, 1
        %v1877 = vadd.s32 %v501, 1
        %v1878 = vadd.s32 %v502, 1
        %v1879 = vadd.s32 %v503, 1
        %v1880 = vadd.s32 %v504, 1
        %v1881 = vadd.s32 %v505, 1
        %v1882 = vadd.s32 %v506, 1
        %v1883 = vadd.s32 %v507, 1
        %v1884 = vadd.s32 %v508, 1
        %v1885 = vadd.s32 %v509, 1
        %v1886 = vadd.s32 %v510, 1
        %v1887 = vadd.s32 %v511, 1
        %v1888 = vadd.s32 %v512, 1
        %v1889 = vadd.s32 %v513, 1
        %v1890 = vadd.s32 %v514, 1
        %v1891 = vadd.s32 %v515, 1
        %vm1892 = vcmp.ge.s32.totalorder %v1860, 0
        %vm1893 = vcmp.ge.s32.totalorder %v1861, 0
        %vm1894 = vcmp.ge.s32.totalorder %v1862, 0
        %vm1895 = vcmp.ge.s32.totalorder %v1863, 0
        %vm1896 = vcmp.ge.s32.totalorder %v1864, 0
        %vm1897 = vcmp.ge.s32.totalorder %v1865, 0
        %vm1898 = vcmp.ge.s32.totalorder %v1866, 0
        %vm1899 = vcmp.ge.s32.totalorder %v1867, 0
        %vm1900 = vcmp.ge.s32.totalorder %v1868, 0
        %vm1901 = vcmp.ge.s32.totalorder %v1869, 0
        %vm1902 = vcmp.ge.s32.totalorder %v1870, 0
        %vm1903 = vcmp.ge.s32.totalorder %v1871, 0
        %vm1904 = vcmp.ge.s32.totalorder %v1872, 0
        %vm1905 = vcmp.ge.s32.totalorder %v1873, 0
        %vm1906 = vcmp.ge.s32.totalorder %v1874, 0
        %vm1907 = vcmp.ge.s32.totalorder %v1875, 0
        %vm1908 = vcmp.ge.s32.totalorder %v1876, 0
        %vm1909 = vcmp.ge.s32.totalorder %v1877, 0
        %vm1910 = vcmp.ge.s32.totalorder %v1878, 0
        %vm1911 = vcmp.ge.s32.totalorder %v1879, 0
        %vm1912 = vcmp.ge.s32.totalorder %v1880, 0
        %vm1913 = vcmp.ge.s32.totalorder %v1881, 0
        %vm1914 = vcmp.ge.s32.totalorder %v1882, 0
        %vm1915 = vcmp.ge.s32.totalorder %v1883, 0
        %vm1916 = vcmp.ge.s32.totalorder %v1884, 0
        %vm1917 = vcmp.ge.s32.totalorder %v1885, 0
        %vm1918 = vcmp.ge.s32.totalorder %v1886, 0
        %vm1919 = vcmp.ge.s32.totalorder %v1887, 0
        %vm1920 = vcmp.ge.s32.totalorder %v1888, 0
        %vm1921 = vcmp.ge.s32.totalorder %v1889, 0
        %vm1922 = vcmp.ge.s32.totalorder %v1890, 0
        %vm1923 = vcmp.ge.s32.totalorder %v1891, 0
        %vm1924 = vcmp.lt.s32.totalorder %v1860, 16
        %vm1925 = vcmp.lt.s32.totalorder %v1861, 16
        %vm1926 = vcmp.lt.s32.totalorder %v1862, 16
        %vm1927 = vcmp.lt.s32.totalorder %v1863, 16
        %vm1928 = vcmp.lt.s32.totalorder %v1864, 16
        %vm1929 = vcmp.lt.s32.totalorder %v1865, 16
        %vm1930 = vcmp.lt.s32.totalorder %v1866, 16
        %vm1931 = vcmp.lt.s32.totalorder %v1867, 16
        %vm1932 = vcmp.lt.s32.totalorder %v1868, 16
        %vm1933 = vcmp.lt.s32.totalorder %v1869, 16
        %vm1934 = vcmp.lt.s32.totalorder %v1870, 16
        %vm1935 = vcmp.lt.s32.totalorder %v1871, 16
        %vm1936 = vcmp.lt.s32.totalorder %v1872, 16
        %vm1937 = vcmp.lt.s32.totalorder %v1873, 16
        %vm1938 = vcmp.lt.s32.totalorder %v1874, 16
        %vm1939 = vcmp.lt.s32.totalorder %v1875, 16
        %vm1940 = vcmp.lt.s32.totalorder %v1876, 16
        %vm1941 = vcmp.lt.s32.totalorder %v1877, 16
        %vm1942 = vcmp.lt.s32.totalorder %v1878, 16
        %vm1943 = vcmp.lt.s32.totalorder %v1879, 16
        %vm1944 = vcmp.lt.s32.totalorder %v1880, 16
        %vm1945 = vcmp.lt.s32.totalorder %v1881, 16
        %vm1946 = vcmp.lt.s32.totalorder %v1882, 16
        %vm1947 = vcmp.lt.s32.totalorder %v1883, 16
        %vm1948 = vcmp.lt.s32.totalorder %v1884, 16
        %vm1949 = vcmp.lt.s32.totalorder %v1885, 16
        %vm1950 = vcmp.lt.s32.totalorder %v1886, 16
        %vm1951 = vcmp.lt.s32.totalorder %v1887, 16
        %vm1952 = vcmp.lt.s32.totalorder %v1888, 16
        %vm1953 = vcmp.lt.s32.totalorder %v1889, 16
        %vm1954 = vcmp.lt.s32.totalorder %v1890, 16
        %vm1955 = vcmp.lt.s32.totalorder %v1891, 16
        %vm1956 = vmand %vm1892, %vm1924
        %vm1957 = vmand %vm1893, %vm1925
        %vm1958 = vmand %vm1894, %vm1926
        %vm1959 = vmand %vm1895, %vm1927
        %vm1960 = vmand %vm1896, %vm1928
        %vm1961 = vmand %vm1897, %vm1929
        %vm1962 = vmand %vm1898, %vm1930
        %vm1963 = vmand %vm1899, %vm1931
        %vm1964 = vmand %vm1900, %vm1932
        %vm1965 = vmand %vm1901, %vm1933
        %vm1966 = vmand %vm1902, %vm1934
        %vm1967 = vmand %vm1903, %vm1935
        %vm1968 = vmand %vm1904, %vm1936
        %vm1969 = vmand %vm1905, %vm1937
        %vm1970 = vmand %vm1906, %vm1938
        %vm1971 = vmand %vm1907, %vm1939
        %vm1972 = vmand %vm1908, %vm1940
        %vm1973 = vmand %vm1909, %vm1941
        %vm1974 = vmand %vm1910, %vm1942
        %vm1975 = vmand %vm1911, %vm1943
        %vm1976 = vmand %vm1912, %vm1944
        %vm1977 = vmand %vm1913, %vm1945
        %vm1978 = vmand %vm1914, %vm1946
        %vm1979 = vmand %vm1915, %vm1947
        %vm1980 = vmand %vm1916, %vm1948
        %vm1981 = vmand %vm1917, %vm1949
        %vm1982 = vmand %vm1918, %vm1950
        %vm1983 = vmand %vm1919, %vm1951
        %vm1984 = vmand %vm1920, %vm1952
        %vm1985 = vmand %vm1921, %vm1953
        %vm1986 = vmand %vm1922, %vm1954
        %vm1987 = vmand %vm1923, %vm1955
        %v1988 = vsel %vm1956, 1, 0
        %v1989 = vsel %vm1957, 1, 0
        %v1990 = vsel %vm1958, 1, 0
        %v1991 = vsel %vm1959, 1, 0
        %v1992 = vsel %vm1960, 1, 0
        %v1993 = vsel %vm1961, 1, 0
        %v1994 = vsel %vm1962, 1, 0
        %v1995 = vsel %vm1963, 1, 0
        %v1996 = vsel %vm1964, 1, 0
        %v1997 = vsel %vm1965, 1, 0
        %v1998 = vsel %vm1966, 1, 0
        %v1999 = vsel %vm1967, 1, 0
        %v2000 = vsel %vm1968, 1, 0
        %v2001 = vsel %vm1969, 1, 0
        %v2002 = vsel %vm1970, 1, 0
        %v2003 = vsel %vm1971, 1, 0
        %v2004 = vsel %vm1972, 1, 0
        %v2005 = vsel %vm1973, 1, 0
        %v2006 = vsel %vm1974, 1, 0
        %v2007 = vsel %vm1975, 1, 0
        %v2008 = vsel %vm1976, 1, 0
        %v2009 = vsel %vm1977, 1, 0
        %v2010 = vsel %vm1978, 1, 0
        %v2011 = vsel %vm1979, 1, 0
        %v2012 = vsel %vm1980, 1, 0
        %v2013 = vsel %vm1981, 1, 0
        %v2014 = vsel %vm1982, 1, 0
        %v2015 = vsel %vm1983, 1, 0
        %v2016 = vsel %vm1984, 1, 0
        %v2017 = vsel %vm1985, 1, 0
        %v2018 = vsel %vm1986, 1, 0
        %v2019 = vsel %vm1987, 1, 0
        %vm2020 = vcmp.eq.s32.totalorder %v1988, 1
        %vm2021 = vcmp.eq.s32.totalorder %v1989, 1
        %vm2022 = vcmp.eq.s32.totalorder %v1990, 1
        %vm2023 = vcmp.eq.s32.totalorder %v1991, 1
        %vm2024 = vcmp.eq.s32.totalorder %v1992, 1
        %vm2025 = vcmp.eq.s32.totalorder %v1993, 1
        %vm2026 = vcmp.eq.s32.totalorder %v1994, 1
        %vm2027 = vcmp.eq.s32.totalorder %v1995, 1
        %vm2028 = vcmp.eq.s32.totalorder %v1996, 1
        %vm2029 = vcmp.eq.s32.totalorder %v1997, 1
        %vm2030 = vcmp.eq.s32.totalorder %v1998, 1
        %vm2031 = vcmp.eq.s32.totalorder %v1999, 1
        %vm2032 = vcmp.eq.s32.totalorder %v2000, 1
        %vm2033 = vcmp.eq.s32.totalorder %v2001, 1
        %vm2034 = vcmp.eq.s32.totalorder %v2002, 1
        %vm2035 = vcmp.eq.s32.totalorder %v2003, 1
        %vm2036 = vcmp.eq.s32.totalorder %v2004, 1
        %vm2037 = vcmp.eq.s32.totalorder %v2005, 1
        %vm2038 = vcmp.eq.s32.totalorder %v2006, 1
        %vm2039 = vcmp.eq.s32.totalorder %v2007, 1
        %vm2040 = vcmp.eq.s32.totalorder %v2008, 1
        %vm2041 = vcmp.eq.s32.totalorder %v2009, 1
        %vm2042 = vcmp.eq.s32.totalorder %v2010, 1
        %vm2043 = vcmp.eq.s32.totalorder %v2011, 1
        %vm2044 = vcmp.eq.s32.totalorder %v2012, 1
        %vm2045 = vcmp.eq.s32.totalorder %v2013, 1
        %vm2046 = vcmp.eq.s32.totalorder %v2014, 1
        %vm2047 = vcmp.eq.s32.totalorder %v2015, 1
        %vm2048 = vcmp.eq.s32.totalorder %v2016, 1
        %vm2049 = vcmp.eq.s32.totalorder %v2017, 1
        %vm2050 = vcmp.eq.s32.totalorder %v2018, 1
        %vm2051 = vcmp.eq.s32.totalorder %v2019, 1
        %v2052 = vsel %vm2020, %v1858, 0.0
        %v2053 = vsel %vm2021, %v1857, 0.0
        %v2054 = vsel %vm2022, %v1856, 0.0
        %v2055 = vsel %vm2023, %v1855, 0.0
        %v2056 = vsel %vm2024, %v1854, 0.0
        %v2057 = vsel %vm2025, %v1853, 0.0
        %v2058 = vsel %vm2026, %v1852, 0.0
        %v2059 = vsel %vm2027, %v1851, 0.0
        %v2060 = vsel %vm2028, %v1850, 0.0
        %v2061 = vsel %vm2029, %v1849, 0.0
        %v2062 = vsel %vm2030, %v1848, 0.0
        %v2063 = vsel %vm2031, %v1847, 0.0
        %v2064 = vsel %vm2032, %v1846, 0.0
        %v2065 = vsel %vm2033, %v1845, 0.0
        %v2066 = vsel %vm2034, %v1844, 0.0
        %v2067 = vsel %vm2035, %v1843, 0.0
        %v2068 = vsel %vm2036, %v1842, 0.0
        %v2069 = vsel %vm2037, %v1841, 0.0
        %v2070 = vsel %vm2038, %v1840, 0.0
        %v2071 = vsel %vm2039, %v1839, 0.0
        %v2072 = vsel %vm2040, %v1838, 0.0
        %v2073 = vsel %vm2041, %v1837, 0.0
        %v2074 = vsel %vm2042, %v1836, 0.0
        %v2075 = vsel %vm2043, %v1835, 0.0
        %v2076 = vsel %vm2044, %v1834, 0.0
        %v2077 = vsel %vm2045, %v1833, 0.0
        %v2078 = vsel %vm2046, %v1832, 0.0
        %v2079 = vsel %vm2047, %v1831, 0.0
        %v2080 = vsel %vm2048, %v1830, 0.0
        %v2081 = vsel %vm2049, %v1829, 0.0
        %v2082 = vsel %vm2050, %v1828, 0.0
        %v2083 = vsel %vm2051, %v1859, 0.0
        %v2084 = vpack.c.bf16 %v1764, %v1763
        %v2085 = vpack.c.bf16 %v1475, %v1474
        %v2086 = vpack.c.bf16 %v2053, %v2052
        %v2087 = vpack.c.bf16 %v1766, %v1765
        %v2088 = vpack.c.bf16 %v1477, %v1476
        %v2089 = vpack.c.bf16 %v2055, %v2054
        %v2090 = vpack.c.bf16 %v1768, %v1767
        %v2091 = vpack.c.bf16 %v1479, %v1478
        %v2092 = vpack.c.bf16 %v2057, %v2056
        %v2093 = vpack.c.bf16 %v1770, %v1769
        %v2094 = vpack.c.bf16 %v1481, %v1480
        %v2095 = vpack.c.bf16 %v2059, %v2058
        %v2096 = vpack.c.bf16 %v1772, %v1771
        %v2097 = vpack.c.bf16 %v1483, %v1482
        %v2098 = vpack.c.bf16 %v2061, %v2060
        %v2099 = vpack.c.bf16 %v1774, %v1773
        %v2100 = vpack.c.bf16 %v1485, %v1484
        %v2101 = vpack.c.bf16 %v2063, %v2062
        %v2102 = vpack.c.bf16 %v1776, %v1775
        %v2103 = vpack.c.bf16 %v1487, %v1486
        %v2104 = vpack.c.bf16 %v2065, %v2064
        %v2105 = vpack.c.bf16 %v1778, %v1777
        %v2106 = vpack.c.bf16 %v1489, %v1488
        %v2107 = vpack.c.bf16 %v2067, %v2066
        %v2108 = vpack.c.bf16 %v1780, %v1779
        %v2109 = vpack.c.bf16 %v1491, %v1490
        %v2110 = vpack.c.bf16 %v2069, %v2068
        %v2111 = vpack.c.bf16 %v1782, %v1781
        %v2112 = vpack.c.bf16 %v1493, %v1492
        %v2113 = vpack.c.bf16 %v2071, %v2070
        %v2114 = vpack.c.bf16 %v1784, %v1783
        %v2115 = vpack.c.bf16 %v1495, %v1494
        %v2116 = vpack.c.bf16 %v2073, %v2072
        %v2117 = vpack.c.bf16 %v1786, %v1785
        %v2118 = vpack.c.bf16 %v1497, %v1496
        %v2119 = vpack.c.bf16 %v2075, %v2074
        %v2120 = vpack.c.bf16 %v1788, %v1787
        %v2121 = vpack.c.bf16 %v1499, %v1498
        %v2122 = vpack.c.bf16 %v2077, %v2076
        %v2123 = vpack.c.bf16 %v1790, %v1789
        %v2124 = vpack.c.bf16 %v1501, %v1500
        %v2125 = vpack.c.bf16 %v2079, %v2078
        %v2126 = vpack.c.bf16 %v1792, %v1791
        %v2127 = vpack.c.bf16 %v1503, %v1502
        %v2128 = vpack.c.bf16 %v2081, %v2080
        %v2129 = vpack.c.bf16 %v1794, %v1793
        %v2130 = vpack.c.bf16 %v1505, %v1504
        %v2131 = vpack.c.bf16 %v2083, %v2082
        %v2132 = vld [vmem:[#allocation7] sm:$0xf]
        %v2133 = vld [vmem:[#allocation7 + $0x4] sm:$0xf]
        %v2134 = vld [vmem:[#allocation7 + $0x8] sm:$0xf]
        %v2135 = vld [vmem:[#allocation7 + $0xc] sm:$0xf]
        %v2136 = vld [vmem:[#allocation7 + $0x10] sm:$0xf]
        %v2137 = vld [vmem:[#allocation7 + $0x14] sm:$0xf]
        %v2138 = vld [vmem:[#allocation7 + $0x18] sm:$0xf]
        %v2139 = vld [vmem:[#allocation7 + $0x1c] sm:$0xf]
        %v2140 = vld [vmem:[#allocation7 + $0x20] sm:$0xf]
        %v2141 = vld [vmem:[#allocation7 + $0x24] sm:$0xf]
        %v2142 = vld [vmem:[#allocation7 + $0x28] sm:$0xf]
        %v2143 = vld [vmem:[#allocation7 + $0x2c] sm:$0xf]
        %v2144 = vld [vmem:[#allocation7 + $0x30] sm:$0xf]
        %v2145 = vld [vmem:[#allocation7 + $0x34] sm:$0xf]
        %v2146 = vld [vmem:[#allocation7 + $0x38] sm:$0xf]
        %v2147 = vld [vmem:[#allocation7 + $0x3c] sm:$0xf]
        %v2148 = vld [vmem:[#allocation7 + $0x40] sm:$0xf]
        %v2149 = vld [vmem:[#allocation7 + $0x44] sm:$0xf]
        %v2150 = vld [vmem:[#allocation7 + $0x48] sm:$0xf]
        %v2151 = vld [vmem:[#allocation7 + $0x4c] sm:$0xf]
        %v2152 = vld [vmem:[#allocation7 + $0x50] sm:$0xf]
        %v2153 = vld [vmem:[#allocation7 + $0x54] sm:$0xf]
        %v2154 = vld [vmem:[#allocation7 + $0x58] sm:$0xf]
        %v2155 = vld [vmem:[#allocation7 + $0x5c] sm:$0xf]
        %v2156 = vld [vmem:[#allocation7 + $0x60] sm:$0xf]
        %v2157 = vld [vmem:[#allocation7 + $0x64] sm:$0xf]
        %v2158 = vld [vmem:[#allocation7 + $0x68] sm:$0xf]
        %v2159 = vld [vmem:[#allocation7 + $0x6c] sm:$0xf]
        %v2160 = vld [vmem:[#allocation7 + $0x70] sm:$0xf]
        %v2161 = vld [vmem:[#allocation7 + $0x74] sm:$0xf]
        %v2162 = vld [vmem:[#allocation7 + $0x78] sm:$0xf]
        %v2163 = vld [vmem:[#allocation7 + $0x7c] sm:$0xf]
        %v2164 = vld [vmem:[#allocation7 + $0x80] sm:$0xf]
        %v2165 = vld [vmem:[#allocation7 + $0x84] sm:$0xf]
        %v2166 = vld [vmem:[#allocation7 + $0x88] sm:$0xf]
        %v2167 = vld [vmem:[#allocation7 + $0x8c] sm:$0xf]
        %v2168 = vld [vmem:[#allocation7 + $0x90] sm:$0xf]
        %v2169 = vld [vmem:[#allocation7 + $0x94] sm:$0xf]
        %v2170 = vld [vmem:[#allocation7 + $0x98] sm:$0xf]
        %v2171 = vld [vmem:[#allocation7 + $0x9c] sm:$0xf]
        %v2172 = vld [vmem:[#allocation7 + $0xa0] sm:$0xf]
        %v2173 = vld [vmem:[#allocation7 + $0xa4] sm:$0xf]
        %v2174 = vld [vmem:[#allocation7 + $0xa8] sm:$0xf]
        %v2175 = vld [vmem:[#allocation7 + $0xac] sm:$0xf]
        %v2176 = vld [vmem:[#allocation7 + $0xb0] sm:$0xf]
        %v2177 = vld [vmem:[#allocation7 + $0xb4] sm:$0xf]
        %v2178 = vld [vmem:[#allocation7 + $0xb8] sm:$0xf]
        %v2179 = vld [vmem:[#allocation7 + $0xbc] sm:$0xf]
        %v2180 = vld [vmem:[%s4] sm:$0x1]
        %v2182 = vperm.slane %v2180, 0
        %v2232 = vunpack.c.l.b16 %v2132
        %v2233 = vunpack.c.l.b16 %v2133
        %v2234 = vunpack.c.l.b16 %v2134
        %v2235 = vunpack.c.l.b16 %v2135
        %v2236 = vunpack.c.l.b16 %v2136
        %v2237 = vunpack.c.l.b16 %v2137
        %v2238 = vunpack.c.l.b16 %v2138
        %v2239 = vunpack.c.l.b16 %v2139
        %v2240 = vunpack.c.l.b16 %v2140
        %v2241 = vunpack.c.l.b16 %v2141
        %v2242 = vunpack.c.l.b16 %v2142
        %v2243 = vunpack.c.l.b16 %v2143
        %v2244 = vunpack.c.l.b16 %v2144
        %v2245 = vunpack.c.l.b16 %v2145
        %v2246 = vunpack.c.l.b16 %v2146
        %v2247 = vunpack.c.l.b16 %v2147
        %v2248 = vunpack.c.l.b16 %v2148
        %v2249 = vunpack.c.l.b16 %v2149
        %v2250 = vunpack.c.l.b16 %v2150
        %v2251 = vunpack.c.l.b16 %v2151
        %v2252 = vunpack.c.l.b16 %v2152
        %v2253 = vunpack.c.l.b16 %v2153
        %v2254 = vunpack.c.l.b16 %v2154
        %v2255 = vunpack.c.l.b16 %v2155
        %v2256 = vunpack.c.l.b16 %v2156
        %v2257 = vunpack.c.l.b16 %v2157
        %v2258 = vunpack.c.l.b16 %v2158
        %v2259 = vunpack.c.l.b16 %v2159
        %v2260 = vunpack.c.l.b16 %v2160
        %v2261 = vunpack.c.l.b16 %v2161
        %v2262 = vunpack.c.l.b16 %v2162
        %v2263 = vunpack.c.l.b16 %v2163
        %v2264 = vunpack.c.l.b16 %v2164
        %v2265 = vunpack.c.l.b16 %v2165
        %v2266 = vunpack.c.l.b16 %v2166
        %v2267 = vunpack.c.l.b16 %v2167
        %v2268 = vunpack.c.l.b16 %v2168
        %v2269 = vunpack.c.l.b16 %v2169
        %v2270 = vunpack.c.l.b16 %v2170
        %v2271 = vunpack.c.l.b16 %v2171
        %v2272 = vunpack.c.l.b16 %v2172
        %v2273 = vunpack.c.l.b16 %v2173
        %v2274 = vunpack.c.l.b16 %v2174
        %v2275 = vunpack.c.l.b16 %v2175
        %v2276 = vunpack.c.l.b16 %v2176
        %v2277 = vunpack.c.l.b16 %v2177
        %v2278 = vunpack.c.l.b16 %v2178
        %v2279 = vunpack.c.l.b16 %v2179
        %v2280 = vpack.c.b16 %v2233, %v2232
        %v2281 = vpack.c.b16 %v2235, %v2234
        %v2282 = vpack.c.b16 %v2237, %v2236
        %v2283 = vpack.c.b16 %v2239, %v2238
        %v2284 = vpack.c.b16 %v2241, %v2240
        %v2285 = vpack.c.b16 %v2243, %v2242
        %v2286 = vpack.c.b16 %v2245, %v2244
        %v2287 = vpack.c.b16 %v2247, %v2246
        %v2288 = vpack.c.b16 %v2249, %v2248
        %v2289 = vpack.c.b16 %v2251, %v2250
        %v2290 = vpack.c.b16 %v2253, %v2252
        %v2291 = vpack.c.b16 %v2255, %v2254
        %v2292 = vpack.c.b16 %v2257, %v2256
        %v2293 = vpack.c.b16 %v2259, %v2258
        %v2294 = vpack.c.b16 %v2261, %v2260
        %v2295 = vpack.c.b16 %v2263, %v2262
        %v2296 = vpack.c.b16 %v2265, %v2264
        %v2297 = vpack.c.b16 %v2267, %v2266
        %v2298 = vpack.c.b16 %v2269, %v2268
        %v2299 = vpack.c.b16 %v2271, %v2270
        %v2300 = vpack.c.b16 %v2273, %v2272
        %v2301 = vpack.c.b16 %v2275, %v2274
        %v2302 = vpack.c.b16 %v2277, %v2276
        %v2303 = vpack.c.b16 %v2279, %v2278
        %2328 = vmatpush.bf16.msra.mxu0 %v2287
        %2329 = vmatpush.bf16.msra.mxu0 %v2286
        %2330 = vmatpush.bf16.msra.mxu0 %v2285
        %2331 = vmatpush.bf16.msra.mxu0 %v2284
        %2332 = vmatpush.bf16.msra.mxu0 %v2283
        %2333 = vmatpush.bf16.msra.mxu0 %v2282
        %2334 = vmatpush.bf16.msra.mxu0 %v2281
        %2335 = vmatpush.bf16.msra.mxu0 %v2280
        %2336 = vmatmul.bf16.gmra.mxu0 %v2084
        %v2337 = vpop.f32.mrf.mxu0
        %v2338 = vadd.f32 %v2182, %v2337
        %v2339 = vpop.f32.mrf.mxu0
        %v2340 = vadd.f32 %v2182, %v2339
        %2341 = vmatmul.bf16.gmra.mxu0 %v2087
        %v2342 = vpop.f32.mrf.mxu0
        %v2343 = vadd.f32 %v2182, %v2342
        %v2344 = vpop.f32.mrf.mxu0
        %v2345 = vadd.f32 %v2182, %v2344
        %2346 = vmatmul.bf16.gmra.mxu0 %v2090
        %v2347 = vpop.f32.mrf.mxu0
        %v2348 = vadd.f32 %v2182, %v2347
        %v2349 = vpop.f32.mrf.mxu0
        %v2350 = vadd.f32 %v2182, %v2349
        %2351 = vmatmul.bf16.gmra.mxu0 %v2093
        %v2352 = vpop.f32.mrf.mxu0
        %v2353 = vadd.f32 %v2182, %v2352
        %v2354 = vpop.f32.mrf.mxu0
        %v2355 = vadd.f32 %v2182, %v2354
        %2356 = vmatmul.bf16.gmra.mxu0 %v2096
        %v2357 = vpop.f32.mrf.mxu0
        %v2358 = vadd.f32 %v2182, %v2357
        %v2359 = vpop.f32.mrf.mxu0
        %v2360 = vadd.f32 %v2182, %v2359
        %2361 = vmatmul.bf16.gmra.mxu0 %v2099
        %v2362 = vpop.f32.mrf.mxu0
        %v2363 = vadd.f32 %v2182, %v2362
        %v2364 = vpop.f32.mrf.mxu0
        %v2365 = vadd.f32 %v2182, %v2364
        %2366 = vmatmul.bf16.gmra.mxu0 %v2102
        %v2367 = vpop.f32.mrf.mxu0
        %v2368 = vadd.f32 %v2182, %v2367
        %v2369 = vpop.f32.mrf.mxu0
        %v2370 = vadd.f32 %v2182, %v2369
        %2371 = vmatmul.bf16.gmra.mxu0 %v2105
        %v2372 = vpop.f32.mrf.mxu0
        %v2373 = vadd.f32 %v2182, %v2372
        %v2374 = vpop.f32.mrf.mxu0
        %v2375 = vadd.f32 %v2182, %v2374
        %2376 = vmatmul.bf16.gmra.mxu0 %v2108
        %v2377 = vpop.f32.mrf.mxu0
        %v2378 = vadd.f32 %v2182, %v2377
        %v2379 = vpop.f32.mrf.mxu0
        %v2380 = vadd.f32 %v2182, %v2379
        %2381 = vmatmul.bf16.gmra.mxu0 %v2111
        %v2382 = vpop.f32.mrf.mxu0
        %v2383 = vadd.f32 %v2182, %v2382
        %v2384 = vpop.f32.mrf.mxu0
        %v2385 = vadd.f32 %v2182, %v2384
        %2386 = vmatmul.bf16.gmra.mxu0 %v2114
        %v2387 = vpop.f32.mrf.mxu0
        %v2388 = vadd.f32 %v2182, %v2387
        %v2389 = vpop.f32.mrf.mxu0
        %v2390 = vadd.f32 %v2182, %v2389
        %2391 = vmatmul.bf16.gmra.mxu0 %v2117
        %v2392 = vpop.f32.mrf.mxu0
        %v2393 = vadd.f32 %v2182, %v2392
        %v2394 = vpop.f32.mrf.mxu0
        %v2395 = vadd.f32 %v2182, %v2394
        %2396 = vmatmul.bf16.gmra.mxu0 %v2120
        %v2397 = vpop.f32.mrf.mxu0
        %v2398 = vadd.f32 %v2182, %v2397
        %v2399 = vpop.f32.mrf.mxu0
        %v2400 = vadd.f32 %v2182, %v2399
        %2401 = vmatmul.bf16.gmra.mxu0 %v2123
        %v2402 = vpop.f32.mrf.mxu0
        %v2403 = vadd.f32 %v2182, %v2402
        %v2404 = vpop.f32.mrf.mxu0
        %v2405 = vadd.f32 %v2182, %v2404
        %2406 = vmatmul.bf16.gmra.mxu0 %v2126
        %v2407 = vpop.f32.mrf.mxu0
        %v2408 = vadd.f32 %v2182, %v2407
        %v2409 = vpop.f32.mrf.mxu0
        %v2410 = vadd.f32 %v2182, %v2409
        %2411 = vmatmul.bf16.gmra.mxu0 %v2129
        %v2412 = vpop.f32.mrf.mxu0
        %v2413 = vadd.f32 %v2182, %v2412
        %v2414 = vpop.f32.mrf.mxu0
        %v2415 = vadd.f32 %v2182, %v2414
        %2416 = vdwg.mxu0
        %2417 = vmatpush.bf16.msra.mxu0 %v2295
        %2418 = vmatpush.bf16.msra.mxu0 %v2294
        %2419 = vmatpush.bf16.msra.mxu0 %v2293
        %2420 = vmatpush.bf16.msra.mxu0 %v2292
        %2421 = vmatpush.bf16.msra.mxu0 %v2291
        %2422 = vmatpush.bf16.msra.mxu0 %v2290
        %2423 = vmatpush.bf16.msra.mxu0 %v2289
        %2424 = vmatpush.bf16.msra.mxu0 %v2288
        %2425 = vmatmul.bf16.gmra.mxu0 %v2085
        %v2426 = vpop.f32.mrf.mxu0
        %v2427 = vadd.f32 %v2338, %v2426
        %v2428 = vpop.f32.mrf.mxu0
        %v2429 = vadd.f32 %v2340, %v2428
        %2430 = vmatmul.bf16.gmra.mxu0 %v2088
        %v2431 = vpop.f32.mrf.mxu0
        %v2432 = vadd.f32 %v2343, %v2431
        %v2433 = vpop.f32.mrf.mxu0
        %v2434 = vadd.f32 %v2345, %v2433
        %2435 = vmatmul.bf16.gmra.mxu0 %v2091
        %v2436 = vpop.f32.mrf.mxu0
        %v2437 = vadd.f32 %v2348, %v2436
        %v2438 = vpop.f32.mrf.mxu0
        %v2439 = vadd.f32 %v2350, %v2438
        %2440 = vmatmul.bf16.gmra.mxu0 %v2094
        %v2441 = vpop.f32.mrf.mxu0
        %v2442 = vadd.f32 %v2353, %v2441
        %v2443 = vpop.f32.mrf.mxu0
        %v2444 = vadd.f32 %v2355, %v2443
        %2445 = vmatmul.bf16.gmra.mxu0 %v2097
        %v2446 = vpop.f32.mrf.mxu0
        %v2447 = vadd.f32 %v2358, %v2446
        %v2448 = vpop.f32.mrf.mxu0
        %v2449 = vadd.f32 %v2360, %v2448
        %2450 = vmatmul.bf16.gmra.mxu0 %v2100
        %v2451 = vpop.f32.mrf.mxu0
        %v2452 = vadd.f32 %v2363, %v2451
        %v2453 = vpop.f32.mrf.mxu0
        %v2454 = vadd.f32 %v2365, %v2453
        %2455 = vmatmul.bf16.gmra.mxu0 %v2103
        %v2456 = vpop.f32.mrf.mxu0
        %v2457 = vadd.f32 %v2368, %v2456
        %v2458 = vpop.f32.mrf.mxu0
        %v2459 = vadd.f32 %v2370, %v2458
        %2460 = vmatmul.bf16.gmra.mxu0 %v2106
        %v2461 = vpop.f32.mrf.mxu0
        %v2462 = vadd.f32 %v2373, %v2461
        %v2463 = vpop.f32.mrf.mxu0
        %v2464 = vadd.f32 %v2375, %v2463
        %2465 = vmatmul.bf16.gmra.mxu0 %v2109
        %v2466 = vpop.f32.mrf.mxu0
        %v2467 = vadd.f32 %v2378, %v2466
        %v2468 = vpop.f32.mrf.mxu0
        %v2469 = vadd.f32 %v2380, %v2468
        %2470 = vmatmul.bf16.gmra.mxu0 %v2112
        %v2471 = vpop.f32.mrf.mxu0
        %v2472 = vadd.f32 %v2383, %v2471
        %v2473 = vpop.f32.mrf.mxu0
        %v2474 = vadd.f32 %v2385, %v2473
        %2475 = vmatmul.bf16.gmra.mxu0 %v2115
        %v2476 = vpop.f32.mrf.mxu0
        %v2477 = vadd.f32 %v2388, %v2476
        %v2478 = vpop.f32.mrf.mxu0
        %v2479 = vadd.f32 %v2390, %v2478
        %2480 = vmatmul.bf16.gmra.mxu0 %v2118
        %v2481 = vpop.f32.mrf.mxu0
        %v2482 = vadd.f32 %v2393, %v2481
        %v2483 = vpop.f32.mrf.mxu0
        %v2484 = vadd.f32 %v2395, %v2483
        %2485 = vmatmul.bf16.gmra.mxu0 %v2121
        %v2486 = vpop.f32.mrf.mxu0
        %v2487 = vadd.f32 %v2398, %v2486
        %v2488 = vpop.f32.mrf.mxu0
        %v2489 = vadd.f32 %v2400, %v2488
        %2490 = vmatmul.bf16.gmra.mxu0 %v2124
        %v2491 = vpop.f32.mrf.mxu0
        %v2492 = vadd.f32 %v2403, %v2491
        %v2493 = vpop.f32.mrf.mxu0
        %v2494 = vadd.f32 %v2405, %v2493
        %2495 = vmatmul.bf16.gmra.mxu0 %v2127
        %v2496 = vpop.f32.mrf.mxu0
        %v2497 = vadd.f32 %v2408, %v2496
        %v2498 = vpop.f32.mrf.mxu0
        %v2499 = vadd.f32 %v2410, %v2498
        %2500 = vmatmul.bf16.gmra.mxu0 %v2130
        %v2501 = vpop.f32.mrf.mxu0
        %v2502 = vadd.f32 %v2413, %v2501
        %v2503 = vpop.f32.mrf.mxu0
        %v2504 = vadd.f32 %v2415, %v2503
        %2505 = vdwg.mxu0
        %2506 = vmatpush.bf16.msra.mxu0 %v2303
        %2507 = vmatpush.bf16.msra.mxu0 %v2302
        %2508 = vmatpush.bf16.msra.mxu0 %v2301
        %2509 = vmatpush.bf16.msra.mxu0 %v2300
        %2510 = vmatpush.bf16.msra.mxu0 %v2299
        %2511 = vmatpush.bf16.msra.mxu0 %v2298
        %2512 = vmatpush.bf16.msra.mxu0 %v2297
        %2513 = vmatpush.bf16.msra.mxu0 %v2296
        %2514 = vmatmul.bf16.gmra.mxu0 %v2086
        %v2515 = vpop.f32.mrf.mxu0
        %v2516 = vadd.f32 %v2427, %v2515
        %v2517 = vpop.f32.mrf.mxu0
        %v2518 = vadd.f32 %v2429, %v2517
        %2519 = vmatmul.bf16.gmra.mxu0 %v2089
        %v2520 = vpop.f32.mrf.mxu0
        %v2521 = vadd.f32 %v2432, %v2520
        %v2522 = vpop.f32.mrf.mxu0
        %v2523 = vadd.f32 %v2434, %v2522
        %2524 = vmatmul.bf16.gmra.mxu0 %v2092
        %v2525 = vpop.f32.mrf.mxu0
        %v2526 = vadd.f32 %v2437, %v2525
        %v2527 = vpop.f32.mrf.mxu0
        %v2528 = vadd.f32 %v2439, %v2527
        %2529 = vmatmul.bf16.gmra.mxu0 %v2095
        %v2530 = vpop.f32.mrf.mxu0
        %v2531 = vadd.f32 %v2442, %v2530
        %v2532 = vpop.f32.mrf.mxu0
        %v2533 = vadd.f32 %v2444, %v2532
        %2534 = vmatmul.bf16.gmra.mxu0 %v2098
        %v2535 = vpop.f32.mrf.mxu0
        %v2536 = vadd.f32 %v2447, %v2535
        %v2537 = vpop.f32.mrf.mxu0
        %v2538 = vadd.f32 %v2449, %v2537
        %2539 = vmatmul.bf16.gmra.mxu0 %v2101
        %v2540 = vpop.f32.mrf.mxu0
        %v2541 = vadd.f32 %v2452, %v2540
        %v2542 = vpop.f32.mrf.mxu0
        %v2543 = vadd.f32 %v2454, %v2542
        %2544 = vmatmul.bf16.gmra.mxu0 %v2104
        %v2545 = vpop.f32.mrf.mxu0
        %v2546 = vadd.f32 %v2457, %v2545
        %v2547 = vpop.f32.mrf.mxu0
        %v2548 = vadd.f32 %v2459, %v2547
        %2549 = vmatmul.bf16.gmra.mxu0 %v2107
        %v2550 = vpop.f32.mrf.mxu0
        %v2551 = vadd.f32 %v2462, %v2550
        %v2552 = vpop.f32.mrf.mxu0
        %v2553 = vadd.f32 %v2464, %v2552
        %2554 = vmatmul.bf16.gmra.mxu0 %v2110
        %v2555 = vpop.f32.mrf.mxu0
        %v2556 = vadd.f32 %v2467, %v2555
        %v2557 = vpop.f32.mrf.mxu0
        %v2558 = vadd.f32 %v2469, %v2557
        %2559 = vmatmul.bf16.gmra.mxu0 %v2113
        %v2560 = vpop.f32.mrf.mxu0
        %v2561 = vadd.f32 %v2472, %v2560
        %v2562 = vpop.f32.mrf.mxu0
        %v2563 = vadd.f32 %v2474, %v2562
        %2564 = vmatmul.bf16.gmra.mxu0 %v2116
        %v2565 = vpop.f32.mrf.mxu0
        %v2566 = vadd.f32 %v2477, %v2565
        %v2567 = vpop.f32.mrf.mxu0
        %v2568 = vadd.f32 %v2479, %v2567
        %2569 = vmatmul.bf16.gmra.mxu0 %v2119
        %v2570 = vpop.f32.mrf.mxu0
        %v2571 = vadd.f32 %v2482, %v2570
        %v2572 = vpop.f32.mrf.mxu0
        %v2573 = vadd.f32 %v2484, %v2572
        %2574 = vmatmul.bf16.gmra.mxu0 %v2122
        %v2575 = vpop.f32.mrf.mxu0
        %v2576 = vadd.f32 %v2487, %v2575
        %v2577 = vpop.f32.mrf.mxu0
        %v2578 = vadd.f32 %v2489, %v2577
        %2579 = vmatmul.bf16.gmra.mxu0 %v2125
        %v2580 = vpop.f32.mrf.mxu0
        %v2581 = vadd.f32 %v2492, %v2580
        %v2582 = vpop.f32.mrf.mxu0
        %v2583 = vadd.f32 %v2494, %v2582
        %2584 = vmatmul.bf16.gmra.mxu0 %v2128
        %v2585 = vpop.f32.mrf.mxu0
        %v2586 = vadd.f32 %v2497, %v2585
        %v2587 = vpop.f32.mrf.mxu0
        %v2588 = vadd.f32 %v2499, %v2587
        %2589 = vmatmul.bf16.gmra.mxu0 %v2131
        %v2590 = vpop.f32.mrf.mxu0
        %v2591 = vadd.f32 %v2502, %v2590
        %v2592 = vpop.f32.mrf.mxu0
        %v2593 = vadd.f32 %v2504, %v2592
        %2594 = vdwg.mxu0
        %v2595 = vmax.f32 %v2516, 0.0
        %v2596 = vmax.f32 %v2518, 0.0
        %v2597 = vmax.f32 %v2521, 0.0
        %v2598 = vmax.f32 %v2523, 0.0
        %v2599 = vmax.f32 %v2526, 0.0
        %v2600 = vmax.f32 %v2528, 0.0
        %v2601 = vmax.f32 %v2531, 0.0
        %v2602 = vmax.f32 %v2533, 0.0
        %v2603 = vmax.f32 %v2536, 0.0
        %v2604 = vmax.f32 %v2538, 0.0
        %v2605 = vmax.f32 %v2541, 0.0
        %v2606 = vmax.f32 %v2543, 0.0
        %v2607 = vmax.f32 %v2546, 0.0
        %v2608 = vmax.f32 %v2548, 0.0
        %v2609 = vmax.f32 %v2551, 0.0
        %v2610 = vmax.f32 %v2553, 0.0
        %v2611 = vmax.f32 %v2556, 0.0
        %v2612 = vmax.f32 %v2558, 0.0
        %v2613 = vmax.f32 %v2561, 0.0
        %v2614 = vmax.f32 %v2563, 0.0
        %v2615 = vmax.f32 %v2566, 0.0
        %v2616 = vmax.f32 %v2568, 0.0
        %v2617 = vmax.f32 %v2571, 0.0
        %v2618 = vmax.f32 %v2573, 0.0
        %v2619 = vmax.f32 %v2576, 0.0
        %v2620 = vmax.f32 %v2578, 0.0
        %v2621 = vmax.f32 %v2581, 0.0
        %v2622 = vmax.f32 %v2583, 0.0
        %v2623 = vmax.f32 %v2586, 0.0
        %v2624 = vmax.f32 %v2588, 0.0
        %v2625 = vmax.f32 %v2591, 0.0
        %v2626 = vmax.f32 %v2593, 0.0
        %v2627 = vadd.s32 %v452, 4294967264
        %v2628 = vadd.s32 %v453, 4294967264
        %v2629 = vadd.s32 %v454, 4294967264
        %v2630 = vadd.s32 %v455, 4294967264
        %v2631 = vadd.s32 %v456, 4294967264
        %v2632 = vadd.s32 %v457, 4294967264
        %v2633 = vadd.s32 %v458, 4294967264
        %v2634 = vadd.s32 %v459, 4294967264
        %v2635 = vadd.s32 %v460, 4294967264
        %v2636 = vadd.s32 %v461, 4294967264
        %v2637 = vadd.s32 %v462, 4294967264
        %v2638 = vadd.s32 %v463, 4294967264
        %v2639 = vadd.s32 %v464, 4294967264
        %v2640 = vadd.s32 %v465, 4294967264
        %v2641 = vadd.s32 %v466, 4294967264
        %v2642 = vadd.s32 %v467, 4294967264
        %v2643 = vadd.s32 %v468, 4294967264
        %v2644 = vadd.s32 %v469, 4294967264
        %v2645 = vadd.s32 %v470, 4294967264
        %v2646 = vadd.s32 %v471, 4294967264
        %v2647 = vadd.s32 %v472, 4294967264
        %v2648 = vadd.s32 %v473, 4294967264
        %v2649 = vadd.s32 %v474, 4294967264
        %v2650 = vadd.s32 %v475, 4294967264
        %v2651 = vadd.s32 %v476, 4294967264
        %v2652 = vadd.s32 %v477, 4294967264
        %v2653 = vadd.s32 %v478, 4294967264
        %v2654 = vadd.s32 %v479, 4294967264
        %v2655 = vadd.s32 %v480, 4294967264
        %v2656 = vadd.s32 %v481, 4294967264
        %v2657 = vadd.s32 %v482, 4294967264
        %v2658 = vadd.s32 %v483, 4294967264
        %vm2659 = vcmp.ge.s32.totalorder %v2627, 0
        %vm2660 = vcmp.ge.s32.totalorder %v2628, 0
        %vm2661 = vcmp.ge.s32.totalorder %v2629, 0
        %vm2662 = vcmp.ge.s32.totalorder %v2630, 0
        %vm2663 = vcmp.ge.s32.totalorder %v2631, 0
        %vm2664 = vcmp.ge.s32.totalorder %v2632, 0
        %vm2665 = vcmp.ge.s32.totalorder %v2633, 0
        %vm2666 = vcmp.ge.s32.totalorder %v2634, 0
        %vm2667 = vcmp.ge.s32.totalorder %v2635, 0
        %vm2668 = vcmp.ge.s32.totalorder %v2636, 0
        %vm2669 = vcmp.ge.s32.totalorder %v2637, 0
        %vm2670 = vcmp.ge.s32.totalorder %v2638, 0
        %vm2671 = vcmp.ge.s32.totalorder %v2639, 0
        %vm2672 = vcmp.ge.s32.totalorder %v2640, 0
        %vm2673 = vcmp.ge.s32.totalorder %v2641, 0
        %vm2674 = vcmp.ge.s32.totalorder %v2642, 0
        %vm2675 = vcmp.ge.s32.totalorder %v2643, 0
        %vm2676 = vcmp.ge.s32.totalorder %v2644, 0
        %vm2677 = vcmp.ge.s32.totalorder %v2645, 0
        %vm2678 = vcmp.ge.s32.totalorder %v2646, 0
        %vm2679 = vcmp.ge.s32.totalorder %v2647, 0
        %vm2680 = vcmp.ge.s32.totalorder %v2648, 0
        %vm2681 = vcmp.ge.s32.totalorder %v2649, 0
        %vm2682 = vcmp.ge.s32.totalorder %v2650, 0
        %vm2683 = vcmp.ge.s32.totalorder %v2651, 0
        %vm2684 = vcmp.ge.s32.totalorder %v2652, 0
        %vm2685 = vcmp.ge.s32.totalorder %v2653, 0
        %vm2686 = vcmp.ge.s32.totalorder %v2654, 0
        %vm2687 = vcmp.ge.s32.totalorder %v2655, 0
        %vm2688 = vcmp.ge.s32.totalorder %v2656, 0
        %vm2689 = vcmp.ge.s32.totalorder %v2657, 0
        %vm2690 = vcmp.ge.s32.totalorder %v2658, 0
        %vm2691 = vcmp.lt.s32.totalorder %v2627, 256
        %vm2692 = vcmp.lt.s32.totalorder %v2628, 256
        %vm2693 = vcmp.lt.s32.totalorder %v2629, 256
        %vm2694 = vcmp.lt.s32.totalorder %v2630, 256
        %vm2695 = vcmp.lt.s32.totalorder %v2631, 256
        %vm2696 = vcmp.lt.s32.totalorder %v2632, 256
        %vm2697 = vcmp.lt.s32.totalorder %v2633, 256
        %vm2698 = vcmp.lt.s32.totalorder %v2634, 256
        %vm2699 = vcmp.lt.s32.totalorder %v2635, 256
        %vm2700 = vcmp.lt.s32.totalorder %v2636, 256
        %vm2701 = vcmp.lt.s32.totalorder %v2637, 256
        %vm2702 = vcmp.lt.s32.totalorder %v2638, 256
        %vm2703 = vcmp.lt.s32.totalorder %v2639, 256
        %vm2704 = vcmp.lt.s32.totalorder %v2640, 256
        %vm2705 = vcmp.lt.s32.totalorder %v2641, 256
        %vm2706 = vcmp.lt.s32.totalorder %v2642, 256
        %vm2707 = vcmp.lt.s32.totalorder %v2643, 256
        %vm2708 = vcmp.lt.s32.totalorder %v2644, 256
        %vm2709 = vcmp.lt.s32.totalorder %v2645, 256
        %vm2710 = vcmp.lt.s32.totalorder %v2646, 256
        %vm2711 = vcmp.lt.s32.totalorder %v2647, 256
        %vm2712 = vcmp.lt.s32.totalorder %v2648, 256
        %vm2713 = vcmp.lt.s32.totalorder %v2649, 256
        %vm2714 = vcmp.lt.s32.totalorder %v2650, 256
        %vm2715 = vcmp.lt.s32.totalorder %v2651, 256
        %vm2716 = vcmp.lt.s32.totalorder %v2652, 256
        %vm2717 = vcmp.lt.s32.totalorder %v2653, 256
        %vm2718 = vcmp.lt.s32.totalorder %v2654, 256
        %vm2719 = vcmp.lt.s32.totalorder %v2655, 256
        %vm2720 = vcmp.lt.s32.totalorder %v2656, 256
        %vm2721 = vcmp.lt.s32.totalorder %v2657, 256
        %vm2722 = vcmp.lt.s32.totalorder %v2658, 256
        %vm2723 = vmand %vm2659, %vm2691
        %vm2724 = vmand %vm2660, %vm2692
        %vm2725 = vmand %vm2661, %vm2693
        %vm2726 = vmand %vm2662, %vm2694
        %vm2727 = vmand %vm2663, %vm2695
        %vm2728 = vmand %vm2664, %vm2696
        %vm2729 = vmand %vm2665, %vm2697
        %vm2730 = vmand %vm2666, %vm2698
        %vm2731 = vmand %vm2667, %vm2699
        %vm2732 = vmand %vm2668, %vm2700
        %vm2733 = vmand %vm2669, %vm2701
        %vm2734 = vmand %vm2670, %vm2702
        %vm2735 = vmand %vm2671, %vm2703
        %vm2736 = vmand %vm2672, %vm2704
        %vm2737 = vmand %vm2673, %vm2705
        %vm2738 = vmand %vm2674, %vm2706
        %vm2739 = vmand %vm2675, %vm2707
        %vm2740 = vmand %vm2676, %vm2708
        %vm2741 = vmand %vm2677, %vm2709
        %vm2742 = vmand %vm2678, %vm2710
        %vm2743 = vmand %vm2679, %vm2711
        %vm2744 = vmand %vm2680, %vm2712
        %vm2745 = vmand %vm2681, %vm2713
        %vm2746 = vmand %vm2682, %vm2714
        %vm2747 = vmand %vm2683, %vm2715
        %vm2748 = vmand %vm2684, %vm2716
        %vm2749 = vmand %vm2685, %vm2717
        %vm2750 = vmand %vm2686, %vm2718
        %vm2751 = vmand %vm2687, %vm2719
        %vm2752 = vmand %vm2688, %vm2720
        %vm2753 = vmand %vm2689, %vm2721
        %vm2754 = vmand %vm2690, %vm2722
        %v2755 = vsel %vm2723, 1, 0
        %v2756 = vsel %vm2724, 1, 0
        %v2757 = vsel %vm2725, 1, 0
        %v2758 = vsel %vm2726, 1, 0
        %v2759 = vsel %vm2727, 1, 0
        %v2760 = vsel %vm2728, 1, 0
        %v2761 = vsel %vm2729, 1, 0
        %v2762 = vsel %vm2730, 1, 0
        %v2763 = vsel %vm2731, 1, 0
        %v2764 = vsel %vm2732, 1, 0
        %v2765 = vsel %vm2733, 1, 0
        %v2766 = vsel %vm2734, 1, 0
        %v2767 = vsel %vm2735, 1, 0
        %v2768 = vsel %vm2736, 1, 0
        %v2769 = vsel %vm2737, 1, 0
        %v2770 = vsel %vm2738, 1, 0
        %v2771 = vsel %vm2739, 1, 0
        %v2772 = vsel %vm2740, 1, 0
        %v2773 = vsel %vm2741, 1, 0
        %v2774 = vsel %vm2742, 1, 0
        %v2775 = vsel %vm2743, 1, 0
        %v2776 = vsel %vm2744, 1, 0
        %v2777 = vsel %vm2745, 1, 0
        %v2778 = vsel %vm2746, 1, 0
        %v2779 = vsel %vm2747, 1, 0
        %v2780 = vsel %vm2748, 1, 0
        %v2781 = vsel %vm2749, 1, 0
        %v2782 = vsel %vm2750, 1, 0
        %v2783 = vsel %vm2751, 1, 0
        %v2784 = vsel %vm2752, 1, 0
        %v2785 = vsel %vm2753, 1, 0
        %v2786 = vsel %vm2754, 1, 0
        %vm2787 = vcmp.eq.s32.totalorder %v2755, 1
        %vm2788 = vcmp.eq.s32.totalorder %v2756, 1
        %vm2789 = vcmp.eq.s32.totalorder %v2757, 1
        %vm2790 = vcmp.eq.s32.totalorder %v2758, 1
        %vm2791 = vcmp.eq.s32.totalorder %v2759, 1
        %vm2792 = vcmp.eq.s32.totalorder %v2760, 1
        %vm2793 = vcmp.eq.s32.totalorder %v2761, 1
        %vm2794 = vcmp.eq.s32.totalorder %v2762, 1
        %vm2795 = vcmp.eq.s32.totalorder %v2763, 1
        %vm2796 = vcmp.eq.s32.totalorder %v2764, 1
        %vm2797 = vcmp.eq.s32.totalorder %v2765, 1
        %vm2798 = vcmp.eq.s32.totalorder %v2766, 1
        %vm2799 = vcmp.eq.s32.totalorder %v2767, 1
        %vm2800 = vcmp.eq.s32.totalorder %v2768, 1
        %vm2801 = vcmp.eq.s32.totalorder %v2769, 1
        %vm2802 = vcmp.eq.s32.totalorder %v2770, 1
        %vm2803 = vcmp.eq.s32.totalorder %v2771, 1
        %vm2804 = vcmp.eq.s32.totalorder %v2772, 1
        %vm2805 = vcmp.eq.s32.totalorder %v2773, 1
        %vm2806 = vcmp.eq.s32.totalorder %v2774, 1
        %vm2807 = vcmp.eq.s32.totalorder %v2775, 1
        %vm2808 = vcmp.eq.s32.totalorder %v2776, 1
        %vm2809 = vcmp.eq.s32.totalorder %v2777, 1
        %vm2810 = vcmp.eq.s32.totalorder %v2778, 1
        %vm2811 = vcmp.eq.s32.totalorder %v2779, 1
        %vm2812 = vcmp.eq.s32.totalorder %v2780, 1
        %vm2813 = vcmp.eq.s32.totalorder %v2781, 1
        %vm2814 = vcmp.eq.s32.totalorder %v2782, 1
        %vm2815 = vcmp.eq.s32.totalorder %v2783, 1
        %vm2816 = vcmp.eq.s32.totalorder %v2784, 1
        %vm2817 = vcmp.eq.s32.totalorder %v2785, 1
        %vm2818 = vcmp.eq.s32.totalorder %v2786, 1
        %v2819 = vsel %vm2787, %v2623, 0.0
        %v2820 = vsel %vm2788, %v2624, 0.0
        %v2821 = vsel %vm2789, %v2625, 0.0
        %v2822 = vsel %vm2790, %v2626, 0.0
        %v2823 = vsel %vm2791, %v2595, 0.0
        %v2824 = vsel %vm2792, %v2596, 0.0
        %v2825 = vsel %vm2793, %v2597, 0.0
        %v2826 = vsel %vm2794, %v2598, 0.0
        %v2827 = vsel %vm2795, %v2599, 0.0
        %v2828 = vsel %vm2796, %v2600, 0.0
        %v2829 = vsel %vm2797, %v2601, 0.0
        %v2830 = vsel %vm2798, %v2602, 0.0
        %v2831 = vsel %vm2799, %v2603, 0.0
        %v2832 = vsel %vm2800, %v2604, 0.0
        %v2833 = vsel %vm2801, %v2605, 0.0
        %v2834 = vsel %vm2802, %v2606, 0.0
        %v2835 = vsel %vm2803, %v2607, 0.0
        %v2836 = vsel %vm2804, %v2608, 0.0
        %v2837 = vsel %vm2805, %v2609, 0.0
        %v2838 = vsel %vm2806, %v2610, 0.0
        %v2839 = vsel %vm2807, %v2611, 0.0
        %v2840 = vsel %vm2808, %v2612, 0.0
        %v2841 = vsel %vm2809, %v2613, 0.0
        %v2842 = vsel %vm2810, %v2614, 0.0
        %v2843 = vsel %vm2811, %v2615, 0.0
        %v2844 = vsel %vm2812, %v2616, 0.0
        %v2845 = vsel %vm2813, %v2617, 0.0
        %v2846 = vsel %vm2814, %v2618, 0.0
        %v2847 = vsel %vm2815, %v2619, 0.0
        %v2848 = vsel %vm2816, %v2620, 0.0
        %v2849 = vsel %vm2817, %v2621, 0.0
        %v2850 = vsel %vm2818, %v2622, 0.0
        %v2851 = vadd.s32 %v453, 32
        %v2852 = vadd.s32 %v454, 32
        %v2853 = vadd.s32 %v455, 32
        %v2854 = vadd.s32 %v456, 32
        %v2855 = vadd.s32 %v457, 32
        %v2856 = vadd.s32 %v458, 32
        %v2857 = vadd.s32 %v459, 32
        %v2858 = vadd.s32 %v460, 32
        %v2859 = vadd.s32 %v461, 32
        %v2860 = vadd.s32 %v462, 32
        %v2861 = vadd.s32 %v463, 32
        %v2862 = vadd.s32 %v464, 32
        %v2863 = vadd.s32 %v465, 32
        %v2864 = vadd.s32 %v466, 32
        %v2865 = vadd.s32 %v467, 32
        %v2866 = vadd.s32 %v468, 32
        %v2867 = vadd.s32 %v469, 32
        %v2868 = vadd.s32 %v470, 32
        %v2869 = vadd.s32 %v471, 32
        %v2870 = vadd.s32 %v472, 32
        %v2871 = vadd.s32 %v473, 32
        %v2872 = vadd.s32 %v474, 32
        %v2873 = vadd.s32 %v475, 32
        %v2874 = vadd.s32 %v476, 32
        %v2875 = vadd.s32 %v477, 32
        %v2876 = vadd.s32 %v478, 32
        %v2877 = vadd.s32 %v479, 32
        %v2878 = vadd.s32 %v480, 32
        %v2879 = vadd.s32 %v481, 32
        %v2880 = vadd.s32 %v482, 32
        %v2881 = vadd.s32 %v483, 32
        %vm2882 = vcmp.ge.s32.totalorder %v456, 0
        %vm2883 = vcmp.ge.s32.totalorder %v2851, 0
        %vm2884 = vcmp.ge.s32.totalorder %v2852, 0
        %vm2885 = vcmp.ge.s32.totalorder %v2853, 0
        %vm2886 = vcmp.ge.s32.totalorder %v2854, 0
        %vm2887 = vcmp.ge.s32.totalorder %v2855, 0
        %vm2888 = vcmp.ge.s32.totalorder %v2856, 0
        %vm2889 = vcmp.ge.s32.totalorder %v2857, 0
        %vm2890 = vcmp.ge.s32.totalorder %v2858, 0
        %vm2891 = vcmp.ge.s32.totalorder %v2859, 0
        %vm2892 = vcmp.ge.s32.totalorder %v2860, 0
        %vm2893 = vcmp.ge.s32.totalorder %v2861, 0
        %vm2894 = vcmp.ge.s32.totalorder %v2862, 0
        %vm2895 = vcmp.ge.s32.totalorder %v2863, 0
        %vm2896 = vcmp.ge.s32.totalorder %v2864, 0
        %vm2897 = vcmp.ge.s32.totalorder %v2865, 0
        %vm2898 = vcmp.ge.s32.totalorder %v2866, 0
        %vm2899 = vcmp.ge.s32.totalorder %v2867, 0
        %vm2900 = vcmp.ge.s32.totalorder %v2868, 0
        %vm2901 = vcmp.ge.s32.totalorder %v2869, 0
        %vm2902 = vcmp.ge.s32.totalorder %v2870, 0
        %vm2903 = vcmp.ge.s32.totalorder %v2871, 0
        %vm2904 = vcmp.ge.s32.totalorder %v2872, 0
        %vm2905 = vcmp.ge.s32.totalorder %v2873, 0
        %vm2906 = vcmp.ge.s32.totalorder %v2874, 0
        %vm2907 = vcmp.ge.s32.totalorder %v2875, 0
        %vm2908 = vcmp.ge.s32.totalorder %v2876, 0
        %vm2909 = vcmp.ge.s32.totalorder %v2877, 0
        %vm2910 = vcmp.ge.s32.totalorder %v2878, 0
        %vm2911 = vcmp.ge.s32.totalorder %v2879, 0
        %vm2912 = vcmp.ge.s32.totalorder %v2880, 0
        %vm2913 = vcmp.ge.s32.totalorder %v2881, 0
        %vm2914 = vcmp.lt.s32.totalorder %v456, 256
        %vm2915 = vcmp.lt.s32.totalorder %v2851, 256
        %vm2916 = vcmp.lt.s32.totalorder %v2852, 256
        %vm2917 = vcmp.lt.s32.totalorder %v2853, 256
        %vm2918 = vcmp.lt.s32.totalorder %v2854, 256
        %vm2919 = vcmp.lt.s32.totalorder %v2855, 256
        %vm2920 = vcmp.lt.s32.totalorder %v2856, 256
        %vm2921 = vcmp.lt.s32.totalorder %v2857, 256
        %vm2922 = vcmp.lt.s32.totalorder %v2858, 256
        %vm2923 = vcmp.lt.s32.totalorder %v2859, 256
        %vm2924 = vcmp.lt.s32.totalorder %v2860, 256
        %vm2925 = vcmp.lt.s32.totalorder %v2861, 256
        %vm2926 = vcmp.lt.s32.totalorder %v2862, 256
        %vm2927 = vcmp.lt.s32.totalorder %v2863, 256
        %vm2928 = vcmp.lt.s32.totalorder %v2864, 256
        %vm2929 = vcmp.lt.s32.totalorder %v2865, 256
        %vm2930 = vcmp.lt.s32.totalorder %v2866, 256
        %vm2931 = vcmp.lt.s32.totalorder %v2867, 256
        %vm2932 = vcmp.lt.s32.totalorder %v2868, 256
        %vm2933 = vcmp.lt.s32.totalorder %v2869, 256
        %vm2934 = vcmp.lt.s32.totalorder %v2870, 256
        %vm2935 = vcmp.lt.s32.totalorder %v2871, 256
        %vm2936 = vcmp.lt.s32.totalorder %v2872, 256
        %vm2937 = vcmp.lt.s32.totalorder %v2873, 256
        %vm2938 = vcmp.lt.s32.totalorder %v2874, 256
        %vm2939 = vcmp.lt.s32.totalorder %v2875, 256
        %vm2940 = vcmp.lt.s32.totalorder %v2876, 256
        %vm2941 = vcmp.lt.s32.totalorder %v2877, 256
        %vm2942 = vcmp.lt.s32.totalorder %v2878, 256
        %vm2943 = vcmp.lt.s32.totalorder %v2879, 256
        %vm2944 = vcmp.lt.s32.totalorder %v2880, 256
        %vm2945 = vcmp.lt.s32.totalorder %v2881, 256
        %vm2946 = vmand %vm2882, %vm2914
        %vm2947 = vmand %vm2883, %vm2915
        %vm2948 = vmand %vm2884, %vm2916
        %vm2949 = vmand %vm2885, %vm2917
        %vm2950 = vmand %vm2886, %vm2918
        %vm2951 = vmand %vm2887, %vm2919
        %vm2952 = vmand %vm2888, %vm2920
        %vm2953 = vmand %vm2889, %vm2921
        %vm2954 = vmand %vm2890, %vm2922
        %vm2955 = vmand %vm2891, %vm2923
        %vm2956 = vmand %vm2892, %vm2924
        %vm2957 = vmand %vm2893, %vm2925
        %vm2958 = vmand %vm2894, %vm2926
        %vm2959 = vmand %vm2895, %vm2927
        %vm2960 = vmand %vm2896, %vm2928
        %vm2961 = vmand %vm2897, %vm2929
        %vm2962 = vmand %vm2898, %vm2930
        %vm2963 = vmand %vm2899, %vm2931
        %vm2964 = vmand %vm2900, %vm2932
        %vm2965 = vmand %vm2901, %vm2933
        %vm2966 = vmand %vm2902, %vm2934
        %vm2967 = vmand %vm2903, %vm2935
        %vm2968 = vmand %vm2904, %vm2936
        %vm2969 = vmand %vm2905, %vm2937
        %vm2970 = vmand %vm2906, %vm2938
        %vm2971 = vmand %vm2907, %vm2939
        %vm2972 = vmand %vm2908, %vm2940
        %vm2973 = vmand %vm2909, %vm2941
        %vm2974 = vmand %vm2910, %vm2942
        %vm2975 = vmand %vm2911, %vm2943
        %vm2976 = vmand %vm2912, %vm2944
        %vm2977 = vmand %vm2913, %vm2945
        %v2978 = vsel %vm2946, 1, 0
        %v2979 = vsel %vm2947, 1, 0
        %v2980 = vsel %vm2948, 1, 0
        %v2981 = vsel %vm2949, 1, 0
        %v2982 = vsel %vm2950, 1, 0
        %v2983 = vsel %vm2951, 1, 0
        %v2984 = vsel %vm2952, 1, 0
        %v2985 = vsel %vm2953, 1, 0
        %v2986 = vsel %vm2954, 1, 0
        %v2987 = vsel %vm2955, 1, 0
        %v2988 = vsel %vm2956, 1, 0
        %v2989 = vsel %vm2957, 1, 0
        %v2990 = vsel %vm2958, 1, 0
        %v2991 = vsel %vm2959, 1, 0
        %v2992 = vsel %vm2960, 1, 0
        %v2993 = vsel %vm2961, 1, 0
        %v2994 = vsel %vm2962, 1, 0
        %v2995 = vsel %vm2963, 1, 0
        %v2996 = vsel %vm2964, 1, 0
        %v2997 = vsel %vm2965, 1, 0
        %v2998 = vsel %vm2966, 1, 0
        %v2999 = vsel %vm2967, 1, 0
        %v3000 = vsel %vm2968, 1, 0
        %v3001 = vsel %vm2969, 1, 0
        %v3002 = vsel %vm2970, 1, 0
        %v3003 = vsel %vm2971, 1, 0
        %v3004 = vsel %vm2972, 1, 0
        %v3005 = vsel %vm2973, 1, 0
        %v3006 = vsel %vm2974, 1, 0
        %v3007 = vsel %vm2975, 1, 0
        %v3008 = vsel %vm2976, 1, 0
        %v3009 = vsel %vm2977, 1, 0
        %vm3010 = vcmp.eq.s32.totalorder %v2978, 1
        %vm3011 = vcmp.eq.s32.totalorder %v2979, 1
        %vm3012 = vcmp.eq.s32.totalorder %v2980, 1
        %vm3013 = vcmp.eq.s32.totalorder %v2981, 1
        %vm3014 = vcmp.eq.s32.totalorder %v2982, 1
        %vm3015 = vcmp.eq.s32.totalorder %v2983, 1
        %vm3016 = vcmp.eq.s32.totalorder %v2984, 1
        %vm3017 = vcmp.eq.s32.totalorder %v2985, 1
        %vm3018 = vcmp.eq.s32.totalorder %v2986, 1
        %vm3019 = vcmp.eq.s32.totalorder %v2987, 1
        %vm3020 = vcmp.eq.s32.totalorder %v2988, 1
        %vm3021 = vcmp.eq.s32.totalorder %v2989, 1
        %vm3022 = vcmp.eq.s32.totalorder %v2990, 1
        %vm3023 = vcmp.eq.s32.totalorder %v2991, 1
        %vm3024 = vcmp.eq.s32.totalorder %v2992, 1
        %vm3025 = vcmp.eq.s32.totalorder %v2993, 1
        %vm3026 = vcmp.eq.s32.totalorder %v2994, 1
        %vm3027 = vcmp.eq.s32.totalorder %v2995, 1
        %vm3028 = vcmp.eq.s32.totalorder %v2996, 1
        %vm3029 = vcmp.eq.s32.totalorder %v2997, 1
        %vm3030 = vcmp.eq.s32.totalorder %v2998, 1
        %vm3031 = vcmp.eq.s32.totalorder %v2999, 1
        %vm3032 = vcmp.eq.s32.totalorder %v3000, 1
        %vm3033 = vcmp.eq.s32.totalorder %v3001, 1
        %vm3034 = vcmp.eq.s32.totalorder %v3002, 1
        %vm3035 = vcmp.eq.s32.totalorder %v3003, 1
        %vm3036 = vcmp.eq.s32.totalorder %v3004, 1
        %vm3037 = vcmp.eq.s32.totalorder %v3005, 1
        %vm3038 = vcmp.eq.s32.totalorder %v3006, 1
        %vm3039 = vcmp.eq.s32.totalorder %v3007, 1
        %vm3040 = vcmp.eq.s32.totalorder %v3008, 1
        %vm3041 = vcmp.eq.s32.totalorder %v3009, 1
        %v3042 = vsel %vm3010, %v2599, 0.0
        %v3043 = vsel %vm3011, %v2600, 0.0
        %v3044 = vsel %vm3012, %v2601, 0.0
        %v3045 = vsel %vm3013, %v2602, 0.0
        %v3046 = vsel %vm3014, %v2603, 0.0
        %v3047 = vsel %vm3015, %v2604, 0.0
        %v3048 = vsel %vm3016, %v2605, 0.0
        %v3049 = vsel %vm3017, %v2606, 0.0
        %v3050 = vsel %vm3018, %v2607, 0.0
        %v3051 = vsel %vm3019, %v2608, 0.0
        %v3052 = vsel %vm3020, %v2609, 0.0
        %v3053 = vsel %vm3021, %v2610, 0.0
        %v3054 = vsel %vm3022, %v2611, 0.0
        %v3055 = vsel %vm3023, %v2612, 0.0
        %v3056 = vsel %vm3024, %v2613, 0.0
        %v3057 = vsel %vm3025, %v2614, 0.0
        %v3058 = vsel %vm3026, %v2615, 0.0
        %v3059 = vsel %vm3027, %v2616, 0.0
        %v3060 = vsel %vm3028, %v2617, 0.0
        %v3061 = vsel %vm3029, %v2618, 0.0
        %v3062 = vsel %vm3030, %v2619, 0.0
        %v3063 = vsel %vm3031, %v2620, 0.0
        %v3064 = vsel %vm3032, %v2621, 0.0
        %v3065 = vsel %vm3033, %v2622, 0.0
        %v3066 = vsel %vm3034, %v2623, 0.0
        %v3067 = vsel %vm3035, %v2624, 0.0
        %v3068 = vsel %vm3036, %v2625, 0.0
        %v3069 = vsel %vm3037, %v2626, 0.0
        %v3070 = vsel %vm3038, %v2595, 0.0
        %v3071 = vsel %vm3039, %v2596, 0.0
        %v3072 = vsel %vm3040, %v2597, 0.0
        %v3073 = vsel %vm3041, %v2598, 0.0
        %v3074 = vpack.c.bf16 %v2820, %v2819
        %v3075 = vpack.c.bf16 %v2596, %v2595
        %v3076 = vpack.c.bf16 %v3043, %v3042
        %v3077 = vpack.c.bf16 %v2822, %v2821
        %v3078 = vpack.c.bf16 %v2598, %v2597
        %v3079 = vpack.c.bf16 %v3045, %v3044
        %v3080 = vpack.c.bf16 %v2824, %v2823
        %v3081 = vpack.c.bf16 %v2600, %v2599
        %v3082 = vpack.c.bf16 %v3047, %v3046
        %v3083 = vpack.c.bf16 %v2826, %v2825
        %v3084 = vpack.c.bf16 %v2602, %v2601
        %v3085 = vpack.c.bf16 %v3049, %v3048
        %v3086 = vpack.c.bf16 %v2828, %v2827
        %v3087 = vpack.c.bf16 %v2604, %v2603
        %v3088 = vpack.c.bf16 %v3051, %v3050
        %v3089 = vpack.c.bf16 %v2830, %v2829
        %v3090 = vpack.c.bf16 %v2606, %v2605
        %v3091 = vpack.c.bf16 %v3053, %v3052
        %v3092 = vpack.c.bf16 %v2832, %v2831
        %v3093 = vpack.c.bf16 %v2608, %v2607
        %v3094 = vpack.c.bf16 %v3055, %v3054
        %v3095 = vpack.c.bf16 %v2834, %v2833
        %v3096 = vpack.c.bf16 %v2610, %v2609
        %v3097 = vpack.c.bf16 %v3057, %v3056
        %v3098 = vpack.c.bf16 %v2836, %v2835
        %v3099 = vpack.c.bf16 %v2612, %v2611
        %v3100 = vpack.c.bf16 %v3059, %v3058
        %v3101 = vpack.c.bf16 %v2838, %v2837
        %v3102 = vpack.c.bf16 %v2614, %v2613
        %v3103 = vpack.c.bf16 %v3061, %v3060
        %v3104 = vpack.c.bf16 %v2840, %v2839
        %v3105 = vpack.c.bf16 %v2616, %v2615
        %v3106 = vpack.c.bf16 %v3063, %v3062
        %v3107 = vpack.c.bf16 %v2842, %v2841
        %v3108 = vpack.c.bf16 %v2618, %v2617
        %v3109 = vpack.c.bf16 %v3065, %v3064
        %v3110 = vpack.c.bf16 %v2844, %v2843
        %v3111 = vpack.c.bf16 %v2620, %v2619
        %v3112 = vpack.c.bf16 %v3067, %v3066
        %v3113 = vpack.c.bf16 %v2846, %v2845
        %v3114 = vpack.c.bf16 %v2622, %v2621
        %v3115 = vpack.c.bf16 %v3069, %v3068
        %v3116 = vpack.c.bf16 %v2848, %v2847
        %v3117 = vpack.c.bf16 %v2624, %v2623
        %v3118 = vpack.c.bf16 %v3071, %v3070
        %v3119 = vpack.c.bf16 %v2850, %v2849
        %v3120 = vpack.c.bf16 %v2626, %v2625
        %v3121 = vpack.c.bf16 %v3073, %v3072
        %v3122 = vld [vmem:[#allocation8] sm:$0xf]
        %v3123 = vld [vmem:[#allocation8 + $0x4] sm:$0xf]
        %v3124 = vld [vmem:[#allocation8 + $0x8] sm:$0xf]
        %v3125 = vld [vmem:[#allocation8 + $0xc] sm:$0xf]
        %v3126 = vld [vmem:[#allocation8 + $0x10] sm:$0xf]
        %v3127 = vld [vmem:[#allocation8 + $0x14] sm:$0xf]
        %v3128 = vld [vmem:[#allocation8 + $0x18] sm:$0xf]
        %v3129 = vld [vmem:[#allocation8 + $0x1c] sm:$0xf]
        %v3130 = vld [vmem:[#allocation8 + $0x20] sm:$0xf]
        %v3131 = vld [vmem:[#allocation8 + $0x24] sm:$0xf]
        %v3132 = vld [vmem:[#allocation8 + $0x28] sm:$0xf]
        %v3133 = vld [vmem:[#allocation8 + $0x2c] sm:$0xf]
        %v3134 = vld [vmem:[#allocation8 + $0x30] sm:$0xf]
        %v3135 = vld [vmem:[#allocation8 + $0x34] sm:$0xf]
        %v3136 = vld [vmem:[#allocation8 + $0x38] sm:$0xf]
        %v3137 = vld [vmem:[#allocation8 + $0x3c] sm:$0xf]
        %v3138 = vld [vmem:[#allocation8 + $0x40] sm:$0xf]
        %v3139 = vld [vmem:[#allocation8 + $0x44] sm:$0xf]
        %v3140 = vld [vmem:[#allocation8 + $0x48] sm:$0xf]
        %v3141 = vld [vmem:[#allocation8 + $0x4c] sm:$0xf]
        %v3142 = vld [vmem:[#allocation8 + $0x50] sm:$0xf]
        %v3143 = vld [vmem:[#allocation8 + $0x54] sm:$0xf]
        %v3144 = vld [vmem:[#allocation8 + $0x58] sm:$0xf]
        %v3145 = vld [vmem:[#allocation8 + $0x5c] sm:$0xf]
        %v3146 = vld [vmem:[#allocation8 + $0x60] sm:$0xf]
        %v3147 = vld [vmem:[#allocation8 + $0x64] sm:$0xf]
        %v3148 = vld [vmem:[#allocation8 + $0x68] sm:$0xf]
        %v3149 = vld [vmem:[#allocation8 + $0x6c] sm:$0xf]
        %v3150 = vld [vmem:[#allocation8 + $0x70] sm:$0xf]
        %v3151 = vld [vmem:[#allocation8 + $0x74] sm:$0xf]
        %v3152 = vld [vmem:[#allocation8 + $0x78] sm:$0xf]
        %v3153 = vld [vmem:[#allocation8 + $0x7c] sm:$0xf]
        %v3154 = vld [vmem:[#allocation8 + $0x80] sm:$0xf]
        %v3155 = vld [vmem:[#allocation8 + $0x84] sm:$0xf]
        %v3156 = vld [vmem:[#allocation8 + $0x88] sm:$0xf]
        %v3157 = vld [vmem:[#allocation8 + $0x8c] sm:$0xf]
        %v3158 = vld [vmem:[#allocation8 + $0x90] sm:$0xf]
        %v3159 = vld [vmem:[#allocation8 + $0x94] sm:$0xf]
        %v3160 = vld [vmem:[#allocation8 + $0x98] sm:$0xf]
        %v3161 = vld [vmem:[#allocation8 + $0x9c] sm:$0xf]
        %v3162 = vld [vmem:[#allocation8 + $0xa0] sm:$0xf]
        %v3163 = vld [vmem:[#allocation8 + $0xa4] sm:$0xf]
        %v3164 = vld [vmem:[#allocation8 + $0xa8] sm:$0xf]
        %v3165 = vld [vmem:[#allocation8 + $0xac] sm:$0xf]
        %v3166 = vld [vmem:[#allocation8 + $0xb0] sm:$0xf]
        %v3167 = vld [vmem:[#allocation8 + $0xb4] sm:$0xf]
        %v3168 = vld [vmem:[#allocation8 + $0xb8] sm:$0xf]
        %v3169 = vld [vmem:[#allocation8 + $0xbc] sm:$0xf]
        %v3170 = vld [vmem:[%s6] sm:$0x1]
        %v3172 = vperm.slane %v3170, 0
        %v3222 = vunpack.c.l.b16 %v3122
        %v3223 = vunpack.c.l.b16 %v3123
        %v3224 = vunpack.c.l.b16 %v3124
        %v3225 = vunpack.c.l.b16 %v3125
        %v3226 = vunpack.c.l.b16 %v3126
        %v3227 = vunpack.c.l.b16 %v3127
        %v3228 = vunpack.c.l.b16 %v3128
        %v3229 = vunpack.c.l.b16 %v3129
        %v3230 = vunpack.c.l.b16 %v3130
        %v3231 = vunpack.c.l.b16 %v3131
        %v3232 = vunpack.c.l.b16 %v3132
        %v3233 = vunpack.c.l.b16 %v3133
        %v3234 = vunpack.c.l.b16 %v3134
        %v3235 = vunpack.c.l.b16 %v3135
        %v3236 = vunpack.c.l.b16 %v3136
        %v3237 = vunpack.c.l.b16 %v3137
        %v3238 = vunpack.c.l.b16 %v3138
        %v3239 = vunpack.c.l.b16 %v3139
        %v3240 = vunpack.c.l.b16 %v3140
        %v3241 = vunpack.c.l.b16 %v3141
        %v3242 = vunpack.c.l.b16 %v3142
        %v3243 = vunpack.c.l.b16 %v3143
        %v3244 = vunpack.c.l.b16 %v3144
        %v3245 = vunpack.c.l.b16 %v3145
        %v3246 = vunpack.c.l.b16 %v3146
        %v3247 = vunpack.c.l.b16 %v3147
        %v3248 = vunpack.c.l.b16 %v3148
        %v3249 = vunpack.c.l.b16 %v3149
        %v3250 = vunpack.c.l.b16 %v3150
        %v3251 = vunpack.c.l.b16 %v3151
        %v3252 = vunpack.c.l.b16 %v3152
        %v3253 = vunpack.c.l.b16 %v3153
        %v3254 = vunpack.c.l.b16 %v3154
        %v3255 = vunpack.c.l.b16 %v3155
        %v3256 = vunpack.c.l.b16 %v3156
        %v3257 = vunpack.c.l.b16 %v3157
        %v3258 = vunpack.c.l.b16 %v3158
        %v3259 = vunpack.c.l.b16 %v3159
        %v3260 = vunpack.c.l.b16 %v3160
        %v3261 = vunpack.c.l.b16 %v3161
        %v3262 = vunpack.c.l.b16 %v3162
        %v3263 = vunpack.c.l.b16 %v3163
        %v3264 = vunpack.c.l.b16 %v3164
        %v3265 = vunpack.c.l.b16 %v3165
        %v3266 = vunpack.c.l.b16 %v3166
        %v3267 = vunpack.c.l.b16 %v3167
        %v3268 = vunpack.c.l.b16 %v3168
        %v3269 = vunpack.c.l.b16 %v3169
        %v3270 = vpack.c.b16 %v3223, %v3222
        %v3271 = vpack.c.b16 %v3225, %v3224
        %v3272 = vpack.c.b16 %v3227, %v3226
        %v3273 = vpack.c.b16 %v3229, %v3228
        %v3274 = vpack.c.b16 %v3231, %v3230
        %v3275 = vpack.c.b16 %v3233, %v3232
        %v3276 = vpack.c.b16 %v3235, %v3234
        %v3277 = vpack.c.b16 %v3237, %v3236
        %v3278 = vpack.c.b16 %v3239, %v3238
        %v3279 = vpack.c.b16 %v3241, %v3240
        %v3280 = vpack.c.b16 %v3243, %v3242
        %v3281 = vpack.c.b16 %v3245, %v3244
        %v3282 = vpack.c.b16 %v3247, %v3246
        %v3283 = vpack.c.b16 %v3249, %v3248
        %v3284 = vpack.c.b16 %v3251, %v3250
        %v3285 = vpack.c.b16 %v3253, %v3252
        %v3286 = vpack.c.b16 %v3255, %v3254
        %v3287 = vpack.c.b16 %v3257, %v3256
        %v3288 = vpack.c.b16 %v3259, %v3258
        %v3289 = vpack.c.b16 %v3261, %v3260
        %v3290 = vpack.c.b16 %v3263, %v3262
        %v3291 = vpack.c.b16 %v3265, %v3264
        %v3292 = vpack.c.b16 %v3267, %v3266
        %v3293 = vpack.c.b16 %v3269, %v3268
        %3318 = vmatpush.bf16.msra.mxu0 %v3277
        %3319 = vmatpush.bf16.msra.mxu0 %v3276
        %3320 = vmatpush.bf16.msra.mxu0 %v3275
        %3321 = vmatpush.bf16.msra.mxu0 %v3274
        %3322 = vmatpush.bf16.msra.mxu0 %v3273
        %3323 = vmatpush.bf16.msra.mxu0 %v3272
        %3324 = vmatpush.bf16.msra.mxu0 %v3271
        %3325 = vmatpush.bf16.msra.mxu0 %v3270
        %3326 = vmatmul.bf16.gmra.mxu0 %v3074
        %v3327 = vpop.f32.mrf.mxu0
        %v3328 = vadd.f32 %v3172, %v3327
        %v3329 = vpop.f32.mrf.mxu0
        %v3330 = vadd.f32 %v3172, %v3329
        %3331 = vmatmul.bf16.gmra.mxu0 %v3077
        %v3332 = vpop.f32.mrf.mxu0
        %v3333 = vadd.f32 %v3172, %v3332
        %v3334 = vpop.f32.mrf.mxu0
        %v3335 = vadd.f32 %v3172, %v3334
        %3336 = vmatmul.bf16.gmra.mxu0 %v3080
        %v3337 = vpop.f32.mrf.mxu0
        %v3338 = vadd.f32 %v3172, %v3337
        %v3339 = vpop.f32.mrf.mxu0
        %v3340 = vadd.f32 %v3172, %v3339
        %3341 = vmatmul.bf16.gmra.mxu0 %v3083
        %v3342 = vpop.f32.mrf.mxu0
        %v3343 = vadd.f32 %v3172, %v3342
        %v3344 = vpop.f32.mrf.mxu0
        %v3345 = vadd.f32 %v3172, %v3344
        %3346 = vmatmul.bf16.gmra.mxu0 %v3086
        %v3347 = vpop.f32.mrf.mxu0
        %v3348 = vadd.f32 %v3172, %v3347
        %v3349 = vpop.f32.mrf.mxu0
        %v3350 = vadd.f32 %v3172, %v3349
        %3351 = vmatmul.bf16.gmra.mxu0 %v3089
        %v3352 = vpop.f32.mrf.mxu0
        %v3353 = vadd.f32 %v3172, %v3352
        %v3354 = vpop.f32.mrf.mxu0
        %v3355 = vadd.f32 %v3172, %v3354
        %3356 = vmatmul.bf16.gmra.mxu0 %v3092
        %v3357 = vpop.f32.mrf.mxu0
        %v3358 = vadd.f32 %v3172, %v3357
        %v3359 = vpop.f32.mrf.mxu0
        %v3360 = vadd.f32 %v3172, %v3359
        %3361 = vmatmul.bf16.gmra.mxu0 %v3095
        %v3362 = vpop.f32.mrf.mxu0
        %v3363 = vadd.f32 %v3172, %v3362
        %v3364 = vpop.f32.mrf.mxu0
        %v3365 = vadd.f32 %v3172, %v3364
        %3366 = vmatmul.bf16.gmra.mxu0 %v3098
        %v3367 = vpop.f32.mrf.mxu0
        %v3368 = vadd.f32 %v3172, %v3367
        %v3369 = vpop.f32.mrf.mxu0
        %v3370 = vadd.f32 %v3172, %v3369
        %3371 = vmatmul.bf16.gmra.mxu0 %v3101
        %v3372 = vpop.f32.mrf.mxu0
        %v3373 = vadd.f32 %v3172, %v3372
        %v3374 = vpop.f32.mrf.mxu0
        %v3375 = vadd.f32 %v3172, %v3374
        %3376 = vmatmul.bf16.gmra.mxu0 %v3104
        %v3377 = vpop.f32.mrf.mxu0
        %v3378 = vadd.f32 %v3172, %v3377
        %v3379 = vpop.f32.mrf.mxu0
        %v3380 = vadd.f32 %v3172, %v3379
        %3381 = vmatmul.bf16.gmra.mxu0 %v3107
        %v3382 = vpop.f32.mrf.mxu0
        %v3383 = vadd.f32 %v3172, %v3382
        %v3384 = vpop.f32.mrf.mxu0
        %v3385 = vadd.f32 %v3172, %v3384
        %3386 = vmatmul.bf16.gmra.mxu0 %v3110
        %v3387 = vpop.f32.mrf.mxu0
        %v3388 = vadd.f32 %v3172, %v3387
        %v3389 = vpop.f32.mrf.mxu0
        %v3390 = vadd.f32 %v3172, %v3389
        %3391 = vmatmul.bf16.gmra.mxu0 %v3113
        %v3392 = vpop.f32.mrf.mxu0
        %v3393 = vadd.f32 %v3172, %v3392
        %v3394 = vpop.f32.mrf.mxu0
        %v3395 = vadd.f32 %v3172, %v3394
        %3396 = vmatmul.bf16.gmra.mxu0 %v3116
        %v3397 = vpop.f32.mrf.mxu0
        %v3398 = vadd.f32 %v3172, %v3397
        %v3399 = vpop.f32.mrf.mxu0
        %v3400 = vadd.f32 %v3172, %v3399
        %3401 = vmatmul.bf16.gmra.mxu0 %v3119
        %v3402 = vpop.f32.mrf.mxu0
        %v3403 = vadd.f32 %v3172, %v3402
        %v3404 = vpop.f32.mrf.mxu0
        %v3405 = vadd.f32 %v3172, %v3404
        %3406 = vdwg.mxu0
        %3407 = vmatpush.bf16.msra.mxu0 %v3285
        %3408 = vmatpush.bf16.msra.mxu0 %v3284
        %3409 = vmatpush.bf16.msra.mxu0 %v3283
        %3410 = vmatpush.bf16.msra.mxu0 %v3282
        %3411 = vmatpush.bf16.msra.mxu0 %v3281
        %3412 = vmatpush.bf16.msra.mxu0 %v3280
        %3413 = vmatpush.bf16.msra.mxu0 %v3279
        %3414 = vmatpush.bf16.msra.mxu0 %v3278
        %3415 = vmatmul.bf16.gmra.mxu0 %v3075
        %v3416 = vpop.f32.mrf.mxu0
        %v3417 = vadd.f32 %v3328, %v3416
        %v3418 = vpop.f32.mrf.mxu0
        %v3419 = vadd.f32 %v3330, %v3418
        %3420 = vmatmul.bf16.gmra.mxu0 %v3078
        %v3421 = vpop.f32.mrf.mxu0
        %v3422 = vadd.f32 %v3333, %v3421
        %v3423 = vpop.f32.mrf.mxu0
        %v3424 = vadd.f32 %v3335, %v3423
        %3425 = vmatmul.bf16.gmra.mxu0 %v3081
        %v3426 = vpop.f32.mrf.mxu0
        %v3427 = vadd.f32 %v3338, %v3426
        %v3428 = vpop.f32.mrf.mxu0
        %v3429 = vadd.f32 %v3340, %v3428
        %3430 = vmatmul.bf16.gmra.mxu0 %v3084
        %v3431 = vpop.f32.mrf.mxu0
        %v3432 = vadd.f32 %v3343, %v3431
        %v3433 = vpop.f32.mrf.mxu0
        %v3434 = vadd.f32 %v3345, %v3433
        %3435 = vmatmul.bf16.gmra.mxu0 %v3087
        %v3436 = vpop.f32.mrf.mxu0
        %v3437 = vadd.f32 %v3348, %v3436
        %v3438 = vpop.f32.mrf.mxu0
        %v3439 = vadd.f32 %v3350, %v3438
        %3440 = vmatmul.bf16.gmra.mxu0 %v3090
        %v3441 = vpop.f32.mrf.mxu0
        %v3442 = vadd.f32 %v3353, %v3441
        %v3443 = vpop.f32.mrf.mxu0
        %v3444 = vadd.f32 %v3355, %v3443
        %3445 = vmatmul.bf16.gmra.mxu0 %v3093
        %v3446 = vpop.f32.mrf.mxu0
        %v3447 = vadd.f32 %v3358, %v3446
        %v3448 = vpop.f32.mrf.mxu0
        %v3449 = vadd.f32 %v3360, %v3448
        %3450 = vmatmul.bf16.gmra.mxu0 %v3096
        %v3451 = vpop.f32.mrf.mxu0
        %v3452 = vadd.f32 %v3363, %v3451
        %v3453 = vpop.f32.mrf.mxu0
        %v3454 = vadd.f32 %v3365, %v3453
        %3455 = vmatmul.bf16.gmra.mxu0 %v3099
        %v3456 = vpop.f32.mrf.mxu0
        %v3457 = vadd.f32 %v3368, %v3456
        %v3458 = vpop.f32.mrf.mxu0
        %v3459 = vadd.f32 %v3370, %v3458
        %3460 = vmatmul.bf16.gmra.mxu0 %v3102
        %v3461 = vpop.f32.mrf.mxu0
        %v3462 = vadd.f32 %v3373, %v3461
        %v3463 = vpop.f32.mrf.mxu0
        %v3464 = vadd.f32 %v3375, %v3463
        %3465 = vmatmul.bf16.gmra.mxu0 %v3105
        %v3466 = vpop.f32.mrf.mxu0
        %v3467 = vadd.f32 %v3378, %v3466
        %v3468 = vpop.f32.mrf.mxu0
        %v3469 = vadd.f32 %v3380, %v3468
        %3470 = vmatmul.bf16.gmra.mxu0 %v3108
        %v3471 = vpop.f32.mrf.mxu0
        %v3472 = vadd.f32 %v3383, %v3471
        %v3473 = vpop.f32.mrf.mxu0
        %v3474 = vadd.f32 %v3385, %v3473
        %3475 = vmatmul.bf16.gmra.mxu0 %v3111
        %v3476 = vpop.f32.mrf.mxu0
        %v3477 = vadd.f32 %v3388, %v3476
        %v3478 = vpop.f32.mrf.mxu0
        %v3479 = vadd.f32 %v3390, %v3478
        %3480 = vmatmul.bf16.gmra.mxu0 %v3114
        %v3481 = vpop.f32.mrf.mxu0
        %v3482 = vadd.f32 %v3393, %v3481
        %v3483 = vpop.f32.mrf.mxu0
        %v3484 = vadd.f32 %v3395, %v3483
        %3485 = vmatmul.bf16.gmra.mxu0 %v3117
        %v3486 = vpop.f32.mrf.mxu0
        %v3487 = vadd.f32 %v3398, %v3486
        %v3488 = vpop.f32.mrf.mxu0
        %v3489 = vadd.f32 %v3400, %v3488
        %3490 = vmatmul.bf16.gmra.mxu0 %v3120
        %v3491 = vpop.f32.mrf.mxu0
        %v3492 = vadd.f32 %v3403, %v3491
        %v3493 = vpop.f32.mrf.mxu0
        %v3494 = vadd.f32 %v3405, %v3493
        %3495 = vdwg.mxu0
        %3496 = vmatpush.bf16.msra.mxu0 %v3293
        %3497 = vmatpush.bf16.msra.mxu0 %v3292
        %3498 = vmatpush.bf16.msra.mxu0 %v3291
        %3499 = vmatpush.bf16.msra.mxu0 %v3290
        %3500 = vmatpush.bf16.msra.mxu0 %v3289
        %3501 = vmatpush.bf16.msra.mxu0 %v3288
        %3502 = vmatpush.bf16.msra.mxu0 %v3287
        %3503 = vmatpush.bf16.msra.mxu0 %v3286
        %3504 = vmatmul.bf16.gmra.mxu0 %v3076
        %v3505 = vpop.f32.mrf.mxu0
        %v3506 = vadd.f32 %v3417, %v3505
        %v3507 = vpop.f32.mrf.mxu0
        %v3508 = vadd.f32 %v3419, %v3507
        %3509 = vmatmul.bf16.gmra.mxu0 %v3079
        %v3510 = vpop.f32.mrf.mxu0
        %v3511 = vadd.f32 %v3422, %v3510
        %v3512 = vpop.f32.mrf.mxu0
        %v3513 = vadd.f32 %v3424, %v3512
        %3514 = vmatmul.bf16.gmra.mxu0 %v3082
        %v3515 = vpop.f32.mrf.mxu0
        %v3516 = vadd.f32 %v3427, %v3515
        %v3517 = vpop.f32.mrf.mxu0
        %v3518 = vadd.f32 %v3429, %v3517
        %3519 = vmatmul.bf16.gmra.mxu0 %v3085
        %v3520 = vpop.f32.mrf.mxu0
        %v3521 = vadd.f32 %v3432, %v3520
        %v3522 = vpop.f32.mrf.mxu0
        %v3523 = vadd.f32 %v3434, %v3522
        %3524 = vmatmul.bf16.gmra.mxu0 %v3088
        %v3525 = vpop.f32.mrf.mxu0
        %v3526 = vadd.f32 %v3437, %v3525
        %v3527 = vpop.f32.mrf.mxu0
        %v3528 = vadd.f32 %v3439, %v3527
        %3529 = vmatmul.bf16.gmra.mxu0 %v3091
        %v3530 = vpop.f32.mrf.mxu0
        %v3531 = vadd.f32 %v3442, %v3530
        %v3532 = vpop.f32.mrf.mxu0
        %v3533 = vadd.f32 %v3444, %v3532
        %3534 = vmatmul.bf16.gmra.mxu0 %v3094
        %v3535 = vpop.f32.mrf.mxu0
        %v3536 = vadd.f32 %v3447, %v3535
        %v3537 = vpop.f32.mrf.mxu0
        %v3538 = vadd.f32 %v3449, %v3537
        %3539 = vmatmul.bf16.gmra.mxu0 %v3097
        %v3540 = vpop.f32.mrf.mxu0
        %v3541 = vadd.f32 %v3452, %v3540
        %v3542 = vpop.f32.mrf.mxu0
        %v3543 = vadd.f32 %v3454, %v3542
        %3544 = vmatmul.bf16.gmra.mxu0 %v3100
        %v3545 = vpop.f32.mrf.mxu0
        %v3546 = vadd.f32 %v3457, %v3545
        %v3547 = vpop.f32.mrf.mxu0
        %v3548 = vadd.f32 %v3459, %v3547
        %3549 = vmatmul.bf16.gmra.mxu0 %v3103
        %v3550 = vpop.f32.mrf.mxu0
        %v3551 = vadd.f32 %v3462, %v3550
        %v3552 = vpop.f32.mrf.mxu0
        %v3553 = vadd.f32 %v3464, %v3552
        %3554 = vmatmul.bf16.gmra.mxu0 %v3106
        %v3555 = vpop.f32.mrf.mxu0
        %v3556 = vadd.f32 %v3467, %v3555
        %v3557 = vpop.f32.mrf.mxu0
        %v3558 = vadd.f32 %v3469, %v3557
        %3559 = vmatmul.bf16.gmra.mxu0 %v3109
        %v3560 = vpop.f32.mrf.mxu0
        %v3561 = vadd.f32 %v3472, %v3560
        %v3562 = vpop.f32.mrf.mxu0
        %v3563 = vadd.f32 %v3474, %v3562
        %3564 = vmatmul.bf16.gmra.mxu0 %v3112
        %v3565 = vpop.f32.mrf.mxu0
        %v3566 = vadd.f32 %v3477, %v3565
        %v3567 = vpop.f32.mrf.mxu0
        %v3568 = vadd.f32 %v3479, %v3567
        %3569 = vmatmul.bf16.gmra.mxu0 %v3115
        %v3570 = vpop.f32.mrf.mxu0
        %v3571 = vadd.f32 %v3482, %v3570
        %v3572 = vpop.f32.mrf.mxu0
        %v3573 = vadd.f32 %v3484, %v3572
        %3574 = vmatmul.bf16.gmra.mxu0 %v3118
        %v3575 = vpop.f32.mrf.mxu0
        %v3576 = vadd.f32 %v3487, %v3575
        %v3577 = vpop.f32.mrf.mxu0
        %v3578 = vadd.f32 %v3489, %v3577
        %3579 = vmatmul.bf16.gmra.mxu0 %v3121
        %v3580 = vpop.f32.mrf.mxu0
        %v3581 = vadd.f32 %v3492, %v3580
        %v3582 = vpop.f32.mrf.mxu0
        %v3583 = vadd.f32 %v3494, %v3582
        %3584 = vdwg.mxu0
        %v3585 = vmax.f32 %v3506, 0.0
        %v3586 = vmax.f32 %v3508, 0.0
        %v3587 = vmax.f32 %v3511, 0.0
        %v3588 = vmax.f32 %v3513, 0.0
        %v3589 = vmax.f32 %v3516, 0.0
        %v3590 = vmax.f32 %v3518, 0.0
        %v3591 = vmax.f32 %v3521, 0.0
        %v3592 = vmax.f32 %v3523, 0.0
        %v3593 = vmax.f32 %v3526, 0.0
        %v3594 = vmax.f32 %v3528, 0.0
        %v3595 = vmax.f32 %v3531, 0.0
        %v3596 = vmax.f32 %v3533, 0.0
        %v3597 = vmax.f32 %v3536, 0.0
        %v3598 = vmax.f32 %v3538, 0.0
        %v3599 = vmax.f32 %v3541, 0.0
        %v3600 = vmax.f32 %v3543, 0.0
        %v3601 = vmax.f32 %v3546, 0.0
        %v3602 = vmax.f32 %v3548, 0.0
        %v3603 = vmax.f32 %v3551, 0.0
        %v3604 = vmax.f32 %v3553, 0.0
        %v3605 = vmax.f32 %v3556, 0.0
        %v3606 = vmax.f32 %v3558, 0.0
        %v3607 = vmax.f32 %v3561, 0.0
        %v3608 = vmax.f32 %v3563, 0.0
        %v3609 = vmax.f32 %v3566, 0.0
        %v3610 = vmax.f32 %v3568, 0.0
        %v3611 = vmax.f32 %v3571, 0.0
        %v3612 = vmax.f32 %v3573, 0.0
        %v3613 = vmax.f32 %v3576, 0.0
        %v3614 = vmax.f32 %v3578, 0.0
        %v3615 = vmax.f32 %v3581, 0.0
        %v3616 = vmax.f32 %v3583, 0.0
        %v3617 = vrot.slane %v3585, 6
        %v3618 = vrot.slane %v3586, 6
        %v3619 = vrot.slane %v3587, 6
        %v3620 = vrot.slane %v3588, 6
        %v3621 = vrot.slane %v3589, 6
        %v3622 = vrot.slane %v3590, 6
        %v3623 = vrot.slane %v3591, 6
        %v3624 = vrot.slane %v3592, 6
        %v3625 = vrot.slane %v3593, 6
        %v3626 = vrot.slane %v3594, 6
        %v3627 = vrot.slane %v3595, 6
        %v3628 = vrot.slane %v3596, 6
        %v3629 = vrot.slane %v3597, 6
        %v3630 = vrot.slane %v3598, 6
        %v3631 = vrot.slane %v3599, 6
        %v3632 = vrot.slane %v3600, 6
        %v3633 = vrot.slane %v3601, 6
        %v3634 = vrot.slane %v3602, 6
        %v3635 = vrot.slane %v3603, 6
        %v3636 = vrot.slane %v3604, 6
        %v3637 = vrot.slane %v3605, 6
        %v3638 = vrot.slane %v3606, 6
        %v3639 = vrot.slane %v3607, 6
        %v3640 = vrot.slane %v3608, 6
        %v3641 = vrot.slane %v3609, 6
        %v3642 = vrot.slane %v3610, 6
        %v3643 = vrot.slane %v3611, 6
        %v3644 = vrot.slane %v3612, 6
        %v3645 = vrot.slane %v3613, 6
        %v3646 = vrot.slane %v3614, 6
        %v3647 = vrot.slane %v3615, 6
        %v3648 = vrot.slane %v3616, 6
        %vm3649 = vcmp.lt.s32.totalorder %v452, 2
        %v3650 = vsel %vm3649, %v3647, %v3648
        %v3651 = vsel %vm3649, %v3646, %v3647
        %v3652 = vsel %vm3649, %v3645, %v3646
        %v3653 = vsel %vm3649, %v3644, %v3645
        %v3654 = vsel %vm3649, %v3643, %v3644
        %v3655 = vsel %vm3649, %v3642, %v3643
        %v3656 = vsel %vm3649, %v3641, %v3642
        %v3657 = vsel %vm3649, %v3640, %v3641
        %v3658 = vsel %vm3649, %v3639, %v3640
        %v3659 = vsel %vm3649, %v3638, %v3639
        %v3660 = vsel %vm3649, %v3637, %v3638
        %v3661 = vsel %vm3649, %v3636, %v3637
        %v3662 = vsel %vm3649, %v3635, %v3636
        %v3663 = vsel %vm3649, %v3634, %v3635
        %v3664 = vsel %vm3649, %v3633, %v3634
        %v3665 = vsel %vm3649, %v3632, %v3633
        %v3666 = vsel %vm3649, %v3631, %v3632
        %v3667 = vsel %vm3649, %v3630, %v3631
        %v3668 = vsel %vm3649, %v3629, %v3630
        %v3669 = vsel %vm3649, %v3628, %v3629
        %v3670 = vsel %vm3649, %v3627, %v3628
        %v3671 = vsel %vm3649, %v3626, %v3627
        %v3672 = vsel %vm3649, %v3625, %v3626
        %v3673 = vsel %vm3649, %v3624, %v3625
        %v3674 = vsel %vm3649, %v3623, %v3624
        %v3675 = vsel %vm3649, %v3622, %v3623
        %v3676 = vsel %vm3649, %v3621, %v3622
        %v3677 = vsel %vm3649, %v3620, %v3621
        %v3678 = vsel %vm3649, %v3619, %v3620
        %v3679 = vsel %vm3649, %v3618, %v3619
        %v3680 = vsel %vm3649, %v3617, %v3618
        %v3681 = vsel %vm3649, %v3648, %v3617
        %v3682 = vadd.s32 %v484, 4294967294
        %v3683 = vadd.s32 %v485, 4294967294
        %v3684 = vadd.s32 %v486, 4294967294
        %v3685 = vadd.s32 %v487, 4294967294
        %v3686 = vadd.s32 %v488, 4294967294
        %v3687 = vadd.s32 %v489, 4294967294
        %v3688 = vadd.s32 %v490, 4294967294
        %v3689 = vadd.s32 %v491, 4294967294
        %v3690 = vadd.s32 %v492, 4294967294
        %v3691 = vadd.s32 %v493, 4294967294
        %v3692 = vadd.s32 %v494, 4294967294
        %v3693 = vadd.s32 %v495, 4294967294
        %v3694 = vadd.s32 %v496, 4294967294
        %v3695 = vadd.s32 %v497, 4294967294
        %v3696 = vadd.s32 %v498, 4294967294
        %v3697 = vadd.s32 %v499, 4294967294
        %v3698 = vadd.s32 %v500, 4294967294
        %v3699 = vadd.s32 %v501, 4294967294
        %v3700 = vadd.s32 %v502, 4294967294
        %v3701 = vadd.s32 %v503, 4294967294
        %v3702 = vadd.s32 %v504, 4294967294
        %v3703 = vadd.s32 %v505, 4294967294
        %v3704 = vadd.s32 %v506, 4294967294
        %v3705 = vadd.s32 %v507, 4294967294
        %v3706 = vadd.s32 %v508, 4294967294
        %v3707 = vadd.s32 %v509, 4294967294
        %v3708 = vadd.s32 %v510, 4294967294
        %v3709 = vadd.s32 %v511, 4294967294
        %v3710 = vadd.s32 %v512, 4294967294
        %v3711 = vadd.s32 %v513, 4294967294
        %v3712 = vadd.s32 %v514, 4294967294
        %v3713 = vadd.s32 %v515, 4294967294
        %vm3714 = vcmp.ge.s32.totalorder %v3682, 0
        %vm3715 = vcmp.ge.s32.totalorder %v3683, 0
        %vm3716 = vcmp.ge.s32.totalorder %v3684, 0
        %vm3717 = vcmp.ge.s32.totalorder %v3685, 0
        %vm3718 = vcmp.ge.s32.totalorder %v3686, 0
        %vm3719 = vcmp.ge.s32.totalorder %v3687, 0
        %vm3720 = vcmp.ge.s32.totalorder %v3688, 0
        %vm3721 = vcmp.ge.s32.totalorder %v3689, 0
        %vm3722 = vcmp.ge.s32.totalorder %v3690, 0
        %vm3723 = vcmp.ge.s32.totalorder %v3691, 0
        %vm3724 = vcmp.ge.s32.totalorder %v3692, 0
        %vm3725 = vcmp.ge.s32.totalorder %v3693, 0
        %vm3726 = vcmp.ge.s32.totalorder %v3694, 0
        %vm3727 = vcmp.ge.s32.totalorder %v3695, 0
        %vm3728 = vcmp.ge.s32.totalorder %v3696, 0
        %vm3729 = vcmp.ge.s32.totalorder %v3697, 0
        %vm3730 = vcmp.ge.s32.totalorder %v3698, 0
        %vm3731 = vcmp.ge.s32.totalorder %v3699, 0
        %vm3732 = vcmp.ge.s32.totalorder %v3700, 0
        %vm3733 = vcmp.ge.s32.totalorder %v3701, 0
        %vm3734 = vcmp.ge.s32.totalorder %v3702, 0
        %vm3735 = vcmp.ge.s32.totalorder %v3703, 0
        %vm3736 = vcmp.ge.s32.totalorder %v3704, 0
        %vm3737 = vcmp.ge.s32.totalorder %v3705, 0
        %vm3738 = vcmp.ge.s32.totalorder %v3706, 0
        %vm3739 = vcmp.ge.s32.totalorder %v3707, 0
        %vm3740 = vcmp.ge.s32.totalorder %v3708, 0
        %vm3741 = vcmp.ge.s32.totalorder %v3709, 0
        %vm3742 = vcmp.ge.s32.totalorder %v3710, 0
        %vm3743 = vcmp.ge.s32.totalorder %v3711, 0
        %vm3744 = vcmp.ge.s32.totalorder %v3712, 0
        %vm3745 = vcmp.ge.s32.totalorder %v3713, 0
        %vm3746 = vcmp.lt.s32.totalorder %v3682, 16
        %vm3747 = vcmp.lt.s32.totalorder %v3683, 16
        %vm3748 = vcmp.lt.s32.totalorder %v3684, 16
        %vm3749 = vcmp.lt.s32.totalorder %v3685, 16
        %vm3750 = vcmp.lt.s32.totalorder %v3686, 16
        %vm3751 = vcmp.lt.s32.totalorder %v3687, 16
        %vm3752 = vcmp.lt.s32.totalorder %v3688, 16
        %vm3753 = vcmp.lt.s32.totalorder %v3689, 16
        %vm3754 = vcmp.lt.s32.totalorder %v3690, 16
        %vm3755 = vcmp.lt.s32.totalorder %v3691, 16
        %vm3756 = vcmp.lt.s32.totalorder %v3692, 16
        %vm3757 = vcmp.lt.s32.totalorder %v3693, 16
        %vm3758 = vcmp.lt.s32.totalorder %v3694, 16
        %vm3759 = vcmp.lt.s32.totalorder %v3695, 16
        %vm3760 = vcmp.lt.s32.totalorder %v3696, 16
        %vm3761 = vcmp.lt.s32.totalorder %v3697, 16
        %vm3762 = vcmp.lt.s32.totalorder %v3698, 16
        %vm3763 = vcmp.lt.s32.totalorder %v3699, 16
        %vm3764 = vcmp.lt.s32.totalorder %v3700, 16
        %vm3765 = vcmp.lt.s32.totalorder %v3701, 16
        %vm3766 = vcmp.lt.s32.totalorder %v3702, 16
        %vm3767 = vcmp.lt.s32.totalorder %v3703, 16
        %vm3768 = vcmp.lt.s32.totalorder %v3704, 16
        %vm3769 = vcmp.lt.s32.totalorder %v3705, 16
        %vm3770 = vcmp.lt.s32.totalorder %v3706, 16
        %vm3771 = vcmp.lt.s32.totalorder %v3707, 16
        %vm3772 = vcmp.lt.s32.totalorder %v3708, 16
        %vm3773 = vcmp.lt.s32.totalorder %v3709, 16
        %vm3774 = vcmp.lt.s32.totalorder %v3710, 16
        %vm3775 = vcmp.lt.s32.totalorder %v3711, 16
        %vm3776 = vcmp.lt.s32.totalorder %v3712, 16
        %vm3777 = vcmp.lt.s32.totalorder %v3713, 16
        %vm3778 = vmand %vm3714, %vm3746
        %vm3779 = vmand %vm3715, %vm3747
        %vm3780 = vmand %vm3716, %vm3748
        %vm3781 = vmand %vm3717, %vm3749
        %vm3782 = vmand %vm3718, %vm3750
        %vm3783 = vmand %vm3719, %vm3751
        %vm3784 = vmand %vm3720, %vm3752
        %vm3785 = vmand %vm3721, %vm3753
        %vm3786 = vmand %vm3722, %vm3754
        %vm3787 = vmand %vm3723, %vm3755
        %vm3788 = vmand %vm3724, %vm3756
        %vm3789 = vmand %vm3725, %vm3757
        %vm3790 = vmand %vm3726, %vm3758
        %vm3791 = vmand %vm3727, %vm3759
        %vm3792 = vmand %vm3728, %vm3760
        %vm3793 = vmand %vm3729, %vm3761
        %vm3794 = vmand %vm3730, %vm3762
        %vm3795 = vmand %vm3731, %vm3763
        %vm3796 = vmand %vm3732, %vm3764
        %vm3797 = vmand %vm3733, %vm3765
        %vm3798 = vmand %vm3734, %vm3766
        %vm3799 = vmand %vm3735, %vm3767
        %vm3800 = vmand %vm3736, %vm3768
        %vm3801 = vmand %vm3737, %vm3769
        %vm3802 = vmand %vm3738, %vm3770
        %vm3803 = vmand %vm3739, %vm3771
        %vm3804 = vmand %vm3740, %vm3772
        %vm3805 = vmand %vm3741, %vm3773
        %vm3806 = vmand %vm3742, %vm3774
        %vm3807 = vmand %vm3743, %vm3775
        %vm3808 = vmand %vm3744, %vm3776
        %vm3809 = vmand %vm3745, %vm3777
        %v3810 = vsel %vm3778, 1, 0
        %v3811 = vsel %vm3779, 1, 0
        %v3812 = vsel %vm3780, 1, 0
        %v3813 = vsel %vm3781, 1, 0
        %v3814 = vsel %vm3782, 1, 0
        %v3815 = vsel %vm3783, 1, 0
        %v3816 = vsel %vm3784, 1, 0
        %v3817 = vsel %vm3785, 1, 0
        %v3818 = vsel %vm3786, 1, 0
        %v3819 = vsel %vm3787, 1, 0
        %v3820 = vsel %vm3788, 1, 0
        %v3821 = vsel %vm3789, 1, 0
        %v3822 = vsel %vm3790, 1, 0
        %v3823 = vsel %vm3791, 1, 0
        %v3824 = vsel %vm3792, 1, 0
        %v3825 = vsel %vm3793, 1, 0
        %v3826 = vsel %vm3794, 1, 0
        %v3827 = vsel %vm3795, 1, 0
        %v3828 = vsel %vm3796, 1, 0
        %v3829 = vsel %vm3797, 1, 0
        %v3830 = vsel %vm3798, 1, 0
        %v3831 = vsel %vm3799, 1, 0
        %v3832 = vsel %vm3800, 1, 0
        %v3833 = vsel %vm3801, 1, 0
        %v3834 = vsel %vm3802, 1, 0
        %v3835 = vsel %vm3803, 1, 0
        %v3836 = vsel %vm3804, 1, 0
        %v3837 = vsel %vm3805, 1, 0
        %v3838 = vsel %vm3806, 1, 0
        %v3839 = vsel %vm3807, 1, 0
        %v3840 = vsel %vm3808, 1, 0
        %v3841 = vsel %vm3809, 1, 0
        %vm3842 = vcmp.eq.s32.totalorder %v3810, 1
        %vm3843 = vcmp.eq.s32.totalorder %v3811, 1
        %vm3844 = vcmp.eq.s32.totalorder %v3812, 1
        %vm3845 = vcmp.eq.s32.totalorder %v3813, 1
        %vm3846 = vcmp.eq.s32.totalorder %v3814, 1
        %vm3847 = vcmp.eq.s32.totalorder %v3815, 1
        %vm3848 = vcmp.eq.s32.totalorder %v3816, 1
        %vm3849 = vcmp.eq.s32.totalorder %v3817, 1
        %vm3850 = vcmp.eq.s32.totalorder %v3818, 1
        %vm3851 = vcmp.eq.s32.totalorder %v3819, 1
        %vm3852 = vcmp.eq.s32.totalorder %v3820, 1
        %vm3853 = vcmp.eq.s32.totalorder %v3821, 1
        %vm3854 = vcmp.eq.s32.totalorder %v3822, 1
        %vm3855 = vcmp.eq.s32.totalorder %v3823, 1
        %vm3856 = vcmp.eq.s32.totalorder %v3824, 1
        %vm3857 = vcmp.eq.s32.totalorder %v3825, 1
        %vm3858 = vcmp.eq.s32.totalorder %v3826, 1
        %vm3859 = vcmp.eq.s32.totalorder %v3827, 1
        %vm3860 = vcmp.eq.s32.totalorder %v3828, 1
        %vm3861 = vcmp.eq.s32.totalorder %v3829, 1
        %vm3862 = vcmp.eq.s32.totalorder %v3830, 1
        %vm3863 = vcmp.eq.s32.totalorder %v3831, 1
        %vm3864 = vcmp.eq.s32.totalorder %v3832, 1
        %vm3865 = vcmp.eq.s32.totalorder %v3833, 1
        %vm3866 = vcmp.eq.s32.totalorder %v3834, 1
        %vm3867 = vcmp.eq.s32.totalorder %v3835, 1
        %vm3868 = vcmp.eq.s32.totalorder %v3836, 1
        %vm3869 = vcmp.eq.s32.totalorder %v3837, 1
        %vm3870 = vcmp.eq.s32.totalorder %v3838, 1
        %vm3871 = vcmp.eq.s32.totalorder %v3839, 1
        %vm3872 = vcmp.eq.s32.totalorder %v3840, 1
        %vm3873 = vcmp.eq.s32.totalorder %v3841, 1
        %v3874 = vsel %vm3842, %v3681, 0.0
        %v3875 = vsel %vm3843, %v3680, 0.0
        %v3876 = vsel %vm3844, %v3679, 0.0
        %v3877 = vsel %vm3845, %v3678, 0.0
        %v3878 = vsel %vm3846, %v3677, 0.0
        %v3879 = vsel %vm3847, %v3676, 0.0
        %v3880 = vsel %vm3848, %v3675, 0.0
        %v3881 = vsel %vm3849, %v3674, 0.0
        %v3882 = vsel %vm3850, %v3673, 0.0
        %v3883 = vsel %vm3851, %v3672, 0.0
        %v3884 = vsel %vm3852, %v3671, 0.0
        %v3885 = vsel %vm3853, %v3670, 0.0
        %v3886 = vsel %vm3854, %v3669, 0.0
        %v3887 = vsel %vm3855, %v3668, 0.0
        %v3888 = vsel %vm3856, %v3667, 0.0
        %v3889 = vsel %vm3857, %v3666, 0.0
        %v3890 = vsel %vm3858, %v3665, 0.0
        %v3891 = vsel %vm3859, %v3664, 0.0
        %v3892 = vsel %vm3860, %v3663, 0.0
        %v3893 = vsel %vm3861, %v3662, 0.0
        %v3894 = vsel %vm3862, %v3661, 0.0
        %v3895 = vsel %vm3863, %v3660, 0.0
        %v3896 = vsel %vm3864, %v3659, 0.0
        %v3897 = vsel %vm3865, %v3658, 0.0
        %v3898 = vsel %vm3866, %v3657, 0.0
        %v3899 = vsel %vm3867, %v3656, 0.0
        %v3900 = vsel %vm3868, %v3655, 0.0
        %v3901 = vsel %vm3869, %v3654, 0.0
        %v3902 = vsel %vm3870, %v3653, 0.0
        %v3903 = vsel %vm3871, %v3652, 0.0
        %v3904 = vsel %vm3872, %v3651, 0.0
        %v3905 = vsel %vm3873, %v3650, 0.0
        %v3906 = vrot.slane %v3585, 2
        %v3907 = vrot.slane %v3586, 2
        %v3908 = vrot.slane %v3587, 2
        %v3909 = vrot.slane %v3588, 2
        %v3910 = vrot.slane %v3589, 2
        %v3911 = vrot.slane %v3590, 2
        %v3912 = vrot.slane %v3591, 2
        %v3913 = vrot.slane %v3592, 2
        %v3914 = vrot.slane %v3593, 2
        %v3915 = vrot.slane %v3594, 2
        %v3916 = vrot.slane %v3595, 2
        %v3917 = vrot.slane %v3596, 2
        %v3918 = vrot.slane %v3597, 2
        %v3919 = vrot.slane %v3598, 2
        %v3920 = vrot.slane %v3599, 2
        %v3921 = vrot.slane %v3600, 2
        %v3922 = vrot.slane %v3601, 2
        %v3923 = vrot.slane %v3602, 2
        %v3924 = vrot.slane %v3603, 2
        %v3925 = vrot.slane %v3604, 2
        %v3926 = vrot.slane %v3605, 2
        %v3927 = vrot.slane %v3606, 2
        %v3928 = vrot.slane %v3607, 2
        %v3929 = vrot.slane %v3608, 2
        %v3930 = vrot.slane %v3609, 2
        %v3931 = vrot.slane %v3610, 2
        %v3932 = vrot.slane %v3611, 2
        %v3933 = vrot.slane %v3612, 2
        %v3934 = vrot.slane %v3613, 2
        %v3935 = vrot.slane %v3614, 2
        %v3936 = vrot.slane %v3615, 2
        %v3937 = vrot.slane %v3616, 2
        %vm3938 = vcmp.lt.s32.totalorder %v452, 6
        %v3939 = vsel %vm3938, %v3936, %v3937
        %v3940 = vsel %vm3938, %v3935, %v3936
        %v3941 = vsel %vm3938, %v3934, %v3935
        %v3942 = vsel %vm3938, %v3933, %v3934
        %v3943 = vsel %vm3938, %v3932, %v3933
        %v3944 = vsel %vm3938, %v3931, %v3932
        %v3945 = vsel %vm3938, %v3930, %v3931
        %v3946 = vsel %vm3938, %v3929, %v3930
        %v3947 = vsel %vm3938, %v3928, %v3929
        %v3948 = vsel %vm3938, %v3927, %v3928
        %v3949 = vsel %vm3938, %v3926, %v3927
        %v3950 = vsel %vm3938, %v3925, %v3926
        %v3951 = vsel %vm3938, %v3924, %v3925
        %v3952 = vsel %vm3938, %v3923, %v3924
        %v3953 = vsel %vm3938, %v3922, %v3923
        %v3954 = vsel %vm3938, %v3921, %v3922
        %v3955 = vsel %vm3938, %v3920, %v3921
        %v3956 = vsel %vm3938, %v3919, %v3920
        %v3957 = vsel %vm3938, %v3918, %v3919
        %v3958 = vsel %vm3938, %v3917, %v3918
        %v3959 = vsel %vm3938, %v3916, %v3917
        %v3960 = vsel %vm3938, %v3915, %v3916
        %v3961 = vsel %vm3938, %v3914, %v3915
        %v3962 = vsel %vm3938, %v3913, %v3914
        %v3963 = vsel %vm3938, %v3912, %v3913
        %v3964 = vsel %vm3938, %v3911, %v3912
        %v3965 = vsel %vm3938, %v3910, %v3911
        %v3966 = vsel %vm3938, %v3909, %v3910
        %v3967 = vsel %vm3938, %v3908, %v3909
        %v3968 = vsel %vm3938, %v3907, %v3908
        %v3969 = vsel %vm3938, %v3906, %v3907
        %v3970 = vsel %vm3938, %v3937, %v3906
        %v3971 = vadd.s32 %v484, 2
        %v3972 = vadd.s32 %v485, 2
        %v3973 = vadd.s32 %v486, 2
        %v3974 = vadd.s32 %v487, 2
        %v3975 = vadd.s32 %v488, 2
        %v3976 = vadd.s32 %v489, 2
        %v3977 = vadd.s32 %v490, 2
        %v3978 = vadd.s32 %v491, 2
        %v3979 = vadd.s32 %v492, 2
        %v3980 = vadd.s32 %v493, 2
        %v3981 = vadd.s32 %v494, 2
        %v3982 = vadd.s32 %v495, 2
        %v3983 = vadd.s32 %v496, 2
        %v3984 = vadd.s32 %v497, 2
        %v3985 = vadd.s32 %v498, 2
        %v3986 = vadd.s32 %v499, 2
        %v3987 = vadd.s32 %v500, 2
        %v3988 = vadd.s32 %v501, 2
        %v3989 = vadd.s32 %v502, 2
        %v3990 = vadd.s32 %v503, 2
        %v3991 = vadd.s32 %v504, 2
        %v3992 = vadd.s32 %v505, 2
        %v3993 = vadd.s32 %v506, 2
        %v3994 = vadd.s32 %v507, 2
        %v3995 = vadd.s32 %v508, 2
        %v3996 = vadd.s32 %v509, 2
        %v3997 = vadd.s32 %v510, 2
        %v3998 = vadd.s32 %v511, 2
        %v3999 = vadd.s32 %v512, 2
        %v4000 = vadd.s32 %v513, 2
        %v4001 = vadd.s32 %v514, 2
        %v4002 = vadd.s32 %v515, 2
        %vm4003 = vcmp.ge.s32.totalorder %v3971, 0
        %vm4004 = vcmp.ge.s32.totalorder %v3972, 0
        %vm4005 = vcmp.ge.s32.totalorder %v3973, 0
        %vm4006 = vcmp.ge.s32.totalorder %v3974, 0
        %vm4007 = vcmp.ge.s32.totalorder %v3975, 0
        %vm4008 = vcmp.ge.s32.totalorder %v3976, 0
        %vm4009 = vcmp.ge.s32.totalorder %v3977, 0
        %vm4010 = vcmp.ge.s32.totalorder %v3978, 0
        %vm4011 = vcmp.ge.s32.totalorder %v3979, 0
        %vm4012 = vcmp.ge.s32.totalorder %v3980, 0
        %vm4013 = vcmp.ge.s32.totalorder %v3981, 0
        %vm4014 = vcmp.ge.s32.totalorder %v3982, 0
        %vm4015 = vcmp.ge.s32.totalorder %v3983, 0
        %vm4016 = vcmp.ge.s32.totalorder %v3984, 0
        %vm4017 = vcmp.ge.s32.totalorder %v3985, 0
        %vm4018 = vcmp.ge.s32.totalorder %v3986, 0
        %vm4019 = vcmp.ge.s32.totalorder %v3987, 0
        %vm4020 = vcmp.ge.s32.totalorder %v3988, 0
        %vm4021 = vcmp.ge.s32.totalorder %v3989, 0
        %vm4022 = vcmp.ge.s32.totalorder %v3990, 0
        %vm4023 = vcmp.ge.s32.totalorder %v3991, 0
        %vm4024 = vcmp.ge.s32.totalorder %v3992, 0
        %vm4025 = vcmp.ge.s32.totalorder %v3993, 0
        %vm4026 = vcmp.ge.s32.totalorder %v3994, 0
        %vm4027 = vcmp.ge.s32.totalorder %v3995, 0
        %vm4028 = vcmp.ge.s32.totalorder %v3996, 0
        %vm4029 = vcmp.ge.s32.totalorder %v3997, 0
        %vm4030 = vcmp.ge.s32.totalorder %v3998, 0
        %vm4031 = vcmp.ge.s32.totalorder %v3999, 0
        %vm4032 = vcmp.ge.s32.totalorder %v4000, 0
        %vm4033 = vcmp.ge.s32.totalorder %v4001, 0
        %vm4034 = vcmp.ge.s32.totalorder %v4002, 0
        %vm4035 = vcmp.lt.s32.totalorder %v3971, 16
        %vm4036 = vcmp.lt.s32.totalorder %v3972, 16
        %vm4037 = vcmp.lt.s32.totalorder %v3973, 16
        %vm4038 = vcmp.lt.s32.totalorder %v3974, 16
        %vm4039 = vcmp.lt.s32.totalorder %v3975, 16
        %vm4040 = vcmp.lt.s32.totalorder %v3976, 16
        %vm4041 = vcmp.lt.s32.totalorder %v3977, 16
        %vm4042 = vcmp.lt.s32.totalorder %v3978, 16
        %vm4043 = vcmp.lt.s32.totalorder %v3979, 16
        %vm4044 = vcmp.lt.s32.totalorder %v3980, 16
        %vm4045 = vcmp.lt.s32.totalorder %v3981, 16
        %vm4046 = vcmp.lt.s32.totalorder %v3982, 16
        %vm4047 = vcmp.lt.s32.totalorder %v3983, 16
        %vm4048 = vcmp.lt.s32.totalorder %v3984, 16
        %vm4049 = vcmp.lt.s32.totalorder %v3985, 16
        %vm4050 = vcmp.lt.s32.totalorder %v3986, 16
        %vm4051 = vcmp.lt.s32.totalorder %v3987, 16
        %vm4052 = vcmp.lt.s32.totalorder %v3988, 16
        %vm4053 = vcmp.lt.s32.totalorder %v3989, 16
        %vm4054 = vcmp.lt.s32.totalorder %v3990, 16
        %vm4055 = vcmp.lt.s32.totalorder %v3991, 16
        %vm4056 = vcmp.lt.s32.totalorder %v3992, 16
        %vm4057 = vcmp.lt.s32.totalorder %v3993, 16
        %vm4058 = vcmp.lt.s32.totalorder %v3994, 16
        %vm4059 = vcmp.lt.s32.totalorder %v3995, 16
        %vm4060 = vcmp.lt.s32.totalorder %v3996, 16
        %vm4061 = vcmp.lt.s32.totalorder %v3997, 16
        %vm4062 = vcmp.lt.s32.totalorder %v3998, 16
        %vm4063 = vcmp.lt.s32.totalorder %v3999, 16
        %vm4064 = vcmp.lt.s32.totalorder %v4000, 16
        %vm4065 = vcmp.lt.s32.totalorder %v4001, 16
        %vm4066 = vcmp.lt.s32.totalorder %v4002, 16
        %vm4067 = vmand %vm4003, %vm4035
        %vm4068 = vmand %vm4004, %vm4036
        %vm4069 = vmand %vm4005, %vm4037
        %vm4070 = vmand %vm4006, %vm4038
        %vm4071 = vmand %vm4007, %vm4039
        %vm4072 = vmand %vm4008, %vm4040
        %vm4073 = vmand %vm4009, %vm4041
        %vm4074 = vmand %vm4010, %vm4042
        %vm4075 = vmand %vm4011, %vm4043
        %vm4076 = vmand %vm4012, %vm4044
        %vm4077 = vmand %vm4013, %vm4045
        %vm4078 = vmand %vm4014, %vm4046
        %vm4079 = vmand %vm4015, %vm4047
        %vm4080 = vmand %vm4016, %vm4048
        %vm4081 = vmand %vm4017, %vm4049
        %vm4082 = vmand %vm4018, %vm4050
        %vm4083 = vmand %vm4019, %vm4051
        %vm4084 = vmand %vm4020, %vm4052
        %vm4085 = vmand %vm4021, %vm4053
        %vm4086 = vmand %vm4022, %vm4054
        %vm4087 = vmand %vm4023, %vm4055
        %vm4088 = vmand %vm4024, %vm4056
        %vm4089 = vmand %vm4025, %vm4057
        %vm4090 = vmand %vm4026, %vm4058
        %vm4091 = vmand %vm4027, %vm4059
        %vm4092 = vmand %vm4028, %vm4060
        %vm4093 = vmand %vm4029, %vm4061
        %vm4094 = vmand %vm4030, %vm4062
        %vm4095 = vmand %vm4031, %vm4063
        %vm4096 = vmand %vm4032, %vm4064
        %vm4097 = vmand %vm4033, %vm4065
        %vm4098 = vmand %vm4034, %vm4066
        %v4099 = vsel %vm4067, 1, 0
        %v4100 = vsel %vm4068, 1, 0
        %v4101 = vsel %vm4069, 1, 0
        %v4102 = vsel %vm4070, 1, 0
        %v4103 = vsel %vm4071, 1, 0
        %v4104 = vsel %vm4072, 1, 0
        %v4105 = vsel %vm4073, 1, 0
        %v4106 = vsel %vm4074, 1, 0
        %v4107 = vsel %vm4075, 1, 0
        %v4108 = vsel %vm4076, 1, 0
        %v4109 = vsel %vm4077, 1, 0
        %v4110 = vsel %vm4078, 1, 0
        %v4111 = vsel %vm4079, 1, 0
        %v4112 = vsel %vm4080, 1, 0
        %v4113 = vsel %vm4081, 1, 0
        %v4114 = vsel %vm4082, 1, 0
        %v4115 = vsel %vm4083, 1, 0
        %v4116 = vsel %vm4084, 1, 0
        %v4117 = vsel %vm4085, 1, 0
        %v4118 = vsel %vm4086, 1, 0
        %v4119 = vsel %vm4087, 1, 0
        %v4120 = vsel %vm4088, 1, 0
        %v4121 = vsel %vm4089, 1, 0
        %v4122 = vsel %vm4090, 1, 0
        %v4123 = vsel %vm4091, 1, 0
        %v4124 = vsel %vm4092, 1, 0
        %v4125 = vsel %vm4093, 1, 0
        %v4126 = vsel %vm4094, 1, 0
        %v4127 = vsel %vm4095, 1, 0
        %v4128 = vsel %vm4096, 1, 0
        %v4129 = vsel %vm4097, 1, 0
        %v4130 = vsel %vm4098, 1, 0
        %vm4131 = vcmp.eq.s32.totalorder %v4099, 1
        %vm4132 = vcmp.eq.s32.totalorder %v4100, 1
        %vm4133 = vcmp.eq.s32.totalorder %v4101, 1
        %vm4134 = vcmp.eq.s32.totalorder %v4102, 1
        %vm4135 = vcmp.eq.s32.totalorder %v4103, 1
        %vm4136 = vcmp.eq.s32.totalorder %v4104, 1
        %vm4137 = vcmp.eq.s32.totalorder %v4105, 1
        %vm4138 = vcmp.eq.s32.totalorder %v4106, 1
        %vm4139 = vcmp.eq.s32.totalorder %v4107, 1
        %vm4140 = vcmp.eq.s32.totalorder %v4108, 1
        %vm4141 = vcmp.eq.s32.totalorder %v4109, 1
        %vm4142 = vcmp.eq.s32.totalorder %v4110, 1
        %vm4143 = vcmp.eq.s32.totalorder %v4111, 1
        %vm4144 = vcmp.eq.s32.totalorder %v4112, 1
        %vm4145 = vcmp.eq.s32.totalorder %v4113, 1
        %vm4146 = vcmp.eq.s32.totalorder %v4114, 1
        %vm4147 = vcmp.eq.s32.totalorder %v4115, 1
        %vm4148 = vcmp.eq.s32.totalorder %v4116, 1
        %vm4149 = vcmp.eq.s32.totalorder %v4117, 1
        %vm4150 = vcmp.eq.s32.totalorder %v4118, 1
        %vm4151 = vcmp.eq.s32.totalorder %v4119, 1
        %vm4152 = vcmp.eq.s32.totalorder %v4120, 1
        %vm4153 = vcmp.eq.s32.totalorder %v4121, 1
        %vm4154 = vcmp.eq.s32.totalorder %v4122, 1
        %vm4155 = vcmp.eq.s32.totalorder %v4123, 1
        %vm4156 = vcmp.eq.s32.totalorder %v4124, 1
        %vm4157 = vcmp.eq.s32.totalorder %v4125, 1
        %vm4158 = vcmp.eq.s32.totalorder %v4126, 1
        %vm4159 = vcmp.eq.s32.totalorder %v4127, 1
        %vm4160 = vcmp.eq.s32.totalorder %v4128, 1
        %vm4161 = vcmp.eq.s32.totalorder %v4129, 1
        %vm4162 = vcmp.eq.s32.totalorder %v4130, 1
        %v4163 = vsel %vm4131, %v3969, 0.0
        %v4164 = vsel %vm4132, %v3968, 0.0
        %v4165 = vsel %vm4133, %v3967, 0.0
        %v4166 = vsel %vm4134, %v3966, 0.0
        %v4167 = vsel %vm4135, %v3965, 0.0
        %v4168 = vsel %vm4136, %v3964, 0.0
        %v4169 = vsel %vm4137, %v3963, 0.0
        %v4170 = vsel %vm4138, %v3962, 0.0
        %v4171 = vsel %vm4139, %v3961, 0.0
        %v4172 = vsel %vm4140, %v3960, 0.0
        %v4173 = vsel %vm4141, %v3959, 0.0
        %v4174 = vsel %vm4142, %v3958, 0.0
        %v4175 = vsel %vm4143, %v3957, 0.0
        %v4176 = vsel %vm4144, %v3956, 0.0
        %v4177 = vsel %vm4145, %v3955, 0.0
        %v4178 = vsel %vm4146, %v3954, 0.0
        %v4179 = vsel %vm4147, %v3953, 0.0
        %v4180 = vsel %vm4148, %v3952, 0.0
        %v4181 = vsel %vm4149, %v3951, 0.0
        %v4182 = vsel %vm4150, %v3950, 0.0
        %v4183 = vsel %vm4151, %v3949, 0.0
        %v4184 = vsel %vm4152, %v3948, 0.0
        %v4185 = vsel %vm4153, %v3947, 0.0
        %v4186 = vsel %vm4154, %v3946, 0.0
        %v4187 = vsel %vm4155, %v3945, 0.0
        %v4188 = vsel %vm4156, %v3944, 0.0
        %v4189 = vsel %vm4157, %v3943, 0.0
        %v4190 = vsel %vm4158, %v3942, 0.0
        %v4191 = vsel %vm4159, %v3941, 0.0
        %v4192 = vsel %vm4160, %v3940, 0.0
        %v4193 = vsel %vm4161, %v3939, 0.0
        %v4194 = vsel %vm4162, %v3970, 0.0
        %v4195 = vpack.c.bf16 %v3875, %v3874
        %v4196 = vpack.c.bf16 %v3586, %v3585
        %v4197 = vpack.c.bf16 %v4164, %v4163
        %v4198 = vpack.c.bf16 %v3877, %v3876
        %v4199 = vpack.c.bf16 %v3588, %v3587
        %v4200 = vpack.c.bf16 %v4166, %v4165
        %v4201 = vpack.c.bf16 %v3879, %v3878
        %v4202 = vpack.c.bf16 %v3590, %v3589
        %v4203 = vpack.c.bf16 %v4168, %v4167
        %v4204 = vpack.c.bf16 %v3881, %v3880
        %v4205 = vpack.c.bf16 %v3592, %v3591
        %v4206 = vpack.c.bf16 %v4170, %v4169
        %v4207 = vpack.c.bf16 %v3883, %v3882
        %v4208 = vpack.c.bf16 %v3594, %v3593
        %v4209 = vpack.c.bf16 %v4172, %v4171
        %v4210 = vpack.c.bf16 %v3885, %v3884
        %v4211 = vpack.c.bf16 %v3596, %v3595
        %v4212 = vpack.c.bf16 %v4174, %v4173
        %v4213 = vpack.c.bf16 %v3887, %v3886
        %v4214 = vpack.c.bf16 %v3598, %v3597
        %v4215 = vpack.c.bf16 %v4176, %v4175
        %v4216 = vpack.c.bf16 %v3889, %v3888
        %v4217 = vpack.c.bf16 %v3600, %v3599
        %v4218 = vpack.c.bf16 %v4178, %v4177
        %v4219 = vpack.c.bf16 %v3891, %v3890
        %v4220 = vpack.c.bf16 %v3602, %v3601
        %v4221 = vpack.c.bf16 %v4180, %v4179
        %v4222 = vpack.c.bf16 %v3893, %v3892
        %v4223 = vpack.c.bf16 %v3604, %v3603
        %v4224 = vpack.c.bf16 %v4182, %v4181
        %v4225 = vpack.c.bf16 %v3895, %v3894
        %v4226 = vpack.c.bf16 %v3606, %v3605
        %v4227 = vpack.c.bf16 %v4184, %v4183
        %v4228 = vpack.c.bf16 %v3897, %v3896
        %v4229 = vpack.c.bf16 %v3608, %v3607
        %v4230 = vpack.c.bf16 %v4186, %v4185
        %v4231 = vpack.c.bf16 %v3899, %v3898
        %v4232 = vpack.c.bf16 %v3610, %v3609
        %v4233 = vpack.c.bf16 %v4188, %v4187
        %v4234 = vpack.c.bf16 %v3901, %v3900
        %v4235 = vpack.c.bf16 %v3612, %v3611
        %v4236 = vpack.c.bf16 %v4190, %v4189
        %v4237 = vpack.c.bf16 %v3903, %v3902
        %v4238 = vpack.c.bf16 %v3614, %v3613
        %v4239 = vpack.c.bf16 %v4192, %v4191
        %v4240 = vpack.c.bf16 %v3905, %v3904
        %v4241 = vpack.c.bf16 %v3616, %v3615
        %v4242 = vpack.c.bf16 %v4194, %v4193
        %v4243 = vld [vmem:[#allocation10] sm:$0xf]
        %v4244 = vld [vmem:[#allocation10 + $0x4] sm:$0xf]
        %v4245 = vld [vmem:[#allocation10 + $0x8] sm:$0xf]
        %v4246 = vld [vmem:[#allocation10 + $0xc] sm:$0xf]
        %v4247 = vld [vmem:[#allocation10 + $0x10] sm:$0xf]
        %v4248 = vld [vmem:[#allocation10 + $0x14] sm:$0xf]
        %v4249 = vld [vmem:[#allocation10 + $0x18] sm:$0xf]
        %v4250 = vld [vmem:[#allocation10 + $0x1c] sm:$0xf]
        %v4251 = vld [vmem:[#allocation10 + $0x20] sm:$0xf]
        %v4252 = vld [vmem:[#allocation10 + $0x24] sm:$0xf]
        %v4253 = vld [vmem:[#allocation10 + $0x28] sm:$0xf]
        %v4254 = vld [vmem:[#allocation10 + $0x2c] sm:$0xf]
        %v4255 = vld [vmem:[#allocation10 + $0x30] sm:$0xf]
        %v4256 = vld [vmem:[#allocation10 + $0x34] sm:$0xf]
        %v4257 = vld [vmem:[#allocation10 + $0x38] sm:$0xf]
        %v4258 = vld [vmem:[#allocation10 + $0x3c] sm:$0xf]
        %v4259 = vld [vmem:[#allocation10 + $0x40] sm:$0xf]
        %v4260 = vld [vmem:[#allocation10 + $0x44] sm:$0xf]
        %v4261 = vld [vmem:[#allocation10 + $0x48] sm:$0xf]
        %v4262 = vld [vmem:[#allocation10 + $0x4c] sm:$0xf]
        %v4263 = vld [vmem:[#allocation10 + $0x50] sm:$0xf]
        %v4264 = vld [vmem:[#allocation10 + $0x54] sm:$0xf]
        %v4265 = vld [vmem:[#allocation10 + $0x58] sm:$0xf]
        %v4266 = vld [vmem:[#allocation10 + $0x5c] sm:$0xf]
        %v4267 = vld [vmem:[#allocation10 + $0x60] sm:$0xf]
        %v4268 = vld [vmem:[#allocation10 + $0x64] sm:$0xf]
        %v4269 = vld [vmem:[#allocation10 + $0x68] sm:$0xf]
        %v4270 = vld [vmem:[#allocation10 + $0x6c] sm:$0xf]
        %v4271 = vld [vmem:[#allocation10 + $0x70] sm:$0xf]
        %v4272 = vld [vmem:[#allocation10 + $0x74] sm:$0xf]
        %v4273 = vld [vmem:[#allocation10 + $0x78] sm:$0xf]
        %v4274 = vld [vmem:[#allocation10 + $0x7c] sm:$0xf]
        %v4275 = vld [vmem:[#allocation10 + $0x80] sm:$0xf]
        %v4276 = vld [vmem:[#allocation10 + $0x84] sm:$0xf]
        %v4277 = vld [vmem:[#allocation10 + $0x88] sm:$0xf]
        %v4278 = vld [vmem:[#allocation10 + $0x8c] sm:$0xf]
        %v4279 = vld [vmem:[#allocation10 + $0x90] sm:$0xf]
        %v4280 = vld [vmem:[#allocation10 + $0x94] sm:$0xf]
        %v4281 = vld [vmem:[#allocation10 + $0x98] sm:$0xf]
        %v4282 = vld [vmem:[#allocation10 + $0x9c] sm:$0xf]
        %v4283 = vld [vmem:[#allocation10 + $0xa0] sm:$0xf]
        %v4284 = vld [vmem:[#allocation10 + $0xa4] sm:$0xf]
        %v4285 = vld [vmem:[#allocation10 + $0xa8] sm:$0xf]
        %v4286 = vld [vmem:[#allocation10 + $0xac] sm:$0xf]
        %v4287 = vld [vmem:[#allocation10 + $0xb0] sm:$0xf]
        %v4288 = vld [vmem:[#allocation10 + $0xb4] sm:$0xf]
        %v4289 = vld [vmem:[#allocation10 + $0xb8] sm:$0xf]
        %v4290 = vld [vmem:[#allocation10 + $0xbc] sm:$0xf]
        %v4291 = vld [vmem:[%s8] sm:$0x1]
        %v4293 = vperm.slane %v4291, 0
        %v4343 = vunpack.c.l.b16 %v4243
        %v4344 = vunpack.c.l.b16 %v4244
        %v4345 = vunpack.c.l.b16 %v4245
        %v4346 = vunpack.c.l.b16 %v4246
        %v4347 = vunpack.c.l.b16 %v4247
        %v4348 = vunpack.c.l.b16 %v4248
        %v4349 = vunpack.c.l.b16 %v4249
        %v4350 = vunpack.c.l.b16 %v4250
        %v4351 = vunpack.c.l.b16 %v4251
        %v4352 = vunpack.c.l.b16 %v4252
        %v4353 = vunpack.c.l.b16 %v4253
        %v4354 = vunpack.c.l.b16 %v4254
        %v4355 = vunpack.c.l.b16 %v4255
        %v4356 = vunpack.c.l.b16 %v4256
        %v4357 = vunpack.c.l.b16 %v4257
        %v4358 = vunpack.c.l.b16 %v4258
        %v4359 = vunpack.c.l.b16 %v4259
        %v4360 = vunpack.c.l.b16 %v4260
        %v4361 = vunpack.c.l.b16 %v4261
        %v4362 = vunpack.c.l.b16 %v4262
        %v4363 = vunpack.c.l.b16 %v4263
        %v4364 = vunpack.c.l.b16 %v4264
        %v4365 = vunpack.c.l.b16 %v4265
        %v4366 = vunpack.c.l.b16 %v4266
        %v4367 = vunpack.c.l.b16 %v4267
        %v4368 = vunpack.c.l.b16 %v4268
        %v4369 = vunpack.c.l.b16 %v4269
        %v4370 = vunpack.c.l.b16 %v4270
        %v4371 = vunpack.c.l.b16 %v4271
        %v4372 = vunpack.c.l.b16 %v4272
        %v4373 = vunpack.c.l.b16 %v4273
        %v4374 = vunpack.c.l.b16 %v4274
        %v4375 = vunpack.c.l.b16 %v4275
        %v4376 = vunpack.c.l.b16 %v4276
        %v4377 = vunpack.c.l.b16 %v4277
        %v4378 = vunpack.c.l.b16 %v4278
        %v4379 = vunpack.c.l.b16 %v4279
        %v4380 = vunpack.c.l.b16 %v4280
        %v4381 = vunpack.c.l.b16 %v4281
        %v4382 = vunpack.c.l.b16 %v4282
        %v4383 = vunpack.c.l.b16 %v4283
        %v4384 = vunpack.c.l.b16 %v4284
        %v4385 = vunpack.c.l.b16 %v4285
        %v4386 = vunpack.c.l.b16 %v4286
        %v4387 = vunpack.c.l.b16 %v4287
        %v4388 = vunpack.c.l.b16 %v4288
        %v4389 = vunpack.c.l.b16 %v4289
        %v4390 = vunpack.c.l.b16 %v4290
        %v4391 = vpack.c.b16 %v4344, %v4343
        %v4392 = vpack.c.b16 %v4346, %v4345
        %v4393 = vpack.c.b16 %v4348, %v4347
        %v4394 = vpack.c.b16 %v4350, %v4349
        %v4395 = vpack.c.b16 %v4352, %v4351
        %v4396 = vpack.c.b16 %v4354, %v4353
        %v4397 = vpack.c.b16 %v4356, %v4355
        %v4398 = vpack.c.b16 %v4358, %v4357
        %v4399 = vpack.c.b16 %v4360, %v4359
        %v4400 = vpack.c.b16 %v4362, %v4361
        %v4401 = vpack.c.b16 %v4364, %v4363
        %v4402 = vpack.c.b16 %v4366, %v4365
        %v4403 = vpack.c.b16 %v4368, %v4367
        %v4404 = vpack.c.b16 %v4370, %v4369
        %v4405 = vpack.c.b16 %v4372, %v4371
        %v4406 = vpack.c.b16 %v4374, %v4373
        %v4407 = vpack.c.b16 %v4376, %v4375
        %v4408 = vpack.c.b16 %v4378, %v4377
        %v4409 = vpack.c.b16 %v4380, %v4379
        %v4410 = vpack.c.b16 %v4382, %v4381
        %v4411 = vpack.c.b16 %v4384, %v4383
        %v4412 = vpack.c.b16 %v4386, %v4385
        %v4413 = vpack.c.b16 %v4388, %v4387
        %v4414 = vpack.c.b16 %v4390, %v4389
        %4439 = vmatpush.bf16.msra.mxu0 %v4398
        %4440 = vmatpush.bf16.msra.mxu0 %v4397
        %4441 = vmatpush.bf16.msra.mxu0 %v4396
        %4442 = vmatpush.bf16.msra.mxu0 %v4395
        %4443 = vmatpush.bf16.msra.mxu0 %v4394
        %4444 = vmatpush.bf16.msra.mxu0 %v4393
        %4445 = vmatpush.bf16.msra.mxu0 %v4392
        %4446 = vmatpush.bf16.msra.mxu0 %v4391
        %4447 = vmatmul.bf16.gmra.mxu0 %v4195
        %v4448 = vpop.f32.mrf.mxu0
        %v4449 = vadd.f32 %v4293, %v4448
        %v4450 = vpop.f32.mrf.mxu0
        %v4451 = vadd.f32 %v4293, %v4450
        %4452 = vmatmul.bf16.gmra.mxu0 %v4198
        %v4453 = vpop.f32.mrf.mxu0
        %v4454 = vadd.f32 %v4293, %v4453
        %v4455 = vpop.f32.mrf.mxu0
        %v4456 = vadd.f32 %v4293, %v4455
        %4457 = vmatmul.bf16.gmra.mxu0 %v4201
        %v4458 = vpop.f32.mrf.mxu0
        %v4459 = vadd.f32 %v4293, %v4458
        %v4460 = vpop.f32.mrf.mxu0
        %v4461 = vadd.f32 %v4293, %v4460
        %4462 = vmatmul.bf16.gmra.mxu0 %v4204
        %v4463 = vpop.f32.mrf.mxu0
        %v4464 = vadd.f32 %v4293, %v4463
        %v4465 = vpop.f32.mrf.mxu0
        %v4466 = vadd.f32 %v4293, %v4465
        %4467 = vmatmul.bf16.gmra.mxu0 %v4207
        %v4468 = vpop.f32.mrf.mxu0
        %v4469 = vadd.f32 %v4293, %v4468
        %v4470 = vpop.f32.mrf.mxu0
        %v4471 = vadd.f32 %v4293, %v4470
        %4472 = vmatmul.bf16.gmra.mxu0 %v4210
        %v4473 = vpop.f32.mrf.mxu0
        %v4474 = vadd.f32 %v4293, %v4473
        %v4475 = vpop.f32.mrf.mxu0
        %v4476 = vadd.f32 %v4293, %v4475
        %4477 = vmatmul.bf16.gmra.mxu0 %v4213
        %v4478 = vpop.f32.mrf.mxu0
        %v4479 = vadd.f32 %v4293, %v4478
        %v4480 = vpop.f32.mrf.mxu0
        %v4481 = vadd.f32 %v4293, %v4480
        %4482 = vmatmul.bf16.gmra.mxu0 %v4216
        %v4483 = vpop.f32.mrf.mxu0
        %v4484 = vadd.f32 %v4293, %v4483
        %v4485 = vpop.f32.mrf.mxu0
        %v4486 = vadd.f32 %v4293, %v4485
        %4487 = vmatmul.bf16.gmra.mxu0 %v4219
        %v4488 = vpop.f32.mrf.mxu0
        %v4489 = vadd.f32 %v4293, %v4488
        %v4490 = vpop.f32.mrf.mxu0
        %v4491 = vadd.f32 %v4293, %v4490
        %4492 = vmatmul.bf16.gmra.mxu0 %v4222
        %v4493 = vpop.f32.mrf.mxu0
        %v4494 = vadd.f32 %v4293, %v4493
        %v4495 = vpop.f32.mrf.mxu0
        %v4496 = vadd.f32 %v4293, %v4495
        %4497 = vmatmul.bf16.gmra.mxu0 %v4225
        %v4498 = vpop.f32.mrf.mxu0
        %v4499 = vadd.f32 %v4293, %v4498
        %v4500 = vpop.f32.mrf.mxu0
        %v4501 = vadd.f32 %v4293, %v4500
        %4502 = vmatmul.bf16.gmra.mxu0 %v4228
        %v4503 = vpop.f32.mrf.mxu0
        %v4504 = vadd.f32 %v4293, %v4503
        %v4505 = vpop.f32.mrf.mxu0
        %v4506 = vadd.f32 %v4293, %v4505
        %4507 = vmatmul.bf16.gmra.mxu0 %v4231
        %v4508 = vpop.f32.mrf.mxu0
        %v4509 = vadd.f32 %v4293, %v4508
        %v4510 = vpop.f32.mrf.mxu0
        %v4511 = vadd.f32 %v4293, %v4510
        %4512 = vmatmul.bf16.gmra.mxu0 %v4234
        %v4513 = vpop.f32.mrf.mxu0
        %v4514 = vadd.f32 %v4293, %v4513
        %v4515 = vpop.f32.mrf.mxu0
        %v4516 = vadd.f32 %v4293, %v4515
        %4517 = vmatmul.bf16.gmra.mxu0 %v4237
        %v4518 = vpop.f32.mrf.mxu0
        %v4519 = vadd.f32 %v4293, %v4518
        %v4520 = vpop.f32.mrf.mxu0
        %v4521 = vadd.f32 %v4293, %v4520
        %4522 = vmatmul.bf16.gmra.mxu0 %v4240
        %v4523 = vpop.f32.mrf.mxu0
        %v4524 = vadd.f32 %v4293, %v4523
        %v4525 = vpop.f32.mrf.mxu0
        %v4526 = vadd.f32 %v4293, %v4525
        %4527 = vdwg.mxu0
        %4528 = vmatpush.bf16.msra.mxu0 %v4406
        %4529 = vmatpush.bf16.msra.mxu0 %v4405
        %4530 = vmatpush.bf16.msra.mxu0 %v4404
        %4531 = vmatpush.bf16.msra.mxu0 %v4403
        %4532 = vmatpush.bf16.msra.mxu0 %v4402
        %4533 = vmatpush.bf16.msra.mxu0 %v4401
        %4534 = vmatpush.bf16.msra.mxu0 %v4400
        %4535 = vmatpush.bf16.msra.mxu0 %v4399
        %4536 = vmatmul.bf16.gmra.mxu0 %v4196
        %v4537 = vpop.f32.mrf.mxu0
        %v4538 = vadd.f32 %v4449, %v4537
        %v4539 = vpop.f32.mrf.mxu0
        %v4540 = vadd.f32 %v4451, %v4539
        %4541 = vmatmul.bf16.gmra.mxu0 %v4199
        %v4542 = vpop.f32.mrf.mxu0
        %v4543 = vadd.f32 %v4454, %v4542
        %v4544 = vpop.f32.mrf.mxu0
        %v4545 = vadd.f32 %v4456, %v4544
        %4546 = vmatmul.bf16.gmra.mxu0 %v4202
        %v4547 = vpop.f32.mrf.mxu0
        %v4548 = vadd.f32 %v4459, %v4547
        %v4549 = vpop.f32.mrf.mxu0
        %v4550 = vadd.f32 %v4461, %v4549
        %4551 = vmatmul.bf16.gmra.mxu0 %v4205
        %v4552 = vpop.f32.mrf.mxu0
        %v4553 = vadd.f32 %v4464, %v4552
        %v4554 = vpop.f32.mrf.mxu0
        %v4555 = vadd.f32 %v4466, %v4554
        %4556 = vmatmul.bf16.gmra.mxu0 %v4208
        %v4557 = vpop.f32.mrf.mxu0
        %v4558 = vadd.f32 %v4469, %v4557
        %v4559 = vpop.f32.mrf.mxu0
        %v4560 = vadd.f32 %v4471, %v4559
        %4561 = vmatmul.bf16.gmra.mxu0 %v4211
        %v4562 = vpop.f32.mrf.mxu0
        %v4563 = vadd.f32 %v4474, %v4562
        %v4564 = vpop.f32.mrf.mxu0
        %v4565 = vadd.f32 %v4476, %v4564
        %4566 = vmatmul.bf16.gmra.mxu0 %v4214
        %v4567 = vpop.f32.mrf.mxu0
        %v4568 = vadd.f32 %v4479, %v4567
        %v4569 = vpop.f32.mrf.mxu0
        %v4570 = vadd.f32 %v4481, %v4569
        %4571 = vmatmul.bf16.gmra.mxu0 %v4217
        %v4572 = vpop.f32.mrf.mxu0
        %v4573 = vadd.f32 %v4484, %v4572
        %v4574 = vpop.f32.mrf.mxu0
        %v4575 = vadd.f32 %v4486, %v4574
        %4576 = vmatmul.bf16.gmra.mxu0 %v4220
        %v4577 = vpop.f32.mrf.mxu0
        %v4578 = vadd.f32 %v4489, %v4577
        %v4579 = vpop.f32.mrf.mxu0
        %v4580 = vadd.f32 %v4491, %v4579
        %4581 = vmatmul.bf16.gmra.mxu0 %v4223
        %v4582 = vpop.f32.mrf.mxu0
        %v4583 = vadd.f32 %v4494, %v4582
        %v4584 = vpop.f32.mrf.mxu0
        %v4585 = vadd.f32 %v4496, %v4584
        %4586 = vmatmul.bf16.gmra.mxu0 %v4226
        %v4587 = vpop.f32.mrf.mxu0
        %v4588 = vadd.f32 %v4499, %v4587
        %v4589 = vpop.f32.mrf.mxu0
        %v4590 = vadd.f32 %v4501, %v4589
        %4591 = vmatmul.bf16.gmra.mxu0 %v4229
        %v4592 = vpop.f32.mrf.mxu0
        %v4593 = vadd.f32 %v4504, %v4592
        %v4594 = vpop.f32.mrf.mxu0
        %v4595 = vadd.f32 %v4506, %v4594
        %4596 = vmatmul.bf16.gmra.mxu0 %v4232
        %v4597 = vpop.f32.mrf.mxu0
        %v4598 = vadd.f32 %v4509, %v4597
        %v4599 = vpop.f32.mrf.mxu0
        %v4600 = vadd.f32 %v4511, %v4599
        %4601 = vmatmul.bf16.gmra.mxu0 %v4235
        %v4602 = vpop.f32.mrf.mxu0
        %v4603 = vadd.f32 %v4514, %v4602
        %v4604 = vpop.f32.mrf.mxu0
        %v4605 = vadd.f32 %v4516, %v4604
        %4606 = vmatmul.bf16.gmra.mxu0 %v4238
        %v4607 = vpop.f32.mrf.mxu0
        %v4608 = vadd.f32 %v4519, %v4607
        %v4609 = vpop.f32.mrf.mxu0
        %v4610 = vadd.f32 %v4521, %v4609
        %4611 = vmatmul.bf16.gmra.mxu0 %v4241
        %v4612 = vpop.f32.mrf.mxu0
        %v4613 = vadd.f32 %v4524, %v4612
        %v4614 = vpop.f32.mrf.mxu0
        %v4615 = vadd.f32 %v4526, %v4614
        %4616 = vdwg.mxu0
        %4617 = vmatpush.bf16.msra.mxu0 %v4414
        %4618 = vmatpush.bf16.msra.mxu0 %v4413
        %4619 = vmatpush.bf16.msra.mxu0 %v4412
        %4620 = vmatpush.bf16.msra.mxu0 %v4411
        %4621 = vmatpush.bf16.msra.mxu0 %v4410
        %4622 = vmatpush.bf16.msra.mxu0 %v4409
        %4623 = vmatpush.bf16.msra.mxu0 %v4408
        %4624 = vmatpush.bf16.msra.mxu0 %v4407
        %4625 = vmatmul.bf16.gmra.mxu0 %v4197
        %v4626 = vpop.f32.mrf.mxu0
        %v4627 = vadd.f32 %v4538, %v4626
        %v4628 = vpop.f32.mrf.mxu0
        %v4629 = vadd.f32 %v4540, %v4628
        %4630 = vmatmul.bf16.gmra.mxu0 %v4200
        %v4631 = vpop.f32.mrf.mxu0
        %v4632 = vadd.f32 %v4543, %v4631
        %v4633 = vpop.f32.mrf.mxu0
        %v4634 = vadd.f32 %v4545, %v4633
        %4635 = vmatmul.bf16.gmra.mxu0 %v4203
        %v4636 = vpop.f32.mrf.mxu0
        %v4637 = vadd.f32 %v4548, %v4636
        %v4638 = vpop.f32.mrf.mxu0
        %v4639 = vadd.f32 %v4550, %v4638
        %4640 = vmatmul.bf16.gmra.mxu0 %v4206
        %v4641 = vpop.f32.mrf.mxu0
        %v4642 = vadd.f32 %v4553, %v4641
        %v4643 = vpop.f32.mrf.mxu0
        %v4644 = vadd.f32 %v4555, %v4643
        %4645 = vmatmul.bf16.gmra.mxu0 %v4209
        %v4646 = vpop.f32.mrf.mxu0
        %v4647 = vadd.f32 %v4558, %v4646
        %v4648 = vpop.f32.mrf.mxu0
        %v4649 = vadd.f32 %v4560, %v4648
        %4650 = vmatmul.bf16.gmra.mxu0 %v4212
        %v4651 = vpop.f32.mrf.mxu0
        %v4652 = vadd.f32 %v4563, %v4651
        %v4653 = vpop.f32.mrf.mxu0
        %v4654 = vadd.f32 %v4565, %v4653
        %4655 = vmatmul.bf16.gmra.mxu0 %v4215
        %v4656 = vpop.f32.mrf.mxu0
        %v4657 = vadd.f32 %v4568, %v4656
        %v4658 = vpop.f32.mrf.mxu0
        %v4659 = vadd.f32 %v4570, %v4658
        %4660 = vmatmul.bf16.gmra.mxu0 %v4218
        %v4661 = vpop.f32.mrf.mxu0
        %v4662 = vadd.f32 %v4573, %v4661
        %v4663 = vpop.f32.mrf.mxu0
        %v4664 = vadd.f32 %v4575, %v4663
        %4665 = vmatmul.bf16.gmra.mxu0 %v4221
        %v4666 = vpop.f32.mrf.mxu0
        %v4667 = vadd.f32 %v4578, %v4666
        %v4668 = vpop.f32.mrf.mxu0
        %v4669 = vadd.f32 %v4580, %v4668
        %4670 = vmatmul.bf16.gmra.mxu0 %v4224
        %v4671 = vpop.f32.mrf.mxu0
        %v4672 = vadd.f32 %v4583, %v4671
        %v4673 = vpop.f32.mrf.mxu0
        %v4674 = vadd.f32 %v4585, %v4673
        %4675 = vmatmul.bf16.gmra.mxu0 %v4227
        %v4676 = vpop.f32.mrf.mxu0
        %v4677 = vadd.f32 %v4588, %v4676
        %v4678 = vpop.f32.mrf.mxu0
        %v4679 = vadd.f32 %v4590, %v4678
        %4680 = vmatmul.bf16.gmra.mxu0 %v4230
        %v4681 = vpop.f32.mrf.mxu0
        %v4682 = vadd.f32 %v4593, %v4681
        %v4683 = vpop.f32.mrf.mxu0
        %v4684 = vadd.f32 %v4595, %v4683
        %4685 = vmatmul.bf16.gmra.mxu0 %v4233
        %v4686 = vpop.f32.mrf.mxu0
        %v4687 = vadd.f32 %v4598, %v4686
        %v4688 = vpop.f32.mrf.mxu0
        %v4689 = vadd.f32 %v4600, %v4688
        %4690 = vmatmul.bf16.gmra.mxu0 %v4236
        %v4691 = vpop.f32.mrf.mxu0
        %v4692 = vadd.f32 %v4603, %v4691
        %v4693 = vpop.f32.mrf.mxu0
        %v4694 = vadd.f32 %v4605, %v4693
        %4695 = vmatmul.bf16.gmra.mxu0 %v4239
        %v4696 = vpop.f32.mrf.mxu0
        %v4697 = vadd.f32 %v4608, %v4696
        %v4698 = vpop.f32.mrf.mxu0
        %v4699 = vadd.f32 %v4610, %v4698
        %4700 = vmatmul.bf16.gmra.mxu0 %v4242
        %v4701 = vpop.f32.mrf.mxu0
        %v4702 = vadd.f32 %v4613, %v4701
        %v4703 = vpop.f32.mrf.mxu0
        %v4704 = vadd.f32 %v4615, %v4703
        %4705 = vdwg.mxu0
        %v4706 = vadd.f32 %v4627, %v419
        %v4707 = vadd.f32 %v4629, %v420
        %v4708 = vadd.f32 %v4632, %v421
        %v4709 = vadd.f32 %v4634, %v422
        %v4710 = vadd.f32 %v4637, %v423
        %v4711 = vadd.f32 %v4639, %v424
        %v4712 = vadd.f32 %v4642, %v425
        %v4713 = vadd.f32 %v4644, %v426
        %v4714 = vadd.f32 %v4647, %v427
        %v4715 = vadd.f32 %v4649, %v428
        %v4716 = vadd.f32 %v4652, %v429
        %v4717 = vadd.f32 %v4654, %v430
        %v4718 = vadd.f32 %v4657, %v431
        %v4719 = vadd.f32 %v4659, %v432
        %v4720 = vadd.f32 %v4662, %v433
        %v4721 = vadd.f32 %v4664, %v434
        %v4722 = vadd.f32 %v4667, %v435
        %v4723 = vadd.f32 %v4669, %v436
        %v4724 = vadd.f32 %v4672, %v437
        %v4725 = vadd.f32 %v4674, %v438
        %v4726 = vadd.f32 %v4677, %v439
        %v4727 = vadd.f32 %v4679, %v440
        %v4728 = vadd.f32 %v4682, %v441
        %v4729 = vadd.f32 %v4684, %v442
        %v4730 = vadd.f32 %v4687, %v443
        %v4731 = vadd.f32 %v4689, %v444
        %v4732 = vadd.f32 %v4692, %v445
        %v4733 = vadd.f32 %v4694, %v446
        %v4734 = vadd.f32 %v4697, %v447
        %v4735 = vadd.f32 %v4699, %v448
        %v4736 = vadd.f32 %v4702, %v449
        %v4737 = vadd.f32 %v4704, %v450
        %v4738 = vmax.f32 %v4706, 0.0
        %v4739 = vmax.f32 %v4707, 0.0
        %v4740 = vmax.f32 %v4708, 0.0
        %v4741 = vmax.f32 %v4709, 0.0
        %v4742 = vmax.f32 %v4710, 0.0
        %v4743 = vmax.f32 %v4711, 0.0
        %v4744 = vmax.f32 %v4712, 0.0
        %v4745 = vmax.f32 %v4713, 0.0
        %v4746 = vmax.f32 %v4714, 0.0
        %v4747 = vmax.f32 %v4715, 0.0
        %v4748 = vmax.f32 %v4716, 0.0
        %v4749 = vmax.f32 %v4717, 0.0
        %v4750 = vmax.f32 %v4718, 0.0
        %v4751 = vmax.f32 %v4719, 0.0
        %v4752 = vmax.f32 %v4720, 0.0
        %v4753 = vmax.f32 %v4721, 0.0
        %v4754 = vmax.f32 %v4722, 0.0
        %v4755 = vmax.f32 %v4723, 0.0
        %v4756 = vmax.f32 %v4724, 0.0
        %v4757 = vmax.f32 %v4725, 0.0
        %v4758 = vmax.f32 %v4726, 0.0
        %v4759 = vmax.f32 %v4727, 0.0
        %v4760 = vmax.f32 %v4728, 0.0
        %v4761 = vmax.f32 %v4729, 0.0
        %v4762 = vmax.f32 %v4730, 0.0
        %v4763 = vmax.f32 %v4731, 0.0
        %v4764 = vmax.f32 %v4732, 0.0
        %v4765 = vmax.f32 %v4733, 0.0
        %v4766 = vmax.f32 %v4734, 0.0
        %v4767 = vmax.f32 %v4735, 0.0
        %v4768 = vmax.f32 %v4736, 0.0
        %v4769 = vmax.f32 %v4737, 0.0
        %4770 = vst [vmem:[%s418] sm:$0xff] %v4738
        %4771 = vst [vmem:[%s418 + $0x8] sm:$0xff] %v4739
        %4772 = vst [vmem:[%s418 + $0x10] sm:$0xff] %v4740
        %4773 = vst [vmem:[%s418 + $0x18] sm:$0xff] %v4741
        %4774 = vst [vmem:[%s418 + $0x20] sm:$0xff] %v4742
        %4775 = vst [vmem:[%s418 + $0x28] sm:$0xff] %v4743
        %4776 = vst [vmem:[%s418 + $0x30] sm:$0xff] %v4744
        %4777 = vst [vmem:[%s418 + $0x38] sm:$0xff] %v4745
        %4778 = vst [vmem:[%s418 + $0x40] sm:$0xff] %v4746
        %4779 = vst [vmem:[%s418 + $0x48] sm:$0xff] %v4747
        %4780 = vst [vmem:[%s418 + $0x50] sm:$0xff] %v4748
        %4781 = vst [vmem:[%s418 + $0x58] sm:$0xff] %v4749
        %4782 = vst [vmem:[%s418 + $0x60] sm:$0xff] %v4750
        %4783 = vst [vmem:[%s418 + $0x68] sm:$0xff] %v4751
        %4784 = vst [vmem:[%s418 + $0x70] sm:$0xff] %v4752
        %4785 = vst [vmem:[%s418 + $0x78] sm:$0xff] %v4753
        %4786 = vst [vmem:[%s418 + $0x80] sm:$0xff] %v4754
        %4787 = vst [vmem:[%s418 + $0x88] sm:$0xff] %v4755
        %4788 = vst [vmem:[%s418 + $0x90] sm:$0xff] %v4756
        %4789 = vst [vmem:[%s418 + $0x98] sm:$0xff] %v4757
        %4790 = vst [vmem:[%s418 + $0xa0] sm:$0xff] %v4758
        %4791 = vst [vmem:[%s418 + $0xa8] sm:$0xff] %v4759
        %4792 = vst [vmem:[%s418 + $0xb0] sm:$0xff] %v4760
        %4793 = vst [vmem:[%s418 + $0xb8] sm:$0xff] %v4761
        %4794 = vst [vmem:[%s418 + $0xc0] sm:$0xff] %v4762
        %4795 = vst [vmem:[%s418 + $0xc8] sm:$0xff] %v4763
        %4796 = vst [vmem:[%s418 + $0xd0] sm:$0xff] %v4764
        %4797 = vst [vmem:[%s418 + $0xd8] sm:$0xff] %v4765
        %4798 = vst [vmem:[%s418 + $0xe0] sm:$0xff] %v4766
        %4799 = vst [vmem:[%s418 + $0xe8] sm:$0xff] %v4767
        %4800 = vst [vmem:[%s418 + $0xf0] sm:$0xff] %v4768
        %4801 = vst [vmem:[%s418 + $0xf8] sm:$0xff] %v4769
        %s4802 = sand.u32 %s230, 1
        %s4803 = scalar_lea.sflag [#allocation4], %s4802
        %s4804 = sand.u32 %s230, 1
        %s4805 = smul.addr %s4804, 256
        %s4806 = scalar_lea.vmem [#allocation11], %s4805
        // Predicated region
        $region77: #{tpu_custom_call.1} parent=55 // pred_check
          %p4807 = pneg %p240
        $region78: #{tpu_custom_call.1} parent=55 // pred_check_branch
          %4809 = sbr.rel (%p4807) target = $region80
        $region79: #{tpu_custom_call.1} parent=55 // pred_region
          %4811 = vsyncadd %s4803, 0
          %s4812 = smul.addr %s28, 32
          %s4813 = smul.addr %s4812, 8
          %s4814 = scalar_lea.hbm %s9, %s4813
          %s4815 = sshll.u32 %s4806, 4
          %s4816 = int_to_ptr.vmem [resolvable:$true] %s4815
          %s4817 = sshll.u32 %s4814, 4
          %s4818 = int_to_ptr.hbm [resolvable:$true] %s4817
          %4823 = dma.vmem_to_hbm [thread:$0]  %s4816, 4096, %s4818, %s4803, 128, 128, 8
        $region80: #{tpu_custom_call.1} parent=55 // pred_fallthru
          _
      $region56: #{tpu_custom_call.1} parent=5 // pred_fallthru
        _
      %p4824 = scmp.le.s32.totalorder 2, %s23
      // Predicated region
      $region81: #{tpu_custom_call.1} parent=5 // pred_check
        %p4825 = pneg %p4824
      $region82: #{tpu_custom_call.1} parent=5 // pred_check_branch
        %4827 = sbr.rel (%p4825) target = $region84
      $region83: #{tpu_custom_call.1} parent=5 // pred_region
        %s4828 = ssub.s32 %s23, 2
        // Predicated region
        $region85: #{tpu_custom_call.1} parent=83 // pred_check
          %p4829 = pneg %p246
        $region86: #{tpu_custom_call.1} parent=83 // pred_check_branch
          %4831 = sbr.rel (%p4829) target = $region88
        $region87: #{tpu_custom_call.1} parent=83 // pred_region
          %s4832 = sand.u32 %s231, 1
          %s4833 = scalar_lea.sflag [#allocation4], %s4832
          %s4834 = sand.u32 %s231, 1
          %s4835 = smul.addr %s4834, 256
          %s4836 = scalar_lea.vmem [#allocation11], %s4835
          %4838 = dma.done %s4833, 4096
        $region88: #{tpu_custom_call.1} parent=83 // pred_fallthru
          _
      $region84: #{tpu_custom_call.1} parent=5 // pred_fallthru
        _
    $region6: #{tpu_custom_call.1} parent=1 // loop_footer
      %s27 = sadd.s32 1, %s23
    $region7: #{tpu_custom_call.1} parent=1 // loop_footer_branch
      %22 = sbr.rel target = $region3
    $region8: #{tpu_custom_call.1} parent=1 // loop_exit
      _
    %4839 = vsyncpa [#allocation3], 1
    %s4840 = scalar_lea.sflag [#allocation3], 1
    %4841 = vsyncpa %s4840, 1
    %4842 = vsyncpa [#allocation6], 1
    %4843 = vsyncpa [#allocation9], 1
    %4844 = vsyncpa [#allocation4], 1
    %s4845 = scalar_lea.sflag [#allocation4], 1
    %4846 = vsyncpa %s4845, 1

</llo_original>
